<compile_context>
chip_gen: v7x
topology: tpu7x:2x2x1
jax: 0.10.0
libtpu: 0.0.40
codegen_flags: <defaults>
</compile_context>

<pallas_src>
import math
from functools import partial

import jax
import jax.numpy as jnp
from jax import lax
from jax.experimental import pallas as pl
from jax.experimental.pallas import tpu as pltpu


# --------------------------- in-kernel math helpers --------------------------- #

def _erf(x):
    # Abramowitz & Stegun 7.1.26 rational approximation, |err| <= 1.5e-7.
    a1, a2, a3, a4, a5 = 0.254829592, -0.284496736, 1.421413741, -1.453152027, 1.061405429
    p = 0.3275911
    ax = jnp.abs(x)
    t = 1.0 / (1.0 + p * ax)
    poly = ((((a5 * t + a4) * t + a3) * t + a2) * t + a1) * t
    y = 1.0 - poly * jnp.exp(-(ax * ax))
    return jnp.where(x >= 0, y, -y)


def _gelu(x):
    # exact (erf-based) GELU, matching F.gelu default
    return 0.5 * x * (1.0 + _erf(x * 0.7071067811865476))


def _layernorm(x, g, b, eps=1e-5):
    mu = jnp.mean(x, axis=-1, keepdims=True)
    xc = x - mu
    var = jnp.mean(xc * xc, axis=-1, keepdims=True)        # biased variance (PyTorch LN)
    return xc * lax.rsqrt(var + eps) * g + b


# ------------------------------ fused forward kernel --------------------------- #

def _transformer_kernel(x_ref, m_ref, tw_ref, pe_ref,
                        wqkv_ref, bqkv_ref, wo_ref, bo_ref,
                        n1g_ref, n1b_ref, w1_ref, b1_ref, w2_ref, b2_ref,
                        n2g_ref, n2b_ref, ng_ref, nb_ref, pw_ref, pb_ref,
                        o_ref, *, n_heads, e_layers, seq_len):
    L = seq_len
    x_in = x_ref[0]                                        # (L, C) f32
    D = pe_ref.shape[-1]
    dk = D // n_heads

    # ---- DataEmbedding: circular conv1d (k=3, no bias) + fixed positional embedding ----
    # x[t-1] / x[t+1] via XLU sublane rotations (circular padding).
    x_prev = pltpu.roll(x_in, shift=1, axis=0)             # row t holds x[t-1]
    x_next = pltpu.roll(x_in, shift=L - 1, axis=0)         # row t holds x[t+1]
    x = (jnp.dot(x_prev.astype(jnp.bfloat16), tw_ref[0], preferred_element_type=jnp.float32)
         + jnp.dot(x_in.astype(jnp.bfloat16), tw_ref[1], preferred_element_type=jnp.float32)
         + jnp.dot(x_next.astype(jnp.bfloat16), tw_ref[2], preferred_element_type=jnp.float32)
         + pe_ref[...])                                    # (L, D) f32
    # TODO(synk): nn.Dropout layers are identity at inference; stochastic dropout not emitted.

    # ---- Encoder: e_layers fused EncoderLayers, weights resident in VMEM ----
    for e in range(e_layers):
        # fused Q|K|V projection (scale folded into Q columns at init)
        qkv = jnp.dot(x.astype(jnp.bfloat16), wqkv_ref[e],
                      preferred_element_type=jnp.float32) + bqkv_ref[e]    # (L, 3D)

        # per-head attention; head concat folded into the out-projection
        attn_out = jnp.zeros((L, D), jnp.float32)
        for h in range(n_heads):
            q = qkv[:, h * dk:(h + 1) * dk]                # (L, dk)
            k = qkv[:, D + h * dk:D + (h + 1) * dk]
            v = qkv[:, 2 * D + h * dk:2 * D + (h + 1) * dk]
            s = lax.dot_general(q, k, (((1,), (1,)), ((), ())),
                                preferred_element_type=jnp.float32)        # (L, L)
            s = s - jnp.max(s, axis=-1, keepdims=True)
            p = jnp.exp(s)
            p = p * pl.reciprocal(jnp.sum(p, axis=-1, keepdims=True), approx=True)
            ctx = jnp.dot(p, v, preferred_element_type=jnp.float32)        # (L, dk)
            attn_out = attn_out + jnp.dot(ctx.astype(jnp.bfloat16), wo_ref[e, h],
                                          preferred_element_type=jnp.float32)
        new_x = attn_out + bo_ref[e]

        # residual + LayerNorm1
        x1 = _layernorm(x + new_x, n1g_ref[e], n1b_ref[e])

        # position-wise FFN (conv1 -> exact GELU -> conv2) + residual + LayerNorm2
        y = jnp.dot(x1.astype(jnp.bfloat16), w1_ref[e],
                    preferred_element_type=jnp.float32) + b1_ref[e]
        y = _gelu(y)
        y = jnp.dot(y.astype(jnp.bfloat16), w2_ref[e],
                    preferred_element_type=jnp.float32) + b2_ref[e]
        x = _layernorm(x1 + y, n2g_ref[e], n2b_ref[e])

    # ---- classification head: final encoder LN + GELU + padding mask + projection ----
    xn = _layernorm(x, ng_ref[...], nb_ref[...])
    hm = _gelu(xn) * m_ref[0]                              # (L, D) * (L, 1)

    # flatten (L, D) -> (1, L*D) row-major (matches torch .reshape(B, -1)) via lane concat,
    # then a single K = L*D contraction against the lane-padded classifier weights.
    flat = jnp.concatenate([hm[l:l + 1, :] for l in range(L)], axis=1)     # (1, L*D)
    logits = jnp.dot(flat.astype(jnp.bfloat16), pw_ref[...],
                     preferred_element_type=jnp.float32) + pb_ref[...]     # (1, NP)
    o_ref[0] = jax.nn.sigmoid(logits)


# --------------------------------- model glue --------------------------------- #

def sinusoidal_pe(seq_len, d_model):
    position = jnp.arange(seq_len, dtype=jnp.float32)[:, None]
    div_term = jnp.exp(jnp.arange(0, d_model, 2, dtype=jnp.float32)
                       * (-(math.log(10000.0) / d_model)))
    pe = jnp.zeros((seq_len, d_model), jnp.float32)
    pe = pe.at[:, 0::2].set(jnp.sin(position * div_term))
    pe = pe.at[:, 1::2].set(jnp.cos(position * div_term))
    return pe


def transformer_forward(params, x_enc, x_mark_enc, *, num_class):
    """Matches Transformer.forward(x_enc, x_mark_enc) in eval mode."""
    B, L, C = x_enc.shape
    E = params['wqkv'].shape[0]
    H = params['wo'].shape[1]
    NP = params['proj_b'].shape[-1]

    mask = x_mark_enc.astype(jnp.float32)[:, :, None]      # (B, L, 1); broadcast in-kernel

    weight_names = ['token_w', 'pos_emb', 'wqkv', 'bqkv', 'wo', 'bo',
                    'n1g', 'n1b', 'w1', 'b1', 'w2', 'b2', 'n2g', 'n2b',
                    'norm_g', 'norm_b', 'proj_w', 'proj_b']
    weights = [params[n] for n in weight_names]

    def fullspec(arr):
        return pl.BlockSpec(arr.shape, lambda b, _s=arr.shape: (0,) * len(_s))

    out = pl.pallas_call(
        partial(_transformer_kernel, n_heads=H, e_layers=E, seq_len=L),
        out_shape=jax.ShapeDtypeStruct((B, 1, NP), jnp.float32),
        grid=(B,),
        in_specs=[pl.BlockSpec((1, L, C), lambda b: (b, 0, 0)),
                  pl.BlockSpec((1, L, 1), lambda b: (b, 0, 0))]
                 + [fullspec(w) for w in weights],
        out_specs=pl.BlockSpec((1, 1, NP), lambda b: (b, 0, 0)),
        compiler_params=pltpu.CompilerParams(dimension_semantics=("parallel",)),
    )(x_enc, mask, *weights)

    return out[:, 0, :num_class]                           # drop lane padding


# --------------------------------- init / driver ------------------------------- #

def init_params(key, cfg):
    D, C, H = cfg['d_model'], cfg['enc_in'], cfg['n_heads']
    dff, L, ncls, EL = cfg['d_ff'], cfg['seq_len'], cfg['num_class'], cfg['e_layers']
    dk = D // H
    NP = ((ncls + 127) // 128) * 128                       # lane-dense classifier width
    scale = 1.0 / math.sqrt(dk)                            # FullAttention: 1/sqrt(d_head)

    def nrm(k, shape, s=0.05):
        return s * jax.random.normal(k, shape, jnp.float32)

    keys = jax.random.split(key, 3 + EL)

    # TokenEmbedding circular conv weight, stored as (3, C, D) for the in-kernel 3-matmul form.
    token_w = nrm(keys[0], (3, C, D))

    wqkv, bqkv, wo, bo = [], [], [], []
    n1g, n1b, w1, b1, w2, b2, n2g, n2b = [], [], [], [], [], [], [], []
    for l in range(EL):
        lk = jax.random.split(keys[3 + l], 12)
        wq, wk, wv = nrm(lk[0], (D, D)), nrm(lk[1], (D, D)), nrm(lk[2], (D, D))
        bq, bk, bv = nrm(lk[3], (D,)), nrm(lk[4], (D,)), nrm(lk[5], (D,))
        # fold 1/sqrt(dk) into the Q projection (weights + bias)
        wqkv.append(jnp.concatenate([wq * scale, wk, wv], axis=1))          # (D, 3D)
        bqkv.append(jnp.concatenate([bq * scale, bk, bv]).reshape(1, 3 * D))
        wo.append(nrm(lk[6], (D, D)).reshape(H, dk, D))                     # pre-split per head
        bo.append(nrm(lk[7], (D,)).reshape(1, D))
        w1.append(nrm(lk[8], (D, dff)))
        b1.append(nrm(lk[9], (dff,)).reshape(1, dff))
        w2.append(nrm(lk[10], (dff, D)))
        b2.append(nrm(lk[11], (D,)).reshape(1, D))
        n1g.append(jnp.ones((1, D), jnp.float32)); n1b.append(jnp.zeros((1, D), jnp.float32))
        n2g.append(jnp.ones((1, D), jnp.float32)); n2b.append(jnp.zeros((1, D), jnp.float32))

    # classifier: (L*D, ncls) zero-padded to 128 output lanes (unmasked stores)
    proj_w = jnp.zeros((L * D, NP), jnp.float32).at[:, :ncls].set(nrm(keys[1], (L * D, ncls)))
    proj_b = jnp.zeros((1, NP), jnp.float32).at[0, :ncls].set(nrm(keys[2], (ncls,)))

    st = lambda xs, dt=jnp.float32: jnp.stack(xs).astype(dt)
    return dict(
        token_w=token_w.astype(jnp.bfloat16),
        pos_emb=sinusoidal_pe(L, D),
        wqkv=st(wqkv, jnp.bfloat16), bqkv=st(bqkv),
        wo=st(wo, jnp.bfloat16), bo=st(bo),
        n1g=st(n1g), n1b=st(n1b),
        w1=st(w1, jnp.bfloat16), b1=st(b1),
        w2=st(w2, jnp.bfloat16), b2=st(b2),
        n2g=st(n2g), n2b=st(n2b),
        norm_g=jnp.ones((1, D), jnp.float32), norm_b=jnp.zeros((1, D), jnp.float32),
        proj_w=proj_w.astype(jnp.bfloat16), proj_b=proj_b,
    )


if __name__ == "__main__":
    cfg = dict(seq_len=16, pred_len=0, e_layers=2, output_attention=False, enc_in=4,
               d_model=32, embed='fixed', freq='h', num_class=3, factor=1, n_heads=4,
               d_ff=64, activation='gelu', dropout=0.1)

    root = jax.random.PRNGKey(0)
    kp, kx = jax.random.split(root)
    params = init_params(kp, cfg)

    B = 2
    x_enc = jax.random.normal(kx, (B, cfg['seq_len'], cfg['enc_in']), jnp.float32)
    x_mark_enc = jnp.ones((B, cfg['seq_len']), jnp.float32)
    x_mark_enc = x_mark_enc.at[1, -2:].set(0.0)            # padding mask for 2nd example

    fwd = jax.jit(partial(transformer_forward, num_class=cfg['num_class']))
    out = fwd(params, x_enc, x_mark_enc)
    jax.block_until_ready(out)

    assert out.shape == (B, cfg['num_class'])
    assert bool(jnp.all(jnp.isfinite(out))) and bool(jnp.all((out >= 0) & (out <= 1)))
    print("KERNEL_OK")
</pallas_src>

<mosaic_0001>
module attributes {stable_mosaic.version = 11 : i64} {
  func.func @_transformer_kernel(%arg0: i32, %arg1: memref<1x16x4xf32, #tpu.memory_space<vmem>>, %arg2: memref<1x16x1xf32, #tpu.memory_space<vmem>>, %arg3: memref<3x4x32xbf16, #tpu.memory_space<vmem>>, %arg4: memref<16x32xf32, #tpu.memory_space<vmem>>, %arg5: memref<2x32x96xbf16, #tpu.memory_space<vmem>>, %arg6: memref<2x1x96xf32, #tpu.memory_space<vmem>>, %arg7: memref<2x4x8x32xbf16, #tpu.memory_space<vmem>>, %arg8: memref<2x1x32xf32, #tpu.memory_space<vmem>>, %arg9: memref<2x1x32xf32, #tpu.memory_space<vmem>>, %arg10: memref<2x1x32xf32, #tpu.memory_space<vmem>>, %arg11: memref<2x32x64xbf16, #tpu.memory_space<vmem>>, %arg12: memref<2x1x64xf32, #tpu.memory_space<vmem>>, %arg13: memref<2x64x32xbf16, #tpu.memory_space<vmem>>, %arg14: memref<2x1x32xf32, #tpu.memory_space<vmem>>, %arg15: memref<2x1x32xf32, #tpu.memory_space<vmem>>, %arg16: memref<2x1x32xf32, #tpu.memory_space<vmem>>, %arg17: memref<1x32xf32, #tpu.memory_space<vmem>>, %arg18: memref<1x32xf32, #tpu.memory_space<vmem>>, %arg19: memref<512x128xbf16, #tpu.memory_space<vmem>>, %arg20: memref<1x128xf32, #tpu.memory_space<vmem>>, %arg21: memref<1x1x128xf32, #tpu.memory_space<vmem>>) attributes {dimension_semantics = [#tpu.dimension_semantics<parallel>], iteration_bounds = array<i64: 2>, scalar_prefetch = 0 : i64, scratch_operands = 0 : i64, tpu.core_type = #tpu.core_type<tc>, window_params = [{transform_indices = @transform_0, window_bounds = array<i64: 1, 16, 4>}, {transform_indices = @transform_1, window_bounds = array<i64: 1, 16, 1>}, {pipeline_mode = #tpu.pipeline_mode<synchronous>, transform_indices = @transform_2, window_bounds = array<i64: 3, 4, 32>}, {pipeline_mode = #tpu.pipeline_mode<synchronous>, transform_indices = @transform_3, window_bounds = array<i64: 16, 32>}, {pipeline_mode = #tpu.pipeline_mode<synchronous>, transform_indices = @transform_4, window_bounds = array<i64: 2, 32, 96>}, {pipeline_mode = #tpu.pipeline_mode<synchronous>, transform_indices = @transform_5, window_bounds = array<i64: 2, 1, 96>}, {pipeline_mode = #tpu.pipeline_mode<synchronous>, transform_indices = @transform_6, window_bounds = array<i64: 2, 4, 8, 32>}, {pipeline_mode = #tpu.pipeline_mode<synchronous>, transform_indices = @transform_7, window_bounds = array<i64: 2, 1, 32>}, {pipeline_mode = #tpu.pipeline_mode<synchronous>, transform_indices = @transform_8, window_bounds = array<i64: 2, 1, 32>}, {pipeline_mode = #tpu.pipeline_mode<synchronous>, transform_indices = @transform_9, window_bounds = array<i64: 2, 1, 32>}, {pipeline_mode = #tpu.pipeline_mode<synchronous>, transform_indices = @transform_10, window_bounds = array<i64: 2, 32, 64>}, {pipeline_mode = #tpu.pipeline_mode<synchronous>, transform_indices = @transform_11, window_bounds = array<i64: 2, 1, 64>}, {pipeline_mode = #tpu.pipeline_mode<synchronous>, transform_indices = @transform_12, window_bounds = array<i64: 2, 64, 32>}, {pipeline_mode = #tpu.pipeline_mode<synchronous>, transform_indices = @transform_13, window_bounds = array<i64: 2, 1, 32>}, {pipeline_mode = #tpu.pipeline_mode<synchronous>, transform_indices = @transform_14, window_bounds = array<i64: 2, 1, 32>}, {pipeline_mode = #tpu.pipeline_mode<synchronous>, transform_indices = @transform_15, window_bounds = array<i64: 2, 1, 32>}, {pipeline_mode = #tpu.pipeline_mode<synchronous>, transform_indices = @transform_16, window_bounds = array<i64: 1, 32>}, {pipeline_mode = #tpu.pipeline_mode<synchronous>, transform_indices = @transform_17, window_bounds = array<i64: 1, 32>}, {pipeline_mode = #tpu.pipeline_mode<synchronous>, transform_indices = @transform_18, window_bounds = array<i64: 512, 128>}, {pipeline_mode = #tpu.pipeline_mode<synchronous>, transform_indices = @transform_19, window_bounds = array<i64: 1, 128>}, {transform_indices = @transform_20, window_bounds = array<i64: 1, 1, 128>}]} {
    %c0 = arith.constant 0 : index
    %c0_0 = arith.constant 0 : index
    %c0_1 = arith.constant 0 : index
    %0 = vector.load %arg1[%c0, %c0_0, %c0_1] : memref<1x16x4xf32, #tpu.memory_space<vmem>>, vector<1x16x4xf32>
    %1 = vector.shape_cast %0 : vector<1x16x4xf32> to vector<16x4xf32>
    %c1_i32 = arith.constant 1 : i32
    %2 = tpu.dynamic_rotate %1 by %c1_i32 dim 0 : vector<16x4xf32>, i32 -> vector<16x4xf32>
    %c15_i32 = arith.constant 15 : i32
    %3 = tpu.dynamic_rotate %1 by %c15_i32 dim 0 : vector<16x4xf32>, i32 -> vector<16x4xf32>
    %4 = arith.truncf %2 : vector<16x4xf32> to vector<16x4xbf16>
    %c0_2 = arith.constant 0 : index
    %c0_3 = arith.constant 0 : index
    %c0_4 = arith.constant 0 : index
    %5 = vector.load %arg3[%c0_2, %c0_3, %c0_4] : memref<3x4x32xbf16, #tpu.memory_space<vmem>>, vector<1x4x32xbf16>
    %6 = vector.shape_cast %5 : vector<1x4x32xbf16> to vector<4x32xbf16>
    %cst = arith.constant dense<0.000000e+00> : vector<16x32xf32>
    %7 = tpu.matmul %4, %6, %cst {dimension_numbers = #tpu.dot_dimension_numbers<[1], [0], [0], [1], [0, 0, 1, 1], [], []>} : vector<16x4xbf16>, vector<4x32xbf16>, vector<16x32xf32> -> vector<16x32xf32>
    %8 = arith.truncf %1 : vector<16x4xf32> to vector<16x4xbf16>
    %c1 = arith.constant 1 : index
    %c0_5 = arith.constant 0 : index
    %c0_6 = arith.constant 0 : index
    %9 = vector.load %arg3[%c1, %c0_5, %c0_6] : memref<3x4x32xbf16, #tpu.memory_space<vmem>>, vector<1x4x32xbf16>
    %10 = vector.shape_cast %9 : vector<1x4x32xbf16> to vector<4x32xbf16>
    %cst_7 = arith.constant dense<0.000000e+00> : vector<16x32xf32>
    %11 = tpu.matmul %8, %10, %cst_7 {dimension_numbers = #tpu.dot_dimension_numbers<[1], [0], [0], [1], [0, 0, 1, 1], [], []>} : vector<16x4xbf16>, vector<4x32xbf16>, vector<16x32xf32> -> vector<16x32xf32>
    %12 = arith.addf %7, %11 : vector<16x32xf32>
    %13 = arith.truncf %3 : vector<16x4xf32> to vector<16x4xbf16>
    %c2 = arith.constant 2 : index
    %c0_8 = arith.constant 0 : index
    %c0_9 = arith.constant 0 : index
    %14 = vector.load %arg3[%c2, %c0_8, %c0_9] : memref<3x4x32xbf16, #tpu.memory_space<vmem>>, vector<1x4x32xbf16>
    %15 = vector.shape_cast %14 : vector<1x4x32xbf16> to vector<4x32xbf16>
    %cst_10 = arith.constant dense<0.000000e+00> : vector<16x32xf32>
    %16 = tpu.matmul %13, %15, %cst_10 {dimension_numbers = #tpu.dot_dimension_numbers<[1], [0], [0], [1], [0, 0, 1, 1], [], []>} : vector<16x4xbf16>, vector<4x32xbf16>, vector<16x32xf32> -> vector<16x32xf32>
    %17 = arith.addf %12, %16 : vector<16x32xf32>
    %c0_11 = arith.constant 0 : index
    %c0_12 = arith.constant 0 : index
    %18 = vector.load %arg4[%c0_11, %c0_12] : memref<16x32xf32, #tpu.memory_space<vmem>>, vector<16x32xf32>
    %19 = arith.addf %17, %18 : vector<16x32xf32>
    %20 = arith.truncf %19 : vector<16x32xf32> to vector<16x32xbf16>
    %c0_13 = arith.constant 0 : index
    %c0_14 = arith.constant 0 : index
    %c0_15 = arith.constant 0 : index
    %21 = vector.load %arg5[%c0_13, %c0_14, %c0_15] : memref<2x32x96xbf16, #tpu.memory_space<vmem>>, vector<1x32x96xbf16>
    %22 = vector.shape_cast %21 : vector<1x32x96xbf16> to vector<32x96xbf16>
    %cst_16 = arith.constant dense<0.000000e+00> : vector<16x96xf32>
    %23 = tpu.matmul %20, %22, %cst_16 {dimension_numbers = #tpu.dot_dimension_numbers<[1], [0], [0], [1], [0, 0, 1, 1], [], []>} : vector<16x32xbf16>, vector<32x96xbf16>, vector<16x96xf32> -> vector<16x96xf32>
    %c0_17 = arith.constant 0 : index
    %c0_18 = arith.constant 0 : index
    %c0_19 = arith.constant 0 : index
    %24 = vector.load %arg6[%c0_17, %c0_18, %c0_19] : memref<2x1x96xf32, #tpu.memory_space<vmem>>, vector<1x1x96xf32>
    %25 = vector.shape_cast %24 : vector<1x1x96xf32> to vector<1x96xf32>
    %26 = vector.broadcast %25 : vector<1x96xf32> to vector<16x96xf32>
    %27 = arith.addf %23, %26 : vector<16x96xf32>
    %cst_20 = arith.constant 0.000000e+00 : f32
    %28 = vector.broadcast %cst_20 : f32 to vector<16x32xf32>
    %29 = vector.extract_strided_slice %27 {offsets = [0, 0], sizes = [16, 8], strides = [1, 1]} : vector<16x96xf32> to vector<16x8xf32>
    %30 = vector.extract_strided_slice %27 {offsets = [0, 32], sizes = [16, 8], strides = [1, 1]} : vector<16x96xf32> to vector<16x8xf32>
    %31 = vector.extract_strided_slice %27 {offsets = [0, 64], sizes = [16, 8], strides = [1, 1]} : vector<16x96xf32> to vector<16x8xf32>
    %cst_21 = arith.constant dense<0.000000e+00> : vector<16x16xf32>
    %32 = tpu.matmul %29, %30, %cst_21 {dimension_numbers = #tpu.dot_dimension_numbers<[1], [1], [0], [0], [0, 0, 1, 0], [], []>} : vector<16x8xf32>, vector<16x8xf32>, vector<16x16xf32> -> vector<16x16xf32>
    %cst_22 = arith.constant dense<0xFF800000> : vector<16xf32>
    %33 = vector.multi_reduction <maximumf>, %32, %cst_22 [1] : vector<16x16xf32> to vector<16xf32>
    %34 = vector.shape_cast %33 : vector<16xf32> to vector<16x1xf32>
    %35 = vector.broadcast %34 : vector<16x1xf32> to vector<16x16xf32>
    %36 = arith.subf %32, %35 : vector<16x16xf32>
    %37 = math.exp %36 : vector<16x16xf32>
    %cst_23 = arith.constant dense<0.000000e+00> : vector<16xf32>
    %38 = vector.multi_reduction <add>, %37, %cst_23 [1] : vector<16x16xf32> to vector<16xf32>
    %39 = vector.shape_cast %38 : vector<16xf32> to vector<16x1xf32>
    %40 = tpu.reciprocal %39 {approx = true} : vector<16x1xf32> -> vector<16x1xf32>
    %41 = vector.broadcast %40 : vector<16x1xf32> to vector<16x16xf32>
    %42 = arith.mulf %37, %41 : vector<16x16xf32>
    %cst_24 = arith.constant dense<0.000000e+00> : vector<16x8xf32>
    %43 = tpu.matmul %42, %31, %cst_24 {dimension_numbers = #tpu.dot_dimension_numbers<[1], [0], [0], [1], [0, 0, 1, 1], [], []>} : vector<16x16xf32>, vector<16x8xf32>, vector<16x8xf32> -> vector<16x8xf32>
    %44 = arith.truncf %43 : vector<16x8xf32> to vector<16x8xbf16>
    %c0_25 = arith.constant 0 : index
    %c0_26 = arith.constant 0 : index
    %c0_27 = arith.constant 0 : index
    %c0_28 = arith.constant 0 : index
    %45 = vector.load %arg7[%c0_25, %c0_26, %c0_27, %c0_28] : memref<2x4x8x32xbf16, #tpu.memory_space<vmem>>, vector<1x1x8x32xbf16>
    %46 = vector.shape_cast %45 : vector<1x1x8x32xbf16> to vector<8x32xbf16>
    %cst_29 = arith.constant dense<0.000000e+00> : vector<16x32xf32>
    %47 = tpu.matmul %44, %46, %cst_29 {dimension_numbers = #tpu.dot_dimension_numbers<[1], [0], [0], [1], [0, 0, 1, 1], [], []>} : vector<16x8xbf16>, vector<8x32xbf16>, vector<16x32xf32> -> vector<16x32xf32>
    %48 = arith.addf %28, %47 : vector<16x32xf32>
    %49 = vector.extract_strided_slice %27 {offsets = [0, 8], sizes = [16, 8], strides = [1, 1]} : vector<16x96xf32> to vector<16x8xf32>
    %50 = vector.extract_strided_slice %27 {offsets = [0, 40], sizes = [16, 8], strides = [1, 1]} : vector<16x96xf32> to vector<16x8xf32>
    %51 = vector.extract_strided_slice %27 {offsets = [0, 72], sizes = [16, 8], strides = [1, 1]} : vector<16x96xf32> to vector<16x8xf32>
    %cst_30 = arith.constant dense<0.000000e+00> : vector<16x16xf32>
    %52 = tpu.matmul %49, %50, %cst_30 {dimension_numbers = #tpu.dot_dimension_numbers<[1], [1], [0], [0], [0, 0, 1, 0], [], []>} : vector<16x8xf32>, vector<16x8xf32>, vector<16x16xf32> -> vector<16x16xf32>
    %cst_31 = arith.constant dense<0xFF800000> : vector<16xf32>
    %53 = vector.multi_reduction <maximumf>, %52, %cst_31 [1] : vector<16x16xf32> to vector<16xf32>
    %54 = vector.shape_cast %53 : vector<16xf32> to vector<16x1xf32>
    %55 = vector.broadcast %54 : vector<16x1xf32> to vector<16x16xf32>
    %56 = arith.subf %52, %55 : vector<16x16xf32>
    %57 = math.exp %56 : vector<16x16xf32>
    %cst_32 = arith.constant dense<0.000000e+00> : vector<16xf32>
    %58 = vector.multi_reduction <add>, %57, %cst_32 [1] : vector<16x16xf32> to vector<16xf32>
    %59 = vector.shape_cast %58 : vector<16xf32> to vector<16x1xf32>
    %60 = tpu.reciprocal %59 {approx = true} : vector<16x1xf32> -> vector<16x1xf32>
    %61 = vector.broadcast %60 : vector<16x1xf32> to vector<16x16xf32>
    %62 = arith.mulf %57, %61 : vector<16x16xf32>
    %cst_33 = arith.constant dense<0.000000e+00> : vector<16x8xf32>
    %63 = tpu.matmul %62, %51, %cst_33 {dimension_numbers = #tpu.dot_dimension_numbers<[1], [0], [0], [1], [0, 0, 1, 1], [], []>} : vector<16x16xf32>, vector<16x8xf32>, vector<16x8xf32> -> vector<16x8xf32>
    %64 = arith.truncf %63 : vector<16x8xf32> to vector<16x8xbf16>
    %c0_34 = arith.constant 0 : index
    %c1_35 = arith.constant 1 : index
    %c0_36 = arith.constant 0 : index
    %c0_37 = arith.constant 0 : index
    %65 = vector.load %arg7[%c0_34, %c1_35, %c0_36, %c0_37] : memref<2x4x8x32xbf16, #tpu.memory_space<vmem>>, vector<1x1x8x32xbf16>
    %66 = vector.shape_cast %65 : vector<1x1x8x32xbf16> to vector<8x32xbf16>
    %cst_38 = arith.constant dense<0.000000e+00> : vector<16x32xf32>
    %67 = tpu.matmul %64, %66, %cst_38 {dimension_numbers = #tpu.dot_dimension_numbers<[1], [0], [0], [1], [0, 0, 1, 1], [], []>} : vector<16x8xbf16>, vector<8x32xbf16>, vector<16x32xf32> -> vector<16x32xf32>
    %68 = arith.addf %48, %67 : vector<16x32xf32>
    %69 = vector.extract_strided_slice %27 {offsets = [0, 16], sizes = [16, 8], strides = [1, 1]} : vector<16x96xf32> to vector<16x8xf32>
    %70 = vector.extract_strided_slice %27 {offsets = [0, 48], sizes = [16, 8], strides = [1, 1]} : vector<16x96xf32> to vector<16x8xf32>
    %71 = vector.extract_strided_slice %27 {offsets = [0, 80], sizes = [16, 8], strides = [1, 1]} : vector<16x96xf32> to vector<16x8xf32>
    %cst_39 = arith.constant dense<0.000000e+00> : vector<16x16xf32>
    %72 = tpu.matmul %69, %70, %cst_39 {dimension_numbers = #tpu.dot_dimension_numbers<[1], [1], [0], [0], [0, 0, 1, 0], [], []>} : vector<16x8xf32>, vector<16x8xf32>, vector<16x16xf32> -> vector<16x16xf32>
    %cst_40 = arith.constant dense<0xFF800000> : vector<16xf32>
    %73 = vector.multi_reduction <maximumf>, %72, %cst_40 [1] : vector<16x16xf32> to vector<16xf32>
    %74 = vector.shape_cast %73 : vector<16xf32> to vector<16x1xf32>
    %75 = vector.broadcast %74 : vector<16x1xf32> to vector<16x16xf32>
    %76 = arith.subf %72, %75 : vector<16x16xf32>
    %77 = math.exp %76 : vector<16x16xf32>
    %cst_41 = arith.constant dense<0.000000e+00> : vector<16xf32>
    %78 = vector.multi_reduction <add>, %77, %cst_41 [1] : vector<16x16xf32> to vector<16xf32>
    %79 = vector.shape_cast %78 : vector<16xf32> to vector<16x1xf32>
    %80 = tpu.reciprocal %79 {approx = true} : vector<16x1xf32> -> vector<16x1xf32>
    %81 = vector.broadcast %80 : vector<16x1xf32> to vector<16x16xf32>
    %82 = arith.mulf %77, %81 : vector<16x16xf32>
    %cst_42 = arith.constant dense<0.000000e+00> : vector<16x8xf32>
    %83 = tpu.matmul %82, %71, %cst_42 {dimension_numbers = #tpu.dot_dimension_numbers<[1], [0], [0], [1], [0, 0, 1, 1], [], []>} : vector<16x16xf32>, vector<16x8xf32>, vector<16x8xf32> -> vector<16x8xf32>
    %84 = arith.truncf %83 : vector<16x8xf32> to vector<16x8xbf16>
    %c0_43 = arith.constant 0 : index
    %c2_44 = arith.constant 2 : index
    %c0_45 = arith.constant 0 : index
    %c0_46 = arith.constant 0 : index
    %85 = vector.load %arg7[%c0_43, %c2_44, %c0_45, %c0_46] : memref<2x4x8x32xbf16, #tpu.memory_space<vmem>>, vector<1x1x8x32xbf16>
    %86 = vector.shape_cast %85 : vector<1x1x8x32xbf16> to vector<8x32xbf16>
    %cst_47 = arith.constant dense<0.000000e+00> : vector<16x32xf32>
    %87 = tpu.matmul %84, %86, %cst_47 {dimension_numbers = #tpu.dot_dimension_numbers<[1], [0], [0], [1], [0, 0, 1, 1], [], []>} : vector<16x8xbf16>, vector<8x32xbf16>, vector<16x32xf32> -> vector<16x32xf32>
    %88 = arith.addf %68, %87 : vector<16x32xf32>
    %89 = vector.extract_strided_slice %27 {offsets = [0, 24], sizes = [16, 8], strides = [1, 1]} : vector<16x96xf32> to vector<16x8xf32>
    %90 = vector.extract_strided_slice %27 {offsets = [0, 56], sizes = [16, 8], strides = [1, 1]} : vector<16x96xf32> to vector<16x8xf32>
    %91 = vector.extract_strided_slice %27 {offsets = [0, 88], sizes = [16, 8], strides = [1, 1]} : vector<16x96xf32> to vector<16x8xf32>
    %cst_48 = arith.constant dense<0.000000e+00> : vector<16x16xf32>
    %92 = tpu.matmul %89, %90, %cst_48 {dimension_numbers = #tpu.dot_dimension_numbers<[1], [1], [0], [0], [0, 0, 1, 0], [], []>} : vector<16x8xf32>, vector<16x8xf32>, vector<16x16xf32> -> vector<16x16xf32>
    %cst_49 = arith.constant dense<0xFF800000> : vector<16xf32>
    %93 = vector.multi_reduction <maximumf>, %92, %cst_49 [1] : vector<16x16xf32> to vector<16xf32>
    %94 = vector.shape_cast %93 : vector<16xf32> to vector<16x1xf32>
    %95 = vector.broadcast %94 : vector<16x1xf32> to vector<16x16xf32>
    %96 = arith.subf %92, %95 : vector<16x16xf32>
    %97 = math.exp %96 : vector<16x16xf32>
    %cst_50 = arith.constant dense<0.000000e+00> : vector<16xf32>
    %98 = vector.multi_reduction <add>, %97, %cst_50 [1] : vector<16x16xf32> to vector<16xf32>
    %99 = vector.shape_cast %98 : vector<16xf32> to vector<16x1xf32>
    %100 = tpu.reciprocal %99 {approx = true} : vector<16x1xf32> -> vector<16x1xf32>
    %101 = vector.broadcast %100 : vector<16x1xf32> to vector<16x16xf32>
    %102 = arith.mulf %97, %101 : vector<16x16xf32>
    %cst_51 = arith.constant dense<0.000000e+00> : vector<16x8xf32>
    %103 = tpu.matmul %102, %91, %cst_51 {dimension_numbers = #tpu.dot_dimension_numbers<[1], [0], [0], [1], [0, 0, 1, 1], [], []>} : vector<16x16xf32>, vector<16x8xf32>, vector<16x8xf32> -> vector<16x8xf32>
    %104 = arith.truncf %103 : vector<16x8xf32> to vector<16x8xbf16>
    %c0_52 = arith.constant 0 : index
    %c3 = arith.constant 3 : index
    %c0_53 = arith.constant 0 : index
    %c0_54 = arith.constant 0 : index
    %105 = vector.load %arg7[%c0_52, %c3, %c0_53, %c0_54] : memref<2x4x8x32xbf16, #tpu.memory_space<vmem>>, vector<1x1x8x32xbf16>
    %106 = vector.shape_cast %105 : vector<1x1x8x32xbf16> to vector<8x32xbf16>
    %cst_55 = arith.constant dense<0.000000e+00> : vector<16x32xf32>
    %107 = tpu.matmul %104, %106, %cst_55 {dimension_numbers = #tpu.dot_dimension_numbers<[1], [0], [0], [1], [0, 0, 1, 1], [], []>} : vector<16x8xbf16>, vector<8x32xbf16>, vector<16x32xf32> -> vector<16x32xf32>
    %108 = arith.addf %88, %107 : vector<16x32xf32>
    %c0_56 = arith.constant 0 : index
    %c0_57 = arith.constant 0 : index
    %c0_58 = arith.constant 0 : index
    %109 = vector.load %arg8[%c0_56, %c0_57, %c0_58] : memref<2x1x32xf32, #tpu.memory_space<vmem>>, vector<1x1x32xf32>
    %110 = vector.shape_cast %109 : vector<1x1x32xf32> to vector<1x32xf32>
    %111 = vector.broadcast %110 : vector<1x32xf32> to vector<16x32xf32>
    %112 = arith.addf %108, %111 : vector<16x32xf32>
    %113 = arith.addf %19, %112 : vector<16x32xf32>
    %c0_59 = arith.constant 0 : index
    %c0_60 = arith.constant 0 : index
    %c0_61 = arith.constant 0 : index
    %114 = vector.load %arg9[%c0_59, %c0_60, %c0_61] : memref<2x1x32xf32, #tpu.memory_space<vmem>>, vector<1x1x32xf32>
    %115 = vector.shape_cast %114 : vector<1x1x32xf32> to vector<1x32xf32>
    %c0_62 = arith.constant 0 : index
    %c0_63 = arith.constant 0 : index
    %c0_64 = arith.constant 0 : index
    %116 = vector.load %arg10[%c0_62, %c0_63, %c0_64] : memref<2x1x32xf32, #tpu.memory_space<vmem>>, vector<1x1x32xf32>
    %117 = vector.shape_cast %116 : vector<1x1x32xf32> to vector<1x32xf32>
    %cst_65 = arith.constant dense<0.000000e+00> : vector<16xf32>
    %118 = vector.multi_reduction <add>, %113, %cst_65 [1] : vector<16x32xf32> to vector<16xf32>
    %119 = vector.shape_cast %118 : vector<16xf32> to vector<16x1xf32>
    %cst_66 = arith.constant 3.200000e+01 : f32
    %120 = vector.broadcast %cst_66 : f32 to vector<16x1xf32>
    %121 = arith.divf %119, %120 : vector<16x1xf32>
    %122 = vector.broadcast %121 : vector<16x1xf32> to vector<16x32xf32>
    %123 = arith.subf %113, %122 : vector<16x32xf32>
    %124 = arith.mulf %123, %123 : vector<16x32xf32>
    %cst_67 = arith.constant dense<0.000000e+00> : vector<16xf32>
    %125 = vector.multi_reduction <add>, %124, %cst_67 [1] : vector<16x32xf32> to vector<16xf32>
    %126 = vector.shape_cast %125 : vector<16xf32> to vector<16x1xf32>
    %cst_68 = arith.constant 3.200000e+01 : f32
    %127 = vector.broadcast %cst_68 : f32 to vector<16x1xf32>
    %128 = arith.divf %126, %127 : vector<16x1xf32>
    %cst_69 = arith.constant 9.99999974E-6 : f32
    %129 = vector.broadcast %cst_69 : f32 to vector<16x1xf32>
    %130 = arith.addf %128, %129 : vector<16x1xf32>
    %131 = math.rsqrt %130 : vector<16x1xf32>
    %132 = vector.broadcast %131 : vector<16x1xf32> to vector<16x32xf32>
    %133 = arith.mulf %123, %132 : vector<16x32xf32>
    %134 = vector.broadcast %115 : vector<1x32xf32> to vector<16x32xf32>
    %135 = arith.mulf %133, %134 : vector<16x32xf32>
    %136 = vector.broadcast %117 : vector<1x32xf32> to vector<16x32xf32>
    %137 = arith.addf %135, %136 : vector<16x32xf32>
    %138 = arith.truncf %137 : vector<16x32xf32> to vector<16x32xbf16>
    %c0_70 = arith.constant 0 : index
    %c0_71 = arith.constant 0 : index
    %c0_72 = arith.constant 0 : index
    %139 = vector.load %arg11[%c0_70, %c0_71, %c0_72] : memref<2x32x64xbf16, #tpu.memory_space<vmem>>, vector<1x32x64xbf16>
    %140 = vector.shape_cast %139 : vector<1x32x64xbf16> to vector<32x64xbf16>
    %cst_73 = arith.constant dense<0.000000e+00> : vector<16x64xf32>
    %141 = tpu.matmul %138, %140, %cst_73 {dimension_numbers = #tpu.dot_dimension_numbers<[1], [0], [0], [1], [0, 0, 1, 1], [], []>} : vector<16x32xbf16>, vector<32x64xbf16>, vector<16x64xf32> -> vector<16x64xf32>
    %c0_74 = arith.constant 0 : index
    %c0_75 = arith.constant 0 : index
    %c0_76 = arith.constant 0 : index
    %142 = vector.load %arg12[%c0_74, %c0_75, %c0_76] : memref<2x1x64xf32, #tpu.memory_space<vmem>>, vector<1x1x64xf32>
    %143 = vector.shape_cast %142 : vector<1x1x64xf32> to vector<1x64xf32>
    %144 = vector.broadcast %143 : vector<1x64xf32> to vector<16x64xf32>
    %145 = arith.addf %141, %144 : vector<16x64xf32>
    %cst_77 = arith.constant 5.000000e-01 : f32
    %146 = vector.broadcast %cst_77 : f32 to vector<16x64xf32>
    %147 = arith.mulf %146, %145 : vector<16x64xf32>
    %cst_78 = arith.constant 0.707106769 : f32
    %148 = vector.broadcast %cst_78 : f32 to vector<16x64xf32>
    %149 = arith.mulf %145, %148 : vector<16x64xf32>
    %150 = math.absf %149 : vector<16x64xf32>
    %cst_79 = arith.constant 0.327591091 : f32
    %151 = vector.broadcast %cst_79 : f32 to vector<16x64xf32>
    %152 = arith.mulf %151, %150 : vector<16x64xf32>
    %cst_80 = arith.constant 1.000000e+00 : f32
    %153 = vector.broadcast %cst_80 : f32 to vector<16x64xf32>
    %154 = arith.addf %153, %152 : vector<16x64xf32>
    %cst_81 = arith.constant 1.000000e+00 : f32
    %155 = vector.broadcast %cst_81 : f32 to vector<16x64xf32>
    %156 = arith.divf %155, %154 : vector<16x64xf32>
    %cst_82 = arith.constant 1.06140542 : f32
    %157 = vector.broadcast %cst_82 : f32 to vector<16x64xf32>
    %158 = arith.mulf %157, %156 : vector<16x64xf32>
    %cst_83 = arith.constant -1.45315206 : f32
    %159 = vector.broadcast %cst_83 : f32 to vector<16x64xf32>
    %160 = arith.addf %158, %159 : vector<16x64xf32>
    %161 = arith.mulf %160, %156 : vector<16x64xf32>
    %cst_84 = arith.constant 1.42141378 : f32
    %162 = vector.broadcast %cst_84 : f32 to vector<16x64xf32>
    %163 = arith.addf %161, %162 : vector<16x64xf32>
    %164 = arith.mulf %163, %156 : vector<16x64xf32>
    %cst_85 = arith.constant -0.284496725 : f32
    %165 = vector.broadcast %cst_85 : f32 to vector<16x64xf32>
    %166 = arith.addf %164, %165 : vector<16x64xf32>
    %167 = arith.mulf %166, %156 : vector<16x64xf32>
    %cst_86 = arith.constant 0.254829586 : f32
    %168 = vector.broadcast %cst_86 : f32 to vector<16x64xf32>
    %169 = arith.addf %167, %168 : vector<16x64xf32>
    %170 = arith.mulf %169, %156 : vector<16x64xf32>
    %171 = arith.mulf %150, %150 : vector<16x64xf32>
    %cst_87 = arith.constant 0.000000e+00 : f32
    %172 = vector.broadcast %cst_87 : f32 to vector<16x64xf32>
    %173 = arith.subf %172, %171 : vector<16x64xf32>
    %174 = math.exp %173 : vector<16x64xf32>
    %175 = arith.mulf %170, %174 : vector<16x64xf32>
    %cst_88 = arith.constant 1.000000e+00 : f32
    %176 = vector.broadcast %cst_88 : f32 to vector<16x64xf32>
    %177 = arith.subf %176, %175 : vector<16x64xf32>
    %cst_89 = arith.constant 0.000000e+00 : f32
    %178 = vector.broadcast %cst_89 : f32 to vector<16x64xf32>
    %179 = arith.cmpf oge, %149, %178 : vector<16x64xf32>
    %cst_90 = arith.constant 0.000000e+00 : f32
    %180 = vector.broadcast %cst_90 : f32 to vector<16x64xf32>
    %181 = arith.subf %180, %177 : vector<16x64xf32>
    %182 = arith.select %179, %177, %181 : vector<16x64xi1>, vector<16x64xf32>
    %cst_91 = arith.constant 1.000000e+00 : f32
    %183 = vector.broadcast %cst_91 : f32 to vector<16x64xf32>
    %184 = arith.addf %183, %182 : vector<16x64xf32>
    %185 = arith.mulf %147, %184 : vector<16x64xf32>
    %186 = arith.truncf %185 : vector<16x64xf32> to vector<16x64xbf16>
    %c0_92 = arith.constant 0 : index
    %c0_93 = arith.constant 0 : index
    %c0_94 = arith.constant 0 : index
    %187 = vector.load %arg13[%c0_92, %c0_93, %c0_94] : memref<2x64x32xbf16, #tpu.memory_space<vmem>>, vector<1x64x32xbf16>
    %188 = vector.shape_cast %187 : vector<1x64x32xbf16> to vector<64x32xbf16>
    %cst_95 = arith.constant dense<0.000000e+00> : vector<16x32xf32>
    %189 = tpu.matmul %186, %188, %cst_95 {dimension_numbers = #tpu.dot_dimension_numbers<[1], [0], [0], [1], [0, 0, 1, 1], [], []>} : vector<16x64xbf16>, vector<64x32xbf16>, vector<16x32xf32> -> vector<16x32xf32>
    %c0_96 = arith.constant 0 : index
    %c0_97 = arith.constant 0 : index
    %c0_98 = arith.constant 0 : index
    %190 = vector.load %arg14[%c0_96, %c0_97, %c0_98] : memref<2x1x32xf32, #tpu.memory_space<vmem>>, vector<1x1x32xf32>
    %191 = vector.shape_cast %190 : vector<1x1x32xf32> to vector<1x32xf32>
    %192 = vector.broadcast %191 : vector<1x32xf32> to vector<16x32xf32>
    %193 = arith.addf %189, %192 : vector<16x32xf32>
    %194 = arith.addf %137, %193 : vector<16x32xf32>
    %c0_99 = arith.constant 0 : index
    %c0_100 = arith.constant 0 : index
    %c0_101 = arith.constant 0 : index
    %195 = vector.load %arg15[%c0_99, %c0_100, %c0_101] : memref<2x1x32xf32, #tpu.memory_space<vmem>>, vector<1x1x32xf32>
    %196 = vector.shape_cast %195 : vector<1x1x32xf32> to vector<1x32xf32>
    %c0_102 = arith.constant 0 : index
    %c0_103 = arith.constant 0 : index
    %c0_104 = arith.constant 0 : index
    %197 = vector.load %arg16[%c0_102, %c0_103, %c0_104] : memref<2x1x32xf32, #tpu.memory_space<vmem>>, vector<1x1x32xf32>
    %198 = vector.shape_cast %197 : vector<1x1x32xf32> to vector<1x32xf32>
    %cst_105 = arith.constant dense<0.000000e+00> : vector<16xf32>
    %199 = vector.multi_reduction <add>, %194, %cst_105 [1] : vector<16x32xf32> to vector<16xf32>
    %200 = vector.shape_cast %199 : vector<16xf32> to vector<16x1xf32>
    %cst_106 = arith.constant 3.200000e+01 : f32
    %201 = vector.broadcast %cst_106 : f32 to vector<16x1xf32>
    %202 = arith.divf %200, %201 : vector<16x1xf32>
    %203 = vector.broadcast %202 : vector<16x1xf32> to vector<16x32xf32>
    %204 = arith.subf %194, %203 : vector<16x32xf32>
    %205 = arith.mulf %204, %204 : vector<16x32xf32>
    %cst_107 = arith.constant dense<0.000000e+00> : vector<16xf32>
    %206 = vector.multi_reduction <add>, %205, %cst_107 [1] : vector<16x32xf32> to vector<16xf32>
    %207 = vector.shape_cast %206 : vector<16xf32> to vector<16x1xf32>
    %cst_108 = arith.constant 3.200000e+01 : f32
    %208 = vector.broadcast %cst_108 : f32 to vector<16x1xf32>
    %209 = arith.divf %207, %208 : vector<16x1xf32>
    %cst_109 = arith.constant 9.99999974E-6 : f32
    %210 = vector.broadcast %cst_109 : f32 to vector<16x1xf32>
    %211 = arith.addf %209, %210 : vector<16x1xf32>
    %212 = math.rsqrt %211 : vector<16x1xf32>
    %213 = vector.broadcast %212 : vector<16x1xf32> to vector<16x32xf32>
    %214 = arith.mulf %204, %213 : vector<16x32xf32>
    %215 = vector.broadcast %196 : vector<1x32xf32> to vector<16x32xf32>
    %216 = arith.mulf %214, %215 : vector<16x32xf32>
    %217 = vector.broadcast %198 : vector<1x32xf32> to vector<16x32xf32>
    %218 = arith.addf %216, %217 : vector<16x32xf32>
    %219 = arith.truncf %218 : vector<16x32xf32> to vector<16x32xbf16>
    %c1_110 = arith.constant 1 : index
    %c0_111 = arith.constant 0 : index
    %c0_112 = arith.constant 0 : index
    %220 = vector.load %arg5[%c1_110, %c0_111, %c0_112] : memref<2x32x96xbf16, #tpu.memory_space<vmem>>, vector<1x32x96xbf16>
    %221 = vector.shape_cast %220 : vector<1x32x96xbf16> to vector<32x96xbf16>
    %cst_113 = arith.constant dense<0.000000e+00> : vector<16x96xf32>
    %222 = tpu.matmul %219, %221, %cst_113 {dimension_numbers = #tpu.dot_dimension_numbers<[1], [0], [0], [1], [0, 0, 1, 1], [], []>} : vector<16x32xbf16>, vector<32x96xbf16>, vector<16x96xf32> -> vector<16x96xf32>
    %c1_114 = arith.constant 1 : index
    %c0_115 = arith.constant 0 : index
    %c0_116 = arith.constant 0 : index
    %223 = vector.load %arg6[%c1_114, %c0_115, %c0_116] : memref<2x1x96xf32, #tpu.memory_space<vmem>>, vector<1x1x96xf32>
    %224 = vector.shape_cast %223 : vector<1x1x96xf32> to vector<1x96xf32>
    %225 = vector.broadcast %224 : vector<1x96xf32> to vector<16x96xf32>
    %226 = arith.addf %222, %225 : vector<16x96xf32>
    %cst_117 = arith.constant 0.000000e+00 : f32
    %227 = vector.broadcast %cst_117 : f32 to vector<16x32xf32>
    %228 = vector.extract_strided_slice %226 {offsets = [0, 0], sizes = [16, 8], strides = [1, 1]} : vector<16x96xf32> to vector<16x8xf32>
    %229 = vector.extract_strided_slice %226 {offsets = [0, 32], sizes = [16, 8], strides = [1, 1]} : vector<16x96xf32> to vector<16x8xf32>
    %230 = vector.extract_strided_slice %226 {offsets = [0, 64], sizes = [16, 8], strides = [1, 1]} : vector<16x96xf32> to vector<16x8xf32>
    %cst_118 = arith.constant dense<0.000000e+00> : vector<16x16xf32>
    %231 = tpu.matmul %228, %229, %cst_118 {dimension_numbers = #tpu.dot_dimension_numbers<[1], [1], [0], [0], [0, 0, 1, 0], [], []>} : vector<16x8xf32>, vector<16x8xf32>, vector<16x16xf32> -> vector<16x16xf32>
    %cst_119 = arith.constant dense<0xFF800000> : vector<16xf32>
    %232 = vector.multi_reduction <maximumf>, %231, %cst_119 [1] : vector<16x16xf32> to vector<16xf32>
    %233 = vector.shape_cast %232 : vector<16xf32> to vector<16x1xf32>
    %234 = vector.broadcast %233 : vector<16x1xf32> to vector<16x16xf32>
    %235 = arith.subf %231, %234 : vector<16x16xf32>
    %236 = math.exp %235 : vector<16x16xf32>
    %cst_120 = arith.constant dense<0.000000e+00> : vector<16xf32>
    %237 = vector.multi_reduction <add>, %236, %cst_120 [1] : vector<16x16xf32> to vector<16xf32>
    %238 = vector.shape_cast %237 : vector<16xf32> to vector<16x1xf32>
    %239 = tpu.reciprocal %238 {approx = true} : vector<16x1xf32> -> vector<16x1xf32>
    %240 = vector.broadcast %239 : vector<16x1xf32> to vector<16x16xf32>
    %241 = arith.mulf %236, %240 : vector<16x16xf32>
    %cst_121 = arith.constant dense<0.000000e+00> : vector<16x8xf32>
    %242 = tpu.matmul %241, %230, %cst_121 {dimension_numbers = #tpu.dot_dimension_numbers<[1], [0], [0], [1], [0, 0, 1, 1], [], []>} : vector<16x16xf32>, vector<16x8xf32>, vector<16x8xf32> -> vector<16x8xf32>
    %243 = arith.truncf %242 : vector<16x8xf32> to vector<16x8xbf16>
    %c1_122 = arith.constant 1 : index
    %c0_123 = arith.constant 0 : index
    %c0_124 = arith.constant 0 : index
    %c0_125 = arith.constant 0 : index
    %244 = vector.load %arg7[%c1_122, %c0_123, %c0_124, %c0_125] : memref<2x4x8x32xbf16, #tpu.memory_space<vmem>>, vector<1x1x8x32xbf16>
    %245 = vector.shape_cast %244 : vector<1x1x8x32xbf16> to vector<8x32xbf16>
    %cst_126 = arith.constant dense<0.000000e+00> : vector<16x32xf32>
    %246 = tpu.matmul %243, %245, %cst_126 {dimension_numbers = #tpu.dot_dimension_numbers<[1], [0], [0], [1], [0, 0, 1, 1], [], []>} : vector<16x8xbf16>, vector<8x32xbf16>, vector<16x32xf32> -> vector<16x32xf32>
    %247 = arith.addf %227, %246 : vector<16x32xf32>
    %248 = vector.extract_strided_slice %226 {offsets = [0, 8], sizes = [16, 8], strides = [1, 1]} : vector<16x96xf32> to vector<16x8xf32>
    %249 = vector.extract_strided_slice %226 {offsets = [0, 40], sizes = [16, 8], strides = [1, 1]} : vector<16x96xf32> to vector<16x8xf32>
    %250 = vector.extract_strided_slice %226 {offsets = [0, 72], sizes = [16, 8], strides = [1, 1]} : vector<16x96xf32> to vector<16x8xf32>
    %cst_127 = arith.constant dense<0.000000e+00> : vector<16x16xf32>
    %251 = tpu.matmul %248, %249, %cst_127 {dimension_numbers = #tpu.dot_dimension_numbers<[1], [1], [0], [0], [0, 0, 1, 0], [], []>} : vector<16x8xf32>, vector<16x8xf32>, vector<16x16xf32> -> vector<16x16xf32>
    %cst_128 = arith.constant dense<0xFF800000> : vector<16xf32>
    %252 = vector.multi_reduction <maximumf>, %251, %cst_128 [1] : vector<16x16xf32> to vector<16xf32>
    %253 = vector.shape_cast %252 : vector<16xf32> to vector<16x1xf32>
    %254 = vector.broadcast %253 : vector<16x1xf32> to vector<16x16xf32>
    %255 = arith.subf %251, %254 : vector<16x16xf32>
    %256 = math.exp %255 : vector<16x16xf32>
    %cst_129 = arith.constant dense<0.000000e+00> : vector<16xf32>
    %257 = vector.multi_reduction <add>, %256, %cst_129 [1] : vector<16x16xf32> to vector<16xf32>
    %258 = vector.shape_cast %257 : vector<16xf32> to vector<16x1xf32>
    %259 = tpu.reciprocal %258 {approx = true} : vector<16x1xf32> -> vector<16x1xf32>
    %260 = vector.broadcast %259 : vector<16x1xf32> to vector<16x16xf32>
    %261 = arith.mulf %256, %260 : vector<16x16xf32>
    %cst_130 = arith.constant dense<0.000000e+00> : vector<16x8xf32>
    %262 = tpu.matmul %261, %250, %cst_130 {dimension_numbers = #tpu.dot_dimension_numbers<[1], [0], [0], [1], [0, 0, 1, 1], [], []>} : vector<16x16xf32>, vector<16x8xf32>, vector<16x8xf32> -> vector<16x8xf32>
    %263 = arith.truncf %262 : vector<16x8xf32> to vector<16x8xbf16>
    %c1_131 = arith.constant 1 : index
    %c1_132 = arith.constant 1 : index
    %c0_133 = arith.constant 0 : index
    %c0_134 = arith.constant 0 : index
    %264 = vector.load %arg7[%c1_131, %c1_132, %c0_133, %c0_134] : memref<2x4x8x32xbf16, #tpu.memory_space<vmem>>, vector<1x1x8x32xbf16>
    %265 = vector.shape_cast %264 : vector<1x1x8x32xbf16> to vector<8x32xbf16>
    %cst_135 = arith.constant dense<0.000000e+00> : vector<16x32xf32>
    %266 = tpu.matmul %263, %265, %cst_135 {dimension_numbers = #tpu.dot_dimension_numbers<[1], [0], [0], [1], [0, 0, 1, 1], [], []>} : vector<16x8xbf16>, vector<8x32xbf16>, vector<16x32xf32> -> vector<16x32xf32>
    %267 = arith.addf %247, %266 : vector<16x32xf32>
    %268 = vector.extract_strided_slice %226 {offsets = [0, 16], sizes = [16, 8], strides = [1, 1]} : vector<16x96xf32> to vector<16x8xf32>
    %269 = vector.extract_strided_slice %226 {offsets = [0, 48], sizes = [16, 8], strides = [1, 1]} : vector<16x96xf32> to vector<16x8xf32>
    %270 = vector.extract_strided_slice %226 {offsets = [0, 80], sizes = [16, 8], strides = [1, 1]} : vector<16x96xf32> to vector<16x8xf32>
    %cst_136 = arith.constant dense<0.000000e+00> : vector<16x16xf32>
    %271 = tpu.matmul %268, %269, %cst_136 {dimension_numbers = #tpu.dot_dimension_numbers<[1], [1], [0], [0], [0, 0, 1, 0], [], []>} : vector<16x8xf32>, vector<16x8xf32>, vector<16x16xf32> -> vector<16x16xf32>
    %cst_137 = arith.constant dense<0xFF800000> : vector<16xf32>
    %272 = vector.multi_reduction <maximumf>, %271, %cst_137 [1] : vector<16x16xf32> to vector<16xf32>
    %273 = vector.shape_cast %272 : vector<16xf32> to vector<16x1xf32>
    %274 = vector.broadcast %273 : vector<16x1xf32> to vector<16x16xf32>
    %275 = arith.subf %271, %274 : vector<16x16xf32>
    %276 = math.exp %275 : vector<16x16xf32>
    %cst_138 = arith.constant dense<0.000000e+00> : vector<16xf32>
    %277 = vector.multi_reduction <add>, %276, %cst_138 [1] : vector<16x16xf32> to vector<16xf32>
    %278 = vector.shape_cast %277 : vector<16xf32> to vector<16x1xf32>
    %279 = tpu.reciprocal %278 {approx = true} : vector<16x1xf32> -> vector<16x1xf32>
    %280 = vector.broadcast %279 : vector<16x1xf32> to vector<16x16xf32>
    %281 = arith.mulf %276, %280 : vector<16x16xf32>
    %cst_139 = arith.constant dense<0.000000e+00> : vector<16x8xf32>
    %282 = tpu.matmul %281, %270, %cst_139 {dimension_numbers = #tpu.dot_dimension_numbers<[1], [0], [0], [1], [0, 0, 1, 1], [], []>} : vector<16x16xf32>, vector<16x8xf32>, vector<16x8xf32> -> vector<16x8xf32>
    %283 = arith.truncf %282 : vector<16x8xf32> to vector<16x8xbf16>
    %c1_140 = arith.constant 1 : index
    %c2_141 = arith.constant 2 : index
    %c0_142 = arith.constant 0 : index
    %c0_143 = arith.constant 0 : index
    %284 = vector.load %arg7[%c1_140, %c2_141, %c0_142, %c0_143] : memref<2x4x8x32xbf16, #tpu.memory_space<vmem>>, vector<1x1x8x32xbf16>
    %285 = vector.shape_cast %284 : vector<1x1x8x32xbf16> to vector<8x32xbf16>
    %cst_144 = arith.constant dense<0.000000e+00> : vector<16x32xf32>
    %286 = tpu.matmul %283, %285, %cst_144 {dimension_numbers = #tpu.dot_dimension_numbers<[1], [0], [0], [1], [0, 0, 1, 1], [], []>} : vector<16x8xbf16>, vector<8x32xbf16>, vector<16x32xf32> -> vector<16x32xf32>
    %287 = arith.addf %267, %286 : vector<16x32xf32>
    %288 = vector.extract_strided_slice %226 {offsets = [0, 24], sizes = [16, 8], strides = [1, 1]} : vector<16x96xf32> to vector<16x8xf32>
    %289 = vector.extract_strided_slice %226 {offsets = [0, 56], sizes = [16, 8], strides = [1, 1]} : vector<16x96xf32> to vector<16x8xf32>
    %290 = vector.extract_strided_slice %226 {offsets = [0, 88], sizes = [16, 8], strides = [1, 1]} : vector<16x96xf32> to vector<16x8xf32>
    %cst_145 = arith.constant dense<0.000000e+00> : vector<16x16xf32>
    %291 = tpu.matmul %288, %289, %cst_145 {dimension_numbers = #tpu.dot_dimension_numbers<[1], [1], [0], [0], [0, 0, 1, 0], [], []>} : vector<16x8xf32>, vector<16x8xf32>, vector<16x16xf32> -> vector<16x16xf32>
    %cst_146 = arith.constant dense<0xFF800000> : vector<16xf32>
    %292 = vector.multi_reduction <maximumf>, %291, %cst_146 [1] : vector<16x16xf32> to vector<16xf32>
    %293 = vector.shape_cast %292 : vector<16xf32> to vector<16x1xf32>
    %294 = vector.broadcast %293 : vector<16x1xf32> to vector<16x16xf32>
    %295 = arith.subf %291, %294 : vector<16x16xf32>
    %296 = math.exp %295 : vector<16x16xf32>
    %cst_147 = arith.constant dense<0.000000e+00> : vector<16xf32>
    %297 = vector.multi_reduction <add>, %296, %cst_147 [1] : vector<16x16xf32> to vector<16xf32>
    %298 = vector.shape_cast %297 : vector<16xf32> to vector<16x1xf32>
    %299 = tpu.reciprocal %298 {approx = true} : vector<16x1xf32> -> vector<16x1xf32>
    %300 = vector.broadcast %299 : vector<16x1xf32> to vector<16x16xf32>
    %301 = arith.mulf %296, %300 : vector<16x16xf32>
    %cst_148 = arith.constant dense<0.000000e+00> : vector<16x8xf32>
    %302 = tpu.matmul %301, %290, %cst_148 {dimension_numbers = #tpu.dot_dimension_numbers<[1], [0], [0], [1], [0, 0, 1, 1], [], []>} : vector<16x16xf32>, vector<16x8xf32>, vector<16x8xf32> -> vector<16x8xf32>
    %303 = arith.truncf %302 : vector<16x8xf32> to vector<16x8xbf16>
    %c1_149 = arith.constant 1 : index
    %c3_150 = arith.constant 3 : index
    %c0_151 = arith.constant 0 : index
    %c0_152 = arith.constant 0 : index
    %304 = vector.load %arg7[%c1_149, %c3_150, %c0_151, %c0_152] : memref<2x4x8x32xbf16, #tpu.memory_space<vmem>>, vector<1x1x8x32xbf16>
    %305 = vector.shape_cast %304 : vector<1x1x8x32xbf16> to vector<8x32xbf16>
    %cst_153 = arith.constant dense<0.000000e+00> : vector<16x32xf32>
    %306 = tpu.matmul %303, %305, %cst_153 {dimension_numbers = #tpu.dot_dimension_numbers<[1], [0], [0], [1], [0, 0, 1, 1], [], []>} : vector<16x8xbf16>, vector<8x32xbf16>, vector<16x32xf32> -> vector<16x32xf32>
    %307 = arith.addf %287, %306 : vector<16x32xf32>
    %c1_154 = arith.constant 1 : index
    %c0_155 = arith.constant 0 : index
    %c0_156 = arith.constant 0 : index
    %308 = vector.load %arg8[%c1_154, %c0_155, %c0_156] : memref<2x1x32xf32, #tpu.memory_space<vmem>>, vector<1x1x32xf32>
    %309 = vector.shape_cast %308 : vector<1x1x32xf32> to vector<1x32xf32>
    %310 = vector.broadcast %309 : vector<1x32xf32> to vector<16x32xf32>
    %311 = arith.addf %307, %310 : vector<16x32xf32>
    %312 = arith.addf %218, %311 : vector<16x32xf32>
    %c1_157 = arith.constant 1 : index
    %c0_158 = arith.constant 0 : index
    %c0_159 = arith.constant 0 : index
    %313 = vector.load %arg9[%c1_157, %c0_158, %c0_159] : memref<2x1x32xf32, #tpu.memory_space<vmem>>, vector<1x1x32xf32>
    %314 = vector.shape_cast %313 : vector<1x1x32xf32> to vector<1x32xf32>
    %c1_160 = arith.constant 1 : index
    %c0_161 = arith.constant 0 : index
    %c0_162 = arith.constant 0 : index
    %315 = vector.load %arg10[%c1_160, %c0_161, %c0_162] : memref<2x1x32xf32, #tpu.memory_space<vmem>>, vector<1x1x32xf32>
    %316 = vector.shape_cast %315 : vector<1x1x32xf32> to vector<1x32xf32>
    %cst_163 = arith.constant dense<0.000000e+00> : vector<16xf32>
    %317 = vector.multi_reduction <add>, %312, %cst_163 [1] : vector<16x32xf32> to vector<16xf32>
    %318 = vector.shape_cast %317 : vector<16xf32> to vector<16x1xf32>
    %cst_164 = arith.constant 3.200000e+01 : f32
    %319 = vector.broadcast %cst_164 : f32 to vector<16x1xf32>
    %320 = arith.divf %318, %319 : vector<16x1xf32>
    %321 = vector.broadcast %320 : vector<16x1xf32> to vector<16x32xf32>
    %322 = arith.subf %312, %321 : vector<16x32xf32>
    %323 = arith.mulf %322, %322 : vector<16x32xf32>
    %cst_165 = arith.constant dense<0.000000e+00> : vector<16xf32>
    %324 = vector.multi_reduction <add>, %323, %cst_165 [1] : vector<16x32xf32> to vector<16xf32>
    %325 = vector.shape_cast %324 : vector<16xf32> to vector<16x1xf32>
    %cst_166 = arith.constant 3.200000e+01 : f32
    %326 = vector.broadcast %cst_166 : f32 to vector<16x1xf32>
    %327 = arith.divf %325, %326 : vector<16x1xf32>
    %cst_167 = arith.constant 9.99999974E-6 : f32
    %328 = vector.broadcast %cst_167 : f32 to vector<16x1xf32>
    %329 = arith.addf %327, %328 : vector<16x1xf32>
    %330 = math.rsqrt %329 : vector<16x1xf32>
    %331 = vector.broadcast %330 : vector<16x1xf32> to vector<16x32xf32>
    %332 = arith.mulf %322, %331 : vector<16x32xf32>
    %333 = vector.broadcast %314 : vector<1x32xf32> to vector<16x32xf32>
    %334 = arith.mulf %332, %333 : vector<16x32xf32>
    %335 = vector.broadcast %316 : vector<1x32xf32> to vector<16x32xf32>
    %336 = arith.addf %334, %335 : vector<16x32xf32>
    %337 = arith.truncf %336 : vector<16x32xf32> to vector<16x32xbf16>
    %c1_168 = arith.constant 1 : index
    %c0_169 = arith.constant 0 : index
    %c0_170 = arith.constant 0 : index
    %338 = vector.load %arg11[%c1_168, %c0_169, %c0_170] : memref<2x32x64xbf16, #tpu.memory_space<vmem>>, vector<1x32x64xbf16>
    %339 = vector.shape_cast %338 : vector<1x32x64xbf16> to vector<32x64xbf16>
    %cst_171 = arith.constant dense<0.000000e+00> : vector<16x64xf32>
    %340 = tpu.matmul %337, %339, %cst_171 {dimension_numbers = #tpu.dot_dimension_numbers<[1], [0], [0], [1], [0, 0, 1, 1], [], []>} : vector<16x32xbf16>, vector<32x64xbf16>, vector<16x64xf32> -> vector<16x64xf32>
    %c1_172 = arith.constant 1 : index
    %c0_173 = arith.constant 0 : index
    %c0_174 = arith.constant 0 : index
    %341 = vector.load %arg12[%c1_172, %c0_173, %c0_174] : memref<2x1x64xf32, #tpu.memory_space<vmem>>, vector<1x1x64xf32>
    %342 = vector.shape_cast %341 : vector<1x1x64xf32> to vector<1x64xf32>
    %343 = vector.broadcast %342 : vector<1x64xf32> to vector<16x64xf32>
    %344 = arith.addf %340, %343 : vector<16x64xf32>
    %cst_175 = arith.constant 5.000000e-01 : f32
    %345 = vector.broadcast %cst_175 : f32 to vector<16x64xf32>
    %346 = arith.mulf %345, %344 : vector<16x64xf32>
    %cst_176 = arith.constant 0.707106769 : f32
    %347 = vector.broadcast %cst_176 : f32 to vector<16x64xf32>
    %348 = arith.mulf %344, %347 : vector<16x64xf32>
    %349 = math.absf %348 : vector<16x64xf32>
    %cst_177 = arith.constant 0.327591091 : f32
    %350 = vector.broadcast %cst_177 : f32 to vector<16x64xf32>
    %351 = arith.mulf %350, %349 : vector<16x64xf32>
    %cst_178 = arith.constant 1.000000e+00 : f32
    %352 = vector.broadcast %cst_178 : f32 to vector<16x64xf32>
    %353 = arith.addf %352, %351 : vector<16x64xf32>
    %cst_179 = arith.constant 1.000000e+00 : f32
    %354 = vector.broadcast %cst_179 : f32 to vector<16x64xf32>
    %355 = arith.divf %354, %353 : vector<16x64xf32>
    %cst_180 = arith.constant 1.06140542 : f32
    %356 = vector.broadcast %cst_180 : f32 to vector<16x64xf32>
    %357 = arith.mulf %356, %355 : vector<16x64xf32>
    %cst_181 = arith.constant -1.45315206 : f32
    %358 = vector.broadcast %cst_181 : f32 to vector<16x64xf32>
    %359 = arith.addf %357, %358 : vector<16x64xf32>
    %360 = arith.mulf %359, %355 : vector<16x64xf32>
    %cst_182 = arith.constant 1.42141378 : f32
    %361 = vector.broadcast %cst_182 : f32 to vector<16x64xf32>
    %362 = arith.addf %360, %361 : vector<16x64xf32>
    %363 = arith.mulf %362, %355 : vector<16x64xf32>
    %cst_183 = arith.constant -0.284496725 : f32
    %364 = vector.broadcast %cst_183 : f32 to vector<16x64xf32>
    %365 = arith.addf %363, %364 : vector<16x64xf32>
    %366 = arith.mulf %365, %355 : vector<16x64xf32>
    %cst_184 = arith.constant 0.254829586 : f32
    %367 = vector.broadcast %cst_184 : f32 to vector<16x64xf32>
    %368 = arith.addf %366, %367 : vector<16x64xf32>
    %369 = arith.mulf %368, %355 : vector<16x64xf32>
    %370 = arith.mulf %349, %349 : vector<16x64xf32>
    %cst_185 = arith.constant 0.000000e+00 : f32
    %371 = vector.broadcast %cst_185 : f32 to vector<16x64xf32>
    %372 = arith.subf %371, %370 : vector<16x64xf32>
    %373 = math.exp %372 : vector<16x64xf32>
    %374 = arith.mulf %369, %373 : vector<16x64xf32>
    %cst_186 = arith.constant 1.000000e+00 : f32
    %375 = vector.broadcast %cst_186 : f32 to vector<16x64xf32>
    %376 = arith.subf %375, %374 : vector<16x64xf32>
    %cst_187 = arith.constant 0.000000e+00 : f32
    %377 = vector.broadcast %cst_187 : f32 to vector<16x64xf32>
    %378 = arith.cmpf oge, %348, %377 : vector<16x64xf32>
    %cst_188 = arith.constant 0.000000e+00 : f32
    %379 = vector.broadcast %cst_188 : f32 to vector<16x64xf32>
    %380 = arith.subf %379, %376 : vector<16x64xf32>
    %381 = arith.select %378, %376, %380 : vector<16x64xi1>, vector<16x64xf32>
    %cst_189 = arith.constant 1.000000e+00 : f32
    %382 = vector.broadcast %cst_189 : f32 to vector<16x64xf32>
    %383 = arith.addf %382, %381 : vector<16x64xf32>
    %384 = arith.mulf %346, %383 : vector<16x64xf32>
    %385 = arith.truncf %384 : vector<16x64xf32> to vector<16x64xbf16>
    %c1_190 = arith.constant 1 : index
    %c0_191 = arith.constant 0 : index
    %c0_192 = arith.constant 0 : index
    %386 = vector.load %arg13[%c1_190, %c0_191, %c0_192] : memref<2x64x32xbf16, #tpu.memory_space<vmem>>, vector<1x64x32xbf16>
    %387 = vector.shape_cast %386 : vector<1x64x32xbf16> to vector<64x32xbf16>
    %cst_193 = arith.constant dense<0.000000e+00> : vector<16x32xf32>
    %388 = tpu.matmul %385, %387, %cst_193 {dimension_numbers = #tpu.dot_dimension_numbers<[1], [0], [0], [1], [0, 0, 1, 1], [], []>} : vector<16x64xbf16>, vector<64x32xbf16>, vector<16x32xf32> -> vector<16x32xf32>
    %c1_194 = arith.constant 1 : index
    %c0_195 = arith.constant 0 : index
    %c0_196 = arith.constant 0 : index
    %389 = vector.load %arg14[%c1_194, %c0_195, %c0_196] : memref<2x1x32xf32, #tpu.memory_space<vmem>>, vector<1x1x32xf32>
    %390 = vector.shape_cast %389 : vector<1x1x32xf32> to vector<1x32xf32>
    %391 = vector.broadcast %390 : vector<1x32xf32> to vector<16x32xf32>
    %392 = arith.addf %388, %391 : vector<16x32xf32>
    %393 = arith.addf %336, %392 : vector<16x32xf32>
    %c1_197 = arith.constant 1 : index
    %c0_198 = arith.constant 0 : index
    %c0_199 = arith.constant 0 : index
    %394 = vector.load %arg15[%c1_197, %c0_198, %c0_199] : memref<2x1x32xf32, #tpu.memory_space<vmem>>, vector<1x1x32xf32>
    %395 = vector.shape_cast %394 : vector<1x1x32xf32> to vector<1x32xf32>
    %c1_200 = arith.constant 1 : index
    %c0_201 = arith.constant 0 : index
    %c0_202 = arith.constant 0 : index
    %396 = vector.load %arg16[%c1_200, %c0_201, %c0_202] : memref<2x1x32xf32, #tpu.memory_space<vmem>>, vector<1x1x32xf32>
    %397 = vector.shape_cast %396 : vector<1x1x32xf32> to vector<1x32xf32>
    %cst_203 = arith.constant dense<0.000000e+00> : vector<16xf32>
    %398 = vector.multi_reduction <add>, %393, %cst_203 [1] : vector<16x32xf32> to vector<16xf32>
    %399 = vector.shape_cast %398 : vector<16xf32> to vector<16x1xf32>
    %cst_204 = arith.constant 3.200000e+01 : f32
    %400 = vector.broadcast %cst_204 : f32 to vector<16x1xf32>
    %401 = arith.divf %399, %400 : vector<16x1xf32>
    %402 = vector.broadcast %401 : vector<16x1xf32> to vector<16x32xf32>
    %403 = arith.subf %393, %402 : vector<16x32xf32>
    %404 = arith.mulf %403, %403 : vector<16x32xf32>
    %cst_205 = arith.constant dense<0.000000e+00> : vector<16xf32>
    %405 = vector.multi_reduction <add>, %404, %cst_205 [1] : vector<16x32xf32> to vector<16xf32>
    %406 = vector.shape_cast %405 : vector<16xf32> to vector<16x1xf32>
    %cst_206 = arith.constant 3.200000e+01 : f32
    %407 = vector.broadcast %cst_206 : f32 to vector<16x1xf32>
    %408 = arith.divf %406, %407 : vector<16x1xf32>
    %cst_207 = arith.constant 9.99999974E-6 : f32
    %409 = vector.broadcast %cst_207 : f32 to vector<16x1xf32>
    %410 = arith.addf %408, %409 : vector<16x1xf32>
    %411 = math.rsqrt %410 : vector<16x1xf32>
    %412 = vector.broadcast %411 : vector<16x1xf32> to vector<16x32xf32>
    %413 = arith.mulf %403, %412 : vector<16x32xf32>
    %414 = vector.broadcast %395 : vector<1x32xf32> to vector<16x32xf32>
    %415 = arith.mulf %413, %414 : vector<16x32xf32>
    %416 = vector.broadcast %397 : vector<1x32xf32> to vector<16x32xf32>
    %417 = arith.addf %415, %416 : vector<16x32xf32>
    %c0_208 = arith.constant 0 : index
    %c0_209 = arith.constant 0 : index
    %418 = vector.load %arg17[%c0_208, %c0_209] : memref<1x32xf32, #tpu.memory_space<vmem>>, vector<1x32xf32>
    %c0_210 = arith.constant 0 : index
    %c0_211 = arith.constant 0 : index
    %419 = vector.load %arg18[%c0_210, %c0_211] : memref<1x32xf32, #tpu.memory_space<vmem>>, vector<1x32xf32>
    %cst_212 = arith.constant dense<0.000000e+00> : vector<16xf32>
    %420 = vector.multi_reduction <add>, %417, %cst_212 [1] : vector<16x32xf32> to vector<16xf32>
    %421 = vector.shape_cast %420 : vector<16xf32> to vector<16x1xf32>
    %cst_213 = arith.constant 3.200000e+01 : f32
    %422 = vector.broadcast %cst_213 : f32 to vector<16x1xf32>
    %423 = arith.divf %421, %422 : vector<16x1xf32>
    %424 = vector.broadcast %423 : vector<16x1xf32> to vector<16x32xf32>
    %425 = arith.subf %417, %424 : vector<16x32xf32>
    %426 = arith.mulf %425, %425 : vector<16x32xf32>
    %cst_214 = arith.constant dense<0.000000e+00> : vector<16xf32>
    %427 = vector.multi_reduction <add>, %426, %cst_214 [1] : vector<16x32xf32> to vector<16xf32>
    %428 = vector.shape_cast %427 : vector<16xf32> to vector<16x1xf32>
    %cst_215 = arith.constant 3.200000e+01 : f32
    %429 = vector.broadcast %cst_215 : f32 to vector<16x1xf32>
    %430 = arith.divf %428, %429 : vector<16x1xf32>
    %cst_216 = arith.constant 9.99999974E-6 : f32
    %431 = vector.broadcast %cst_216 : f32 to vector<16x1xf32>
    %432 = arith.addf %430, %431 : vector<16x1xf32>
    %433 = math.rsqrt %432 : vector<16x1xf32>
    %434 = vector.broadcast %433 : vector<16x1xf32> to vector<16x32xf32>
    %435 = arith.mulf %425, %434 : vector<16x32xf32>
    %436 = vector.broadcast %418 : vector<1x32xf32> to vector<16x32xf32>
    %437 = arith.mulf %435, %436 : vector<16x32xf32>
    %438 = vector.broadcast %419 : vector<1x32xf32> to vector<16x32xf32>
    %439 = arith.addf %437, %438 : vector<16x32xf32>
    %cst_217 = arith.constant 5.000000e-01 : f32
    %440 = vector.broadcast %cst_217 : f32 to vector<16x32xf32>
    %441 = arith.mulf %440, %439 : vector<16x32xf32>
    %cst_218 = arith.constant 0.707106769 : f32
    %442 = vector.broadcast %cst_218 : f32 to vector<16x32xf32>
    %443 = arith.mulf %439, %442 : vector<16x32xf32>
    %444 = math.absf %443 : vector<16x32xf32>
    %cst_219 = arith.constant 0.327591091 : f32
    %445 = vector.broadcast %cst_219 : f32 to vector<16x32xf32>
    %446 = arith.mulf %445, %444 : vector<16x32xf32>
    %cst_220 = arith.constant 1.000000e+00 : f32
    %447 = vector.broadcast %cst_220 : f32 to vector<16x32xf32>
    %448 = arith.addf %447, %446 : vector<16x32xf32>
    %cst_221 = arith.constant 1.000000e+00 : f32
    %449 = vector.broadcast %cst_221 : f32 to vector<16x32xf32>
    %450 = arith.divf %449, %448 : vector<16x32xf32>
    %cst_222 = arith.constant 1.06140542 : f32
    %451 = vector.broadcast %cst_222 : f32 to vector<16x32xf32>
    %452 = arith.mulf %451, %450 : vector<16x32xf32>
    %cst_223 = arith.constant -1.45315206 : f32
    %453 = vector.broadcast %cst_223 : f32 to vector<16x32xf32>
    %454 = arith.addf %452, %453 : vector<16x32xf32>
    %455 = arith.mulf %454, %450 : vector<16x32xf32>
    %cst_224 = arith.constant 1.42141378 : f32
    %456 = vector.broadcast %cst_224 : f32 to vector<16x32xf32>
    %457 = arith.addf %455, %456 : vector<16x32xf32>
    %458 = arith.mulf %457, %450 : vector<16x32xf32>
    %cst_225 = arith.constant -0.284496725 : f32
    %459 = vector.broadcast %cst_225 : f32 to vector<16x32xf32>
    %460 = arith.addf %458, %459 : vector<16x32xf32>
    %461 = arith.mulf %460, %450 : vector<16x32xf32>
    %cst_226 = arith.constant 0.254829586 : f32
    %462 = vector.broadcast %cst_226 : f32 to vector<16x32xf32>
    %463 = arith.addf %461, %462 : vector<16x32xf32>
    %464 = arith.mulf %463, %450 : vector<16x32xf32>
    %465 = arith.mulf %444, %444 : vector<16x32xf32>
    %cst_227 = arith.constant 0.000000e+00 : f32
    %466 = vector.broadcast %cst_227 : f32 to vector<16x32xf32>
    %467 = arith.subf %466, %465 : vector<16x32xf32>
    %468 = math.exp %467 : vector<16x32xf32>
    %469 = arith.mulf %464, %468 : vector<16x32xf32>
    %cst_228 = arith.constant 1.000000e+00 : f32
    %470 = vector.broadcast %cst_228 : f32 to vector<16x32xf32>
    %471 = arith.subf %470, %469 : vector<16x32xf32>
    %cst_229 = arith.constant 0.000000e+00 : f32
    %472 = vector.broadcast %cst_229 : f32 to vector<16x32xf32>
    %473 = arith.cmpf oge, %443, %472 : vector<16x32xf32>
    %cst_230 = arith.constant 0.000000e+00 : f32
    %474 = vector.broadcast %cst_230 : f32 to vector<16x32xf32>
    %475 = arith.subf %474, %471 : vector<16x32xf32>
    %476 = arith.select %473, %471, %475 : vector<16x32xi1>, vector<16x32xf32>
    %cst_231 = arith.constant 1.000000e+00 : f32
    %477 = vector.broadcast %cst_231 : f32 to vector<16x32xf32>
    %478 = arith.addf %477, %476 : vector<16x32xf32>
    %479 = arith.mulf %441, %478 : vector<16x32xf32>
    %c0_232 = arith.constant 0 : index
    %c0_233 = arith.constant 0 : index
    %c0_234 = arith.constant 0 : index
    %480 = vector.load %arg2[%c0_232, %c0_233, %c0_234] : memref<1x16x1xf32, #tpu.memory_space<vmem>>, vector<1x16x1xf32>
    %481 = vector.shape_cast %480 : vector<1x16x1xf32> to vector<16x1xf32>
    %482 = vector.broadcast %481 : vector<16x1xf32> to vector<16x32xf32>
    %483 = arith.mulf %479, %482 : vector<16x32xf32>
    %484 = vector.extract_strided_slice %483 {offsets = [0, 0], sizes = [1, 32], strides = [1, 1]} : vector<16x32xf32> to vector<1x32xf32>
    %485 = vector.extract_strided_slice %483 {offsets = [1, 0], sizes = [1, 32], strides = [1, 1]} : vector<16x32xf32> to vector<1x32xf32>
    %486 = vector.extract_strided_slice %483 {offsets = [2, 0], sizes = [1, 32], strides = [1, 1]} : vector<16x32xf32> to vector<1x32xf32>
    %487 = vector.extract_strided_slice %483 {offsets = [3, 0], sizes = [1, 32], strides = [1, 1]} : vector<16x32xf32> to vector<1x32xf32>
    %488 = vector.extract_strided_slice %483 {offsets = [4, 0], sizes = [1, 32], strides = [1, 1]} : vector<16x32xf32> to vector<1x32xf32>
    %489 = vector.extract_strided_slice %483 {offsets = [5, 0], sizes = [1, 32], strides = [1, 1]} : vector<16x32xf32> to vector<1x32xf32>
    %490 = vector.extract_strided_slice %483 {offsets = [6, 0], sizes = [1, 32], strides = [1, 1]} : vector<16x32xf32> to vector<1x32xf32>
    %491 = vector.extract_strided_slice %483 {offsets = [7, 0], sizes = [1, 32], strides = [1, 1]} : vector<16x32xf32> to vector<1x32xf32>
    %492 = vector.extract_strided_slice %483 {offsets = [8, 0], sizes = [1, 32], strides = [1, 1]} : vector<16x32xf32> to vector<1x32xf32>
    %493 = vector.extract_strided_slice %483 {offsets = [9, 0], sizes = [1, 32], strides = [1, 1]} : vector<16x32xf32> to vector<1x32xf32>
    %494 = vector.extract_strided_slice %483 {offsets = [10, 0], sizes = [1, 32], strides = [1, 1]} : vector<16x32xf32> to vector<1x32xf32>
    %495 = vector.extract_strided_slice %483 {offsets = [11, 0], sizes = [1, 32], strides = [1, 1]} : vector<16x32xf32> to vector<1x32xf32>
    %496 = vector.extract_strided_slice %483 {offsets = [12, 0], sizes = [1, 32], strides = [1, 1]} : vector<16x32xf32> to vector<1x32xf32>
    %497 = vector.extract_strided_slice %483 {offsets = [13, 0], sizes = [1, 32], strides = [1, 1]} : vector<16x32xf32> to vector<1x32xf32>
    %498 = vector.extract_strided_slice %483 {offsets = [14, 0], sizes = [1, 32], strides = [1, 1]} : vector<16x32xf32> to vector<1x32xf32>
    %499 = vector.extract_strided_slice %483 {offsets = [15, 0], sizes = [1, 32], strides = [1, 1]} : vector<16x32xf32> to vector<1x32xf32>
    %500 = tpu.concatenate %484, %485, %486, %487, %488, %489, %490, %491, %492, %493, %494, %495, %496, %497, %498, %499 in 1 : vector<1x32xf32>, vector<1x32xf32>, vector<1x32xf32>, vector<1x32xf32>, vector<1x32xf32>, vector<1x32xf32>, vector<1x32xf32>, vector<1x32xf32>, vector<1x32xf32>, vector<1x32xf32>, vector<1x32xf32>, vector<1x32xf32>, vector<1x32xf32>, vector<1x32xf32>, vector<1x32xf32>, vector<1x32xf32> -> vector<1x512xf32>
    %501 = arith.truncf %500 : vector<1x512xf32> to vector<1x512xbf16>
    %c0_235 = arith.constant 0 : index
    %c0_236 = arith.constant 0 : index
    %502 = vector.load %arg19[%c0_235, %c0_236] : memref<512x128xbf16, #tpu.memory_space<vmem>>, vector<512x128xbf16>
    %cst_237 = arith.constant dense<0.000000e+00> : vector<1x128xf32>
    %503 = tpu.matmul %501, %502, %cst_237 {dimension_numbers = #tpu.dot_dimension_numbers<[1], [0], [0], [1], [0, 0, 1, 1], [], []>} : vector<1x512xbf16>, vector<512x128xbf16>, vector<1x128xf32> -> vector<1x128xf32>
    %c0_238 = arith.constant 0 : index
    %c0_239 = arith.constant 0 : index
    %504 = vector.load %arg20[%c0_238, %c0_239] : memref<1x128xf32, #tpu.memory_space<vmem>>, vector<1x128xf32>
    %505 = arith.addf %503, %504 : vector<1x128xf32>
    %506 = arith.negf %505 : vector<1x128xf32>
    %507 = math.exp %506 : vector<1x128xf32>
    %cst_240 = arith.constant 1.000000e+00 : f32
    %508 = vector.broadcast %cst_240 : f32 to vector<1x128xf32>
    %509 = arith.addf %508, %507 : vector<1x128xf32>
    %510 = arith.divf %508, %509 : vector<1x128xf32>
    %c0_241 = arith.constant 0 : index
    %c0_242 = arith.constant 0 : index
    %c0_243 = arith.constant 0 : index
    %511 = vector.load %arg21[%c0_241, %c0_242, %c0_243] : memref<1x1x128xf32, #tpu.memory_space<vmem>>, vector<1x1x128xf32>
    %512 = vector.shape_cast %511 : vector<1x1x128xf32> to vector<1x128xf32>
    %513 = vector.shape_cast %510 : vector<1x128xf32> to vector<1x1x128xf32>
    tpu.vector_store %arg21[%c0_241, %c0_242, %c0_243], %513 {strides = array<i32>} : memref<1x1x128xf32, #tpu.memory_space<vmem>>, vector<1x1x128xf32>,
    return
  }
  func.func @transform_0(%arg0: i32) -> (i32, i32, i32) {
    %c0_i32 = arith.constant 0 : i32
    %c0_i32_0 = arith.constant 0 : i32
    %c0_i32_1 = arith.constant 0 : i32
    return %arg0, %c0_i32, %c0_i32_0 : i32, i32, i32
  }
  func.func @transform_1(%arg0: i32) -> (i32, i32, i32) {
    %c0_i32 = arith.constant 0 : i32
    %c0_i32_0 = arith.constant 0 : i32
    %c0_i32_1 = arith.constant 0 : i32
    return %arg0, %c0_i32, %c0_i32_0 : i32, i32, i32
  }
  func.func @transform_2(%arg0: i32) -> (i32, i32, i32) {
    %c0_i32 = arith.constant 0 : i32
    %c0_i32_0 = arith.constant 0 : i32
    %c0_i32_1 = arith.constant 0 : i32
    %c0_i32_2 = arith.constant 0 : i32
    return %c0_i32, %c0_i32_0, %c0_i32_1 : i32, i32, i32
  }
  func.func @transform_3(%arg0: i32) -> (i32, i32) {
    %c0_i32 = arith.constant 0 : i32
    %c0_i32_0 = arith.constant 0 : i32
    %c0_i32_1 = arith.constant 0 : i32
    return %c0_i32, %c0_i32_0 : i32, i32
  }
  func.func @transform_4(%arg0: i32) -> (i32, i32, i32) {
    %c0_i32 = arith.constant 0 : i32
    %c0_i32_0 = arith.constant 0 : i32
    %c0_i32_1 = arith.constant 0 : i32
    %c0_i32_2 = arith.constant 0 : i32
    return %c0_i32, %c0_i32_0, %c0_i32_1 : i32, i32, i32
  }
  func.func @transform_5(%arg0: i32) -> (i32, i32, i32) {
    %c0_i32 = arith.constant 0 : i32
    %c0_i32_0 = arith.constant 0 : i32
    %c0_i32_1 = arith.constant 0 : i32
    %c0_i32_2 = arith.constant 0 : i32
    return %c0_i32, %c0_i32_0, %c0_i32_1 : i32, i32, i32
  }
  func.func @transform_6(%arg0: i32) -> (i32, i32, i32, i32) {
    %c0_i32 = arith.constant 0 : i32
    %c0_i32_0 = arith.constant 0 : i32
    %c0_i32_1 = arith.constant 0 : i32
    %c0_i32_2 = arith.constant 0 : i32
    %c0_i32_3 = arith.constant 0 : i32
    return %c0_i32, %c0_i32_0, %c0_i32_1, %c0_i32_2 : i32, i32, i32, i32
  }
  func.func @transform_7(%arg0: i32) -> (i32, i32, i32) {
    %c0_i32 = arith.constant 0 : i32
    %c0_i32_0 = arith.constant 0 : i32
    %c0_i32_1 = arith.constant 0 : i32
    %c0_i32_2 = arith.constant 0 : i32
    return %c0_i32, %c0_i32_0, %c0_i32_1 : i32, i32, i32
  }
  func.func @transform_8(%arg0: i32) -> (i32, i32, i32) {
    %c0_i32 = arith.constant 0 : i32
    %c0_i32_0 = arith.constant 0 : i32
    %c0_i32_1 = arith.constant 0 : i32
    %c0_i32_2 = arith.constant 0 : i32
    return %c0_i32, %c0_i32_0, %c0_i32_1 : i32, i32, i32
  }
  func.func @transform_9(%arg0: i32) -> (i32, i32, i32) {
    %c0_i32 = arith.constant 0 : i32
    %c0_i32_0 = arith.constant 0 : i32
    %c0_i32_1 = arith.constant 0 : i32
    %c0_i32_2 = arith.constant 0 : i32
    return %c0_i32, %c0_i32_0, %c0_i32_1 : i32, i32, i32
  }
  func.func @transform_10(%arg0: i32) -> (i32, i32, i32) {
    %c0_i32 = arith.constant 0 : i32
    %c0_i32_0 = arith.constant 0 : i32
    %c0_i32_1 = arith.constant 0 : i32
    %c0_i32_2 = arith.constant 0 : i32
    return %c0_i32, %c0_i32_0, %c0_i32_1 : i32, i32, i32
  }
  func.func @transform_11(%arg0: i32) -> (i32, i32, i32) {
    %c0_i32 = arith.constant 0 : i32
    %c0_i32_0 = arith.constant 0 : i32
    %c0_i32_1 = arith.constant 0 : i32
    %c0_i32_2 = arith.constant 0 : i32
    return %c0_i32, %c0_i32_0, %c0_i32_1 : i32, i32, i32
  }
  func.func @transform_12(%arg0: i32) -> (i32, i32, i32) {
    %c0_i32 = arith.constant 0 : i32
    %c0_i32_0 = arith.constant 0 : i32
    %c0_i32_1 = arith.constant 0 : i32
    %c0_i32_2 = arith.constant 0 : i32
    return %c0_i32, %c0_i32_0, %c0_i32_1 : i32, i32, i32
  }
  func.func @transform_13(%arg0: i32) -> (i32, i32, i32) {
    %c0_i32 = arith.constant 0 : i32
    %c0_i32_0 = arith.constant 0 : i32
    %c0_i32_1 = arith.constant 0 : i32
    %c0_i32_2 = arith.constant 0 : i32
    return %c0_i32, %c0_i32_0, %c0_i32_1 : i32, i32, i32
  }
  func.func @transform_14(%arg0: i32) -> (i32, i32, i32) {
    %c0_i32 = arith.constant 0 : i32
    %c0_i32_0 = arith.constant 0 : i32
    %c0_i32_1 = arith.constant 0 : i32
    %c0_i32_2 = arith.constant 0 : i32
    return %c0_i32, %c0_i32_0, %c0_i32_1 : i32, i32, i32
  }
  func.func @transform_15(%arg0: i32) -> (i32, i32, i32) {
    %c0_i32 = arith.constant 0 : i32
    %c0_i32_0 = arith.constant 0 : i32
    %c0_i32_1 = arith.constant 0 : i32
    %c0_i32_2 = arith.constant 0 : i32
    return %c0_i32, %c0_i32_0, %c0_i32_1 : i32, i32, i32
  }
  func.func @transform_16(%arg0: i32) -> (i32, i32) {
    %c0_i32 = arith.constant 0 : i32
    %c0_i32_0 = arith.constant 0 : i32
    %c0_i32_1 = arith.constant 0 : i32
    return %c0_i32, %c0_i32_0 : i32, i32
  }
  func.func @transform_17(%arg0: i32) -> (i32, i32) {
    %c0_i32 = arith.constant 0 : i32
    %c0_i32_0 = arith.constant 0 : i32
    %c0_i32_1 = arith.constant 0 : i32
    return %c0_i32, %c0_i32_0 : i32, i32
  }
  func.func @transform_18(%arg0: i32) -> (i32, i32) {
    %c0_i32 = arith.constant 0 : i32
    %c0_i32_0 = arith.constant 0 : i32
    %c0_i32_1 = arith.constant 0 : i32
    return %c0_i32, %c0_i32_0 : i32, i32
  }
  func.func @transform_19(%arg0: i32) -> (i32, i32) {
    %c0_i32 = arith.constant 0 : i32
    %c0_i32_0 = arith.constant 0 : i32
    %c0_i32_1 = arith.constant 0 : i32
    return %c0_i32, %c0_i32_0 : i32, i32
  }
  func.func @transform_20(%arg0: i32) -> (i32, i32, i32) {
    %c0_i32 = arith.constant 0 : i32
    %c0_i32_0 = arith.constant 0 : i32
    %c0_i32_1 = arith.constant 0 : i32
    return %arg0, %c0_i32, %c0_i32_0 : i32, i32, i32
  }
}

</mosaic_0001>

<llo_original>
// kernel: transformer_forward.1
$region0: #{transformer_forward.1}
  #allocation0 [shape = 'u32[]', space=smem, size = 0x4, offset = 0x4, fixed_abs, tag = 'smem constant byte address 0x4 - core index']
  #allocation1 [shape = 'u32[144,128]{1,0:T(1,128)}', space=vmem, size = 0x12000, scoped, tag = 'internal scratch']
  %s0 = inlined_call_operand.vmem [shape: f32[2,16,4], index: 0, kind: input, shape index: {}]
  %s1 = inlined_call_operand.vmem [shape: f32[2,16,1], index: 1, kind: input, shape index: {}]
  %s2 = inlined_call_operand.vmem [shape: bf16[3,4,32], index: 2, kind: input, shape index: {}]
  %s3 = inlined_call_operand.vmem [shape: f32[16,32], index: 3, kind: input, shape index: {}]
  %s4 = inlined_call_operand.vmem [shape: bf16[2,32,96], index: 4, kind: input, shape index: {}]
  %s5 = inlined_call_operand.vmem [shape: f32[2,1,96], index: 5, kind: input, shape index: {}]
  %s6 = inlined_call_operand.vmem [shape: bf16[2,4,8,32], index: 6, kind: input, shape index: {}]
  %s7 = inlined_call_operand.vmem [shape: f32[2,1,32], index: 7, kind: input, shape index: {}]
  %s8 = inlined_call_operand.vmem [shape: f32[2,1,32], index: 8, kind: input, shape index: {}]
  %s9 = inlined_call_operand.vmem [shape: f32[2,1,32], index: 9, kind: input, shape index: {}]
  %s10 = inlined_call_operand.vmem [shape: bf16[2,32,64], index: 10, kind: input, shape index: {}]
  %s11 = inlined_call_operand.vmem [shape: f32[2,1,64], index: 11, kind: input, shape index: {}]
  %s12 = inlined_call_operand.vmem [shape: bf16[2,64,32], index: 12, kind: input, shape index: {}]
  %s13 = inlined_call_operand.vmem [shape: f32[2,1,32], index: 13, kind: input, shape index: {}]
  %s14 = inlined_call_operand.vmem [shape: f32[2,1,32], index: 14, kind: input, shape index: {}]
  %s15 = inlined_call_operand.vmem [shape: f32[2,1,32], index: 15, kind: input, shape index: {}]
  %s16 = inlined_call_operand.vmem [shape: f32[1,32], index: 16, kind: input, shape index: {}]
  %s17 = inlined_call_operand.vmem [shape: f32[1,32], index: 17, kind: input, shape index: {}]
  %s18 = inlined_call_operand.hbm [shape: bf16[512,128], index: 18, kind: input, shape index: {}]
  %s19 = inlined_call_operand.vmem [shape: f32[1,128], index: 19, kind: input, shape index: {}]
  %s20 = inlined_call_operand.hbm [shape: f32[2,1,128], index: 20, kind: output, shape index: {}]
  %s21 = sld [smem:[#allocation0]]
  $region117: #{transformer_forward.1} parent=0
    _
  %s23 = ssub.s32 1, %s21
  %s24 = scalar_select 0, %s23, %s21
  $region1: #{transformer_forward.1} parent=0
    #allocation2 [shape = 'u8[131072]{0}', space=vmem, size = 0x20000, scoped, tag = 'input window, operand 18, single buffered']
    #allocation3 [shape = 's32[2]{0}', space=sflag, size = 0x8, scoped, tag = 'scoped memory for transformer_forward.1']
    #allocation4 [shape = 's32[2]{0}', space=sflag, size = 0x8, scoped, tag = 'scoped memory for transformer_forward.1']
    #allocation5 [shape = 'u8[1024]{0}', space=vmem, size = 0x400, scoped, tag = 'output window, operand 0']
    %25 = vsyncpa [#allocation3], 0
    %26 = vsyncpa [#allocation4], 0
    %s27 = scalar_lea.sflag [#allocation4], 1
    %28 = vsyncpa %s27, 0
    loop: start=0, step=1, limit=4
    $region2: #{transformer_forward.1} parent=1 // loop_pre_header
      _
    $region3: #{transformer_forward.1} parent=1 // loop_header
      %s30 = sphi 0, %s34
      %p31 = scmp.ge.s32.totalorder %s30, 4
      %s40 = sphi 0, %s42
      %s43 = sphi 0, %s40
      %s44 = sphi 0, %s43
      %s60 = sphi 0, %s44
      %s66 = sphi 0, %s68
      %s69 = sphi 0, %s66
      %s70 = sphi 0, %s69
      %s86 = sphi 0, %s70
      %s90 = sphi 0, %s90
      %s92 = sphi 0, %s90
      %s93 = sphi 0, %s92
      %s107 = sphi 0, %s93
      %s111 = sphi 0, %s111
      %s113 = sphi 0, %s111
      %s114 = sphi 0, %s113
      %s128 = sphi 0, %s114
      %s132 = sphi 0, %s132
      %s134 = sphi 0, %s132
      %s135 = sphi 0, %s134
      %s149 = sphi 0, %s135
      %s153 = sphi 0, %s153
      %s155 = sphi 0, %s153
      %s156 = sphi 0, %s155
      %s170 = sphi 0, %s156
      %s174 = sphi 0, %s174
      %s176 = sphi 0, %s174
      %s177 = sphi 0, %s176
      %s191 = sphi 0, %s177
      %s195 = sphi 0, %s195
      %s197 = sphi 0, %s195
      %s198 = sphi 0, %s197
      %s212 = sphi 0, %s198
      %s216 = sphi 0, %s216
      %s218 = sphi 0, %s216
      %s219 = sphi 0, %s218
      %s233 = sphi 0, %s219
      %s237 = sphi 0, %s237
      %s239 = sphi 0, %s237
      %s240 = sphi 0, %s239
      %s254 = sphi 0, %s240
      %s258 = sphi 0, %s258
      %s260 = sphi 0, %s258
      %s261 = sphi 0, %s260
      %s275 = sphi 0, %s261
      %s279 = sphi 0, %s279
      %s281 = sphi 0, %s279
      %s282 = sphi 0, %s281
      %s296 = sphi 0, %s282
      %s300 = sphi 0, %s300
      %s302 = sphi 0, %s300
      %s303 = sphi 0, %s302
      %s317 = sphi 0, %s303
      %s321 = sphi 0, %s321
      %s323 = sphi 0, %s321
      %s324 = sphi 0, %s323
      %s338 = sphi 0, %s324
      %s342 = sphi 0, %s342
      %s344 = sphi 0, %s342
      %s345 = sphi 0, %s344
      %s359 = sphi 0, %s345
      %s363 = sphi 0, %s363
      %s365 = sphi 0, %s363
      %s366 = sphi 0, %s365
      %s380 = sphi 0, %s366
      %s384 = sphi 0, %s384
      %s386 = sphi 0, %s384
      %s387 = sphi 0, %s386
      %s401 = sphi 0, %s387
      %s405 = sphi 0, %s405
      %s407 = sphi 0, %s405
      %s408 = sphi 0, %s407
      %s422 = sphi 0, %s408
      %s426 = sphi 0, %s426
      %s428 = sphi 0, %s426
      %s429 = sphi 0, %s428
      %s443 = sphi 0, %s429
      %s447 = sphi 0, %s447
      %s449 = sphi 0, %s447
      %s450 = sphi 0, %s449
      %s464 = sphi 0, %s450
      %s470 = sphi 0, %s472
      %s473 = sphi 0, %s470
      %s474 = sphi 0, %s473
      %s490 = sphi 0, %s474
    $region4: #{transformer_forward.1} parent=1 // loop_header_branch
      %33 = sbr.rel (%p31) target = $region8
    $region5: #{transformer_forward.1} parent=1 // loop_body
      %s35 = ssub.s32 %s30, 1
      %s36 = ssub.s32 %s30, 2
      %s37 = sadd.s32 %s30, 1
      %s38 = ssub.s32 %s30, %s37
      %p39 = scmp.eq.s32.totalorder %s38, 0
      %s41 = sadd.s32 %s40, 1
      %s42 = scalar_select %p39, %s40, %s41
      %p45 = pneg %p39
      %p46 = scmp.eq.s32.totalorder %s30, 1
      %p47 = por %p45, %p46
      %p48 = scmp.ne.s32.totalorder %s40, %s43
      %p49 = scmp.eq.s32.totalorder %s30, 0
      %p50 = por %p48, %p49
      %p51 = scmp.ne.s32.totalorder %s40, %s43
      %p52 = scmp.eq.s32.totalorder %s35, 1
      %p53 = por %p51, %p52
      %p54 = scmp.ne.s32.totalorder %s43, %s44
      %p55 = scmp.eq.s32.totalorder %s35, 0
      %p56 = por %p54, %p55
      %p57 = scmp.ne.s32.totalorder %s43, %s44
      %p58 = scmp.eq.s32.totalorder %s36, 1
      %p59 = por %p57, %p58
      %p61 = scmp.ne.s32.totalorder %s44, %s60
      %p62 = scmp.eq.s32.totalorder %s36, 0
      %p63 = por %p61, %p62
      %s64 = ssub.s32 %s30, %s37
      %p65 = scmp.eq.s32.totalorder %s64, 0
      %s67 = sadd.s32 %s66, 1
      %s68 = scalar_select %p65, %s66, %s67
      %p71 = pneg %p65
      %p72 = scmp.eq.s32.totalorder %s30, 1
      %p73 = por %p71, %p72
      %p74 = scmp.ne.s32.totalorder %s66, %s69
      %p75 = scmp.eq.s32.totalorder %s30, 0
      %p76 = por %p74, %p75
      %p77 = scmp.ne.s32.totalorder %s66, %s69
      %p78 = scmp.eq.s32.totalorder %s35, 1
      %p79 = por %p77, %p78
      %p80 = scmp.ne.s32.totalorder %s69, %s70
      %p81 = scmp.eq.s32.totalorder %s35, 0
      %p82 = por %p80, %p81
      %p83 = scmp.ne.s32.totalorder %s69, %s70
      %p84 = scmp.eq.s32.totalorder %s36, 1
      %p85 = por %p83, %p84
      %p87 = scmp.ne.s32.totalorder %s70, %s86
      %p88 = scmp.eq.s32.totalorder %s36, 0
      %p89 = por %p87, %p88
      %s91 = sadd.s32 %s90, 1
      %p94 = scmp.eq.s32.totalorder %s30, 1
      %p95 = scmp.ne.s32.totalorder %s90, %s92
      %p96 = scmp.eq.s32.totalorder %s30, 0
      %p97 = por %p95, %p96
      %p98 = scmp.ne.s32.totalorder %s90, %s92
      %p99 = scmp.eq.s32.totalorder %s35, 1
      %p100 = por %p98, %p99
      %p101 = scmp.ne.s32.totalorder %s92, %s93
      %p102 = scmp.eq.s32.totalorder %s35, 0
      %p103 = por %p101, %p102
      %p104 = scmp.ne.s32.totalorder %s92, %s93
      %p105 = scmp.eq.s32.totalorder %s36, 1
      %p106 = por %p104, %p105
      %p108 = scmp.ne.s32.totalorder %s93, %s107
      %p109 = scmp.eq.s32.totalorder %s36, 0
      %p110 = por %p108, %p109
      %s112 = sadd.s32 %s111, 1
      %p115 = scmp.eq.s32.totalorder %s30, 1
      %p116 = scmp.ne.s32.totalorder %s111, %s113
      %p117 = scmp.eq.s32.totalorder %s30, 0
      %p118 = por %p116, %p117
      %p119 = scmp.ne.s32.totalorder %s111, %s113
      %p120 = scmp.eq.s32.totalorder %s35, 1
      %p121 = por %p119, %p120
      %p122 = scmp.ne.s32.totalorder %s113, %s114
      %p123 = scmp.eq.s32.totalorder %s35, 0
      %p124 = por %p122, %p123
      %p125 = scmp.ne.s32.totalorder %s113, %s114
      %p126 = scmp.eq.s32.totalorder %s36, 1
      %p127 = por %p125, %p126
      %p129 = scmp.ne.s32.totalorder %s114, %s128
      %p130 = scmp.eq.s32.totalorder %s36, 0
      %p131 = por %p129, %p130
      %s133 = sadd.s32 %s132, 1
      %p136 = scmp.eq.s32.totalorder %s30, 1
      %p137 = scmp.ne.s32.totalorder %s132, %s134
      %p138 = scmp.eq.s32.totalorder %s30, 0
      %p139 = por %p137, %p138
      %p140 = scmp.ne.s32.totalorder %s132, %s134
      %p141 = scmp.eq.s32.totalorder %s35, 1
      %p142 = por %p140, %p141
      %p143 = scmp.ne.s32.totalorder %s134, %s135
      %p144 = scmp.eq.s32.totalorder %s35, 0
      %p145 = por %p143, %p144
      %p146 = scmp.ne.s32.totalorder %s134, %s135
      %p147 = scmp.eq.s32.totalorder %s36, 1
      %p148 = por %p146, %p147
      %p150 = scmp.ne.s32.totalorder %s135, %s149
      %p151 = scmp.eq.s32.totalorder %s36, 0
      %p152 = por %p150, %p151
      %s154 = sadd.s32 %s153, 1
      %p157 = scmp.eq.s32.totalorder %s30, 1
      %p158 = scmp.ne.s32.totalorder %s153, %s155
      %p159 = scmp.eq.s32.totalorder %s30, 0
      %p160 = por %p158, %p159
      %p161 = scmp.ne.s32.totalorder %s153, %s155
      %p162 = scmp.eq.s32.totalorder %s35, 1
      %p163 = por %p161, %p162
      %p164 = scmp.ne.s32.totalorder %s155, %s156
      %p165 = scmp.eq.s32.totalorder %s35, 0
      %p166 = por %p164, %p165
      %p167 = scmp.ne.s32.totalorder %s155, %s156
      %p168 = scmp.eq.s32.totalorder %s36, 1
      %p169 = por %p167, %p168
      %p171 = scmp.ne.s32.totalorder %s156, %s170
      %p172 = scmp.eq.s32.totalorder %s36, 0
      %p173 = por %p171, %p172
      %s175 = sadd.s32 %s174, 1
      %p178 = scmp.eq.s32.totalorder %s30, 1
      %p179 = scmp.ne.s32.totalorder %s174, %s176
      %p180 = scmp.eq.s32.totalorder %s30, 0
      %p181 = por %p179, %p180
      %p182 = scmp.ne.s32.totalorder %s174, %s176
      %p183 = scmp.eq.s32.totalorder %s35, 1
      %p184 = por %p182, %p183
      %p185 = scmp.ne.s32.totalorder %s176, %s177
      %p186 = scmp.eq.s32.totalorder %s35, 0
      %p187 = por %p185, %p186
      %p188 = scmp.ne.s32.totalorder %s176, %s177
      %p189 = scmp.eq.s32.totalorder %s36, 1
      %p190 = por %p188, %p189
      %p192 = scmp.ne.s32.totalorder %s177, %s191
      %p193 = scmp.eq.s32.totalorder %s36, 0
      %p194 = por %p192, %p193
      %s196 = sadd.s32 %s195, 1
      %p199 = scmp.eq.s32.totalorder %s30, 1
      %p200 = scmp.ne.s32.totalorder %s195, %s197
      %p201 = scmp.eq.s32.totalorder %s30, 0
      %p202 = por %p200, %p201
      %p203 = scmp.ne.s32.totalorder %s195, %s197
      %p204 = scmp.eq.s32.totalorder %s35, 1
      %p205 = por %p203, %p204
      %p206 = scmp.ne.s32.totalorder %s197, %s198
      %p207 = scmp.eq.s32.totalorder %s35, 0
      %p208 = por %p206, %p207
      %p209 = scmp.ne.s32.totalorder %s197, %s198
      %p210 = scmp.eq.s32.totalorder %s36, 1
      %p211 = por %p209, %p210
      %p213 = scmp.ne.s32.totalorder %s198, %s212
      %p214 = scmp.eq.s32.totalorder %s36, 0
      %p215 = por %p213, %p214
      %s217 = sadd.s32 %s216, 1
      %p220 = scmp.eq.s32.totalorder %s30, 1
      %p221 = scmp.ne.s32.totalorder %s216, %s218
      %p222 = scmp.eq.s32.totalorder %s30, 0
      %p223 = por %p221, %p222
      %p224 = scmp.ne.s32.totalorder %s216, %s218
      %p225 = scmp.eq.s32.totalorder %s35, 1
      %p226 = por %p224, %p225
      %p227 = scmp.ne.s32.totalorder %s218, %s219
      %p228 = scmp.eq.s32.totalorder %s35, 0
      %p229 = por %p227, %p228
      %p230 = scmp.ne.s32.totalorder %s218, %s219
      %p231 = scmp.eq.s32.totalorder %s36, 1
      %p232 = por %p230, %p231
      %p234 = scmp.ne.s32.totalorder %s219, %s233
      %p235 = scmp.eq.s32.totalorder %s36, 0
      %p236 = por %p234, %p235
      %s238 = sadd.s32 %s237, 1
      %p241 = scmp.eq.s32.totalorder %s30, 1
      %p242 = scmp.ne.s32.totalorder %s237, %s239
      %p243 = scmp.eq.s32.totalorder %s30, 0
      %p244 = por %p242, %p243
      %p245 = scmp.ne.s32.totalorder %s237, %s239
      %p246 = scmp.eq.s32.totalorder %s35, 1
      %p247 = por %p245, %p246
      %p248 = scmp.ne.s32.totalorder %s239, %s240
      %p249 = scmp.eq.s32.totalorder %s35, 0
      %p250 = por %p248, %p249
      %p251 = scmp.ne.s32.totalorder %s239, %s240
      %p252 = scmp.eq.s32.totalorder %s36, 1
      %p253 = por %p251, %p252
      %p255 = scmp.ne.s32.totalorder %s240, %s254
      %p256 = scmp.eq.s32.totalorder %s36, 0
      %p257 = por %p255, %p256
      %s259 = sadd.s32 %s258, 1
      %p262 = scmp.eq.s32.totalorder %s30, 1
      %p263 = scmp.ne.s32.totalorder %s258, %s260
      %p264 = scmp.eq.s32.totalorder %s30, 0
      %p265 = por %p263, %p264
      %p266 = scmp.ne.s32.totalorder %s258, %s260
      %p267 = scmp.eq.s32.totalorder %s35, 1
      %p268 = por %p266, %p267
      %p269 = scmp.ne.s32.totalorder %s260, %s261
      %p270 = scmp.eq.s32.totalorder %s35, 0
      %p271 = por %p269, %p270
      %p272 = scmp.ne.s32.totalorder %s260, %s261
      %p273 = scmp.eq.s32.totalorder %s36, 1
      %p274 = por %p272, %p273
      %p276 = scmp.ne.s32.totalorder %s261, %s275
      %p277 = scmp.eq.s32.totalorder %s36, 0
      %p278 = por %p276, %p277
      %s280 = sadd.s32 %s279, 1
      %p283 = scmp.eq.s32.totalorder %s30, 1
      %p284 = scmp.ne.s32.totalorder %s279, %s281
      %p285 = scmp.eq.s32.totalorder %s30, 0
      %p286 = por %p284, %p285
      %p287 = scmp.ne.s32.totalorder %s279, %s281
      %p288 = scmp.eq.s32.totalorder %s35, 1
      %p289 = por %p287, %p288
      %p290 = scmp.ne.s32.totalorder %s281, %s282
      %p291 = scmp.eq.s32.totalorder %s35, 0
      %p292 = por %p290, %p291
      %p293 = scmp.ne.s32.totalorder %s281, %s282
      %p294 = scmp.eq.s32.totalorder %s36, 1
      %p295 = por %p293, %p294
      %p297 = scmp.ne.s32.totalorder %s282, %s296
      %p298 = scmp.eq.s32.totalorder %s36, 0
      %p299 = por %p297, %p298
      %s301 = sadd.s32 %s300, 1
      %p304 = scmp.eq.s32.totalorder %s30, 1
      %p305 = scmp.ne.s32.totalorder %s300, %s302
      %p306 = scmp.eq.s32.totalorder %s30, 0
      %p307 = por %p305, %p306
      %p308 = scmp.ne.s32.totalorder %s300, %s302
      %p309 = scmp.eq.s32.totalorder %s35, 1
      %p310 = por %p308, %p309
      %p311 = scmp.ne.s32.totalorder %s302, %s303
      %p312 = scmp.eq.s32.totalorder %s35, 0
      %p313 = por %p311, %p312
      %p314 = scmp.ne.s32.totalorder %s302, %s303
      %p315 = scmp.eq.s32.totalorder %s36, 1
      %p316 = por %p314, %p315
      %p318 = scmp.ne.s32.totalorder %s303, %s317
      %p319 = scmp.eq.s32.totalorder %s36, 0
      %p320 = por %p318, %p319
      %s322 = sadd.s32 %s321, 1
      %p325 = scmp.eq.s32.totalorder %s30, 1
      %p326 = scmp.ne.s32.totalorder %s321, %s323
      %p327 = scmp.eq.s32.totalorder %s30, 0
      %p328 = por %p326, %p327
      %p329 = scmp.ne.s32.totalorder %s321, %s323
      %p330 = scmp.eq.s32.totalorder %s35, 1
      %p331 = por %p329, %p330
      %p332 = scmp.ne.s32.totalorder %s323, %s324
      %p333 = scmp.eq.s32.totalorder %s35, 0
      %p334 = por %p332, %p333
      %p335 = scmp.ne.s32.totalorder %s323, %s324
      %p336 = scmp.eq.s32.totalorder %s36, 1
      %p337 = por %p335, %p336
      %p339 = scmp.ne.s32.totalorder %s324, %s338
      %p340 = scmp.eq.s32.totalorder %s36, 0
      %p341 = por %p339, %p340
      %s343 = sadd.s32 %s342, 1
      %p346 = scmp.eq.s32.totalorder %s30, 1
      %p347 = scmp.ne.s32.totalorder %s342, %s344
      %p348 = scmp.eq.s32.totalorder %s30, 0
      %p349 = por %p347, %p348
      %p350 = scmp.ne.s32.totalorder %s342, %s344
      %p351 = scmp.eq.s32.totalorder %s35, 1
      %p352 = por %p350, %p351
      %p353 = scmp.ne.s32.totalorder %s344, %s345
      %p354 = scmp.eq.s32.totalorder %s35, 0
      %p355 = por %p353, %p354
      %p356 = scmp.ne.s32.totalorder %s344, %s345
      %p357 = scmp.eq.s32.totalorder %s36, 1
      %p358 = por %p356, %p357
      %p360 = scmp.ne.s32.totalorder %s345, %s359
      %p361 = scmp.eq.s32.totalorder %s36, 0
      %p362 = por %p360, %p361
      %s364 = sadd.s32 %s363, 1
      %p367 = scmp.eq.s32.totalorder %s30, 1
      %p368 = scmp.ne.s32.totalorder %s363, %s365
      %p369 = scmp.eq.s32.totalorder %s30, 0
      %p370 = por %p368, %p369
      %p371 = scmp.ne.s32.totalorder %s363, %s365
      %p372 = scmp.eq.s32.totalorder %s35, 1
      %p373 = por %p371, %p372
      %p374 = scmp.ne.s32.totalorder %s365, %s366
      %p375 = scmp.eq.s32.totalorder %s35, 0
      %p376 = por %p374, %p375
      %p377 = scmp.ne.s32.totalorder %s365, %s366
      %p378 = scmp.eq.s32.totalorder %s36, 1
      %p379 = por %p377, %p378
      %p381 = scmp.ne.s32.totalorder %s366, %s380
      %p382 = scmp.eq.s32.totalorder %s36, 0
      %p383 = por %p381, %p382
      %s385 = sadd.s32 %s384, 1
      %p388 = scmp.eq.s32.totalorder %s30, 1
      %p389 = scmp.ne.s32.totalorder %s384, %s386
      %p390 = scmp.eq.s32.totalorder %s30, 0
      %p391 = por %p389, %p390
      %p392 = scmp.ne.s32.totalorder %s384, %s386
      %p393 = scmp.eq.s32.totalorder %s35, 1
      %p394 = por %p392, %p393
      %p395 = scmp.ne.s32.totalorder %s386, %s387
      %p396 = scmp.eq.s32.totalorder %s35, 0
      %p397 = por %p395, %p396
      %p398 = scmp.ne.s32.totalorder %s386, %s387
      %p399 = scmp.eq.s32.totalorder %s36, 1
      %p400 = por %p398, %p399
      %p402 = scmp.ne.s32.totalorder %s387, %s401
      %p403 = scmp.eq.s32.totalorder %s36, 0
      %p404 = por %p402, %p403
      %s406 = sadd.s32 %s405, 1
      %p409 = scmp.eq.s32.totalorder %s30, 1
      %p410 = scmp.ne.s32.totalorder %s405, %s407
      %p411 = scmp.eq.s32.totalorder %s30, 0
      %p412 = por %p410, %p411
      %p413 = scmp.ne.s32.totalorder %s405, %s407
      %p414 = scmp.eq.s32.totalorder %s35, 1
      %p415 = por %p413, %p414
      %p416 = scmp.ne.s32.totalorder %s407, %s408
      %p417 = scmp.eq.s32.totalorder %s35, 0
      %p418 = por %p416, %p417
      %p419 = scmp.ne.s32.totalorder %s407, %s408
      %p420 = scmp.eq.s32.totalorder %s36, 1
      %p421 = por %p419, %p420
      %p423 = scmp.ne.s32.totalorder %s408, %s422
      %p424 = scmp.eq.s32.totalorder %s36, 0
      %p425 = por %p423, %p424
      %s427 = sadd.s32 %s426, 1
      %p430 = scmp.eq.s32.totalorder %s30, 1
      %p431 = scmp.ne.s32.totalorder %s426, %s428
      %p432 = scmp.eq.s32.totalorder %s30, 0
      %p433 = por %p431, %p432
      %p434 = scmp.ne.s32.totalorder %s426, %s428
      %p435 = scmp.eq.s32.totalorder %s35, 1
      %p436 = por %p434, %p435
      %p437 = scmp.ne.s32.totalorder %s428, %s429
      %p438 = scmp.eq.s32.totalorder %s35, 0
      %p439 = por %p437, %p438
      %p440 = scmp.ne.s32.totalorder %s428, %s429
      %p441 = scmp.eq.s32.totalorder %s36, 1
      %p442 = por %p440, %p441
      %p444 = scmp.ne.s32.totalorder %s429, %s443
      %p445 = scmp.eq.s32.totalorder %s36, 0
      %p446 = por %p444, %p445
      %s448 = sadd.s32 %s447, 1
      %p451 = scmp.eq.s32.totalorder %s30, 1
      %p452 = scmp.ne.s32.totalorder %s447, %s449
      %p453 = scmp.eq.s32.totalorder %s30, 0
      %p454 = por %p452, %p453
      %p455 = scmp.ne.s32.totalorder %s447, %s449
      %p456 = scmp.eq.s32.totalorder %s35, 1
      %p457 = por %p455, %p456
      %p458 = scmp.ne.s32.totalorder %s449, %s450
      %p459 = scmp.eq.s32.totalorder %s35, 0
      %p460 = por %p458, %p459
      %p461 = scmp.ne.s32.totalorder %s449, %s450
      %p462 = scmp.eq.s32.totalorder %s36, 1
      %p463 = por %p461, %p462
      %p465 = scmp.ne.s32.totalorder %s450, %s464
      %p466 = scmp.eq.s32.totalorder %s36, 0
      %p467 = por %p465, %p466
      %s468 = ssub.s32 %s30, %s37
      %p469 = scmp.eq.s32.totalorder %s468, 0
      %s471 = sadd.s32 %s470, 1
      %s472 = scalar_select %p469, %s470, %s471
      %p475 = pneg %p469
      %p476 = scmp.eq.s32.totalorder %s30, 1
      %p477 = por %p475, %p476
      %p478 = scmp.ne.s32.totalorder %s470, %s473
      %p479 = scmp.eq.s32.totalorder %s30, 0
      %p480 = por %p478, %p479
      %p481 = scmp.ne.s32.totalorder %s470, %s473
      %p482 = scmp.eq.s32.totalorder %s35, 1
      %p483 = por %p481, %p482
      %p484 = scmp.ne.s32.totalorder %s473, %s474
      %p485 = scmp.eq.s32.totalorder %s35, 0
      %p486 = por %p484, %p485
      %p487 = scmp.ne.s32.totalorder %s473, %s474
      %p488 = scmp.eq.s32.totalorder %s36, 1
      %p489 = por %p487, %p488
      %p491 = scmp.ne.s32.totalorder %s474, %s490
      %p492 = scmp.eq.s32.totalorder %s36, 0
      %p493 = por %p491, %p492
      %p494 = scmp.le.s32.totalorder 1, %s30
      %p495 = scmp.lt.s32.totalorder %s30, 3
      %p496 = pnand %p494, %p495
      %p497 = pneg %p496
      // Predicated region
      $region9: #{transformer_forward.1} parent=5 // pred_check
        _
      $region10: #{transformer_forward.1} parent=5 // pred_check_branch
        %499 = sbr.rel (%p496) target = $region12
      $region11: #{transformer_forward.1} parent=5 // pred_region
        %s500 = ssub.s32 %s30, 1
        // Predicated region
        $region13: #{transformer_forward.1} parent=11 // pred_check
          %p501 = pneg %p103
        $region14: #{transformer_forward.1} parent=11 // pred_check_branch
          %503 = sbr.rel (%p501) target = $region16
        $region15: #{transformer_forward.1} parent=11 // pred_region
          _
        $region16: #{transformer_forward.1} parent=11 // pred_fallthru
          _
        // Predicated region
        $region17: #{transformer_forward.1} parent=11 // pred_check
          %p504 = pneg %p124
        $region18: #{transformer_forward.1} parent=11 // pred_check_branch
          %506 = sbr.rel (%p504) target = $region20
        $region19: #{transformer_forward.1} parent=11 // pred_region
          _
        $region20: #{transformer_forward.1} parent=11 // pred_fallthru
          _
        // Predicated region
        $region21: #{transformer_forward.1} parent=11 // pred_check
          %p507 = pneg %p145
        $region22: #{transformer_forward.1} parent=11 // pred_check_branch
          %509 = sbr.rel (%p507) target = $region24
        $region23: #{transformer_forward.1} parent=11 // pred_region
          _
        $region24: #{transformer_forward.1} parent=11 // pred_fallthru
          _
        // Predicated region
        $region25: #{transformer_forward.1} parent=11 // pred_check
          %p510 = pneg %p166
        $region26: #{transformer_forward.1} parent=11 // pred_check_branch
          %512 = sbr.rel (%p510) target = $region28
        $region27: #{transformer_forward.1} parent=11 // pred_region
          _
        $region28: #{transformer_forward.1} parent=11 // pred_fallthru
          _
        // Predicated region
        $region29: #{transformer_forward.1} parent=11 // pred_check
          %p513 = pneg %p187
        $region30: #{transformer_forward.1} parent=11 // pred_check_branch
          %515 = sbr.rel (%p513) target = $region32
        $region31: #{transformer_forward.1} parent=11 // pred_region
          _
        $region32: #{transformer_forward.1} parent=11 // pred_fallthru
          _
        // Predicated region
        $region33: #{transformer_forward.1} parent=11 // pred_check
          %p516 = pneg %p208
        $region34: #{transformer_forward.1} parent=11 // pred_check_branch
          %518 = sbr.rel (%p516) target = $region36
        $region35: #{transformer_forward.1} parent=11 // pred_region
          _
        $region36: #{transformer_forward.1} parent=11 // pred_fallthru
          _
        // Predicated region
        $region37: #{transformer_forward.1} parent=11 // pred_check
          %p519 = pneg %p229
        $region38: #{transformer_forward.1} parent=11 // pred_check_branch
          %521 = sbr.rel (%p519) target = $region40
        $region39: #{transformer_forward.1} parent=11 // pred_region
          _
        $region40: #{transformer_forward.1} parent=11 // pred_fallthru
          _
        // Predicated region
        $region41: #{transformer_forward.1} parent=11 // pred_check
          %p522 = pneg %p250
        $region42: #{transformer_forward.1} parent=11 // pred_check_branch
          %524 = sbr.rel (%p522) target = $region44
        $region43: #{transformer_forward.1} parent=11 // pred_region
          _
        $region44: #{transformer_forward.1} parent=11 // pred_fallthru
          _
        // Predicated region
        $region45: #{transformer_forward.1} parent=11 // pred_check
          %p525 = pneg %p271
        $region46: #{transformer_forward.1} parent=11 // pred_check_branch
          %527 = sbr.rel (%p525) target = $region48
        $region47: #{transformer_forward.1} parent=11 // pred_region
          _
        $region48: #{transformer_forward.1} parent=11 // pred_fallthru
          _
        // Predicated region
        $region49: #{transformer_forward.1} parent=11 // pred_check
          %p528 = pneg %p292
        $region50: #{transformer_forward.1} parent=11 // pred_check_branch
          %530 = sbr.rel (%p528) target = $region52
        $region51: #{transformer_forward.1} parent=11 // pred_region
          _
        $region52: #{transformer_forward.1} parent=11 // pred_fallthru
          _
        // Predicated region
        $region53: #{transformer_forward.1} parent=11 // pred_check
          %p531 = pneg %p313
        $region54: #{transformer_forward.1} parent=11 // pred_check_branch
          %533 = sbr.rel (%p531) target = $region56
        $region55: #{transformer_forward.1} parent=11 // pred_region
          _
        $region56: #{transformer_forward.1} parent=11 // pred_fallthru
          _
        // Predicated region
        $region57: #{transformer_forward.1} parent=11 // pred_check
          %p534 = pneg %p334
        $region58: #{transformer_forward.1} parent=11 // pred_check_branch
          %536 = sbr.rel (%p534) target = $region60
        $region59: #{transformer_forward.1} parent=11 // pred_region
          _
        $region60: #{transformer_forward.1} parent=11 // pred_fallthru
          _
        // Predicated region
        $region61: #{transformer_forward.1} parent=11 // pred_check
          %p537 = pneg %p355
        $region62: #{transformer_forward.1} parent=11 // pred_check_branch
          %539 = sbr.rel (%p537) target = $region64
        $region63: #{transformer_forward.1} parent=11 // pred_region
          _
        $region64: #{transformer_forward.1} parent=11 // pred_fallthru
          _
        // Predicated region
        $region65: #{transformer_forward.1} parent=11 // pred_check
          %p540 = pneg %p376
        $region66: #{transformer_forward.1} parent=11 // pred_check_branch
          %542 = sbr.rel (%p540) target = $region68
        $region67: #{transformer_forward.1} parent=11 // pred_region
          _
        $region68: #{transformer_forward.1} parent=11 // pred_fallthru
          _
        // Predicated region
        $region69: #{transformer_forward.1} parent=11 // pred_check
          %p543 = pneg %p397
        $region70: #{transformer_forward.1} parent=11 // pred_check_branch
          %545 = sbr.rel (%p543) target = $region72
        $region71: #{transformer_forward.1} parent=11 // pred_region
          _
        $region72: #{transformer_forward.1} parent=11 // pred_fallthru
          _
        // Predicated region
        $region73: #{transformer_forward.1} parent=11 // pred_check
          %p546 = pneg %p418
        $region74: #{transformer_forward.1} parent=11 // pred_check_branch
          %548 = sbr.rel (%p546) target = $region76
        $region75: #{transformer_forward.1} parent=11 // pred_region
          _
        $region76: #{transformer_forward.1} parent=11 // pred_fallthru
          _
        // Predicated region
        $region77: #{transformer_forward.1} parent=11 // pred_check
          %p549 = pneg %p439
        $region78: #{transformer_forward.1} parent=11 // pred_check_branch
          %551 = sbr.rel (%p549) target = $region80
        $region79: #{transformer_forward.1} parent=11 // pred_region
          %s553 = ssub.s32 4096, 4096
          %554 = vsyncadd [#allocation3], %s553
          %s555 = sshll.u32 [#allocation2], 4
          %s556 = int_to_ptr.vmem [resolvable:$true] %s555
          %561 = dma.hbm_to_vmem [thread:$0]  %s18, 4096, %s556, [#allocation3], 64, 64, 4
        $region80: #{transformer_forward.1} parent=11 // pred_fallthru
          _
        // Predicated region
        $region81: #{transformer_forward.1} parent=11 // pred_check
          %p562 = pneg %p460
        $region82: #{transformer_forward.1} parent=11 // pred_check_branch
          %564 = sbr.rel (%p562) target = $region84
        $region83: #{transformer_forward.1} parent=11 // pred_region
          _
        $region84: #{transformer_forward.1} parent=11 // pred_fallthru
          _
      $region12: #{transformer_forward.1} parent=5 // pred_fallthru
        _
      %p565 = scmp.lt.s32.totalorder %s30, 2
      // Predicated region
      $region85: #{transformer_forward.1} parent=5 // pred_check
        %p566 = pneg %p565
      $region86: #{transformer_forward.1} parent=5 // pred_check_branch
        %568 = sbr.rel (%p566) target = $region88
      $region87: #{transformer_forward.1} parent=5 // pred_region
        // Predicated region
        $region89: #{transformer_forward.1} parent=87 // pred_check
          %p569 = pneg %p50
        $region90: #{transformer_forward.1} parent=87 // pred_check_branch
          %571 = sbr.rel (%p569) target = $region92
        $region91: #{transformer_forward.1} parent=87 // pred_region
          %p572 = scmp.lt.s32.totalorder %s30, 1
          %s573 = scalar_select %p572, %s30, 1
          %s574 = smul.addr %s573, 2
          %s575 = smul.addr %s574, 8
          %s576 = scalar_lea.vmem %s0, %s575
        $region92: #{transformer_forward.1} parent=87 // pred_fallthru
          _
        // Predicated region
        $region93: #{transformer_forward.1} parent=87 // pred_check
          %p577 = pneg %p76
        $region94: #{transformer_forward.1} parent=87 // pred_check_branch
          %579 = sbr.rel (%p577) target = $region96
        $region95: #{transformer_forward.1} parent=87 // pred_region
          %p580 = scmp.lt.s32.totalorder %s30, 1
          %s581 = scalar_select %p580, %s30, 1
          %s582 = smul.addr %s581, 2
          %s583 = smul.addr %s582, 8
          %s584 = scalar_lea.vmem %s1, %s583
        $region96: #{transformer_forward.1} parent=87 // pred_fallthru
          _
      $region88: #{transformer_forward.1} parent=5 // pred_fallthru
        _
      %p585 = scmp.le.s32.totalorder 1, %s30
      %p586 = scmp.lt.s32.totalorder %s30, 3
      %p587 = pnand %p585, %p586
      %p588 = pneg %p587
      // Predicated region
      $region97: #{transformer_forward.1} parent=5 // pred_check
        _
      $region98: #{transformer_forward.1} parent=5 // pred_check_branch
        %590 = sbr.rel (%p587) target = $region100
      $region99: #{transformer_forward.1} parent=5 // pred_region
        %s591 = ssub.s32 %s30, 1
        // Predicated region
        $region101: #{transformer_forward.1} parent=99 // pred_check
          %p592 = pneg %p439
        $region102: #{transformer_forward.1} parent=99 // pred_check_branch
          %594 = sbr.rel (%p592) target = $region104
        $region103: #{transformer_forward.1} parent=99 // pred_region
          %595 = dma.done [#allocation3], 4096
        $region104: #{transformer_forward.1} parent=99 // pred_fallthru
          _
        %p596 = scmp.lt.s32.totalorder %s35, 1
        %s597 = scalar_select %p596, %s35, 1
        %s598 = smul.addr %s597, 2
        %s599 = smul.addr %s598, 8
        %s600 = scalar_lea.vmem %s0, %s599
        %p601 = pneg %p56
        %p602 = pneg %p53
        %p603 = scmp.lt.s32.totalorder %s35, 1
        %s604 = scalar_select %p603, %s35, 1
        %s605 = smul.addr %s604, 2
        %s606 = smul.addr %s605, 8
        %s607 = scalar_lea.vmem %s1, %s606
        %p608 = pneg %p82
        %p609 = pneg %p79
        %p610 = pneg %p103
        %p611 = pneg %p100
        %p612 = pneg %p124
        %p613 = pneg %p121
        %p614 = pneg %p145
        %p615 = pneg %p142
        %p616 = pneg %p166
        %p617 = pneg %p163
        %p618 = pneg %p187
        %p619 = pneg %p184
        %p620 = pneg %p208
        %p621 = pneg %p205
        %p622 = pneg %p229
        %p623 = pneg %p226
        %p624 = pneg %p250
        %p625 = pneg %p247
        %p626 = pneg %p271
        %p627 = pneg %p268
        %p628 = pneg %p292
        %p629 = pneg %p289
        %p630 = pneg %p313
        %p631 = pneg %p310
        %p632 = pneg %p334
        %p633 = pneg %p331
        %p634 = pneg %p355
        %p635 = pneg %p352
        %p636 = pneg %p376
        %p637 = pneg %p373
        %p638 = pneg %p397
        %p639 = pneg %p394
        %p640 = pneg %p418
        %p641 = pneg %p415
        %p642 = pneg %p439
        %p643 = pneg %p436
        %p644 = pneg %p460
        %p645 = pneg %p457
        %p646 = pneg %p486
        %p647 = pneg %p483
        %s648 = sand.u32 %s473, 1
        %s649 = scalar_lea.sflag [#allocation4], %s648
        %s650 = sand.u32 %s473, 1
        %s651 = scalar_lea.vmem [#allocation5], %s650
        %p652 = scmp.lt.s32.totalorder %s35, 1
        %s653 = scalar_select %p652, %s35, 1
        %s654 = smul.addr %s653, 2
        %s655 = smul.addr %s654, 8
        %s656 = scalar_lea.vmem %s0, %s655
        %p657 = scmp.lt.s32.totalorder %s35, 1
        %s658 = scalar_select %p657, %s35, 1
        %s659 = smul.addr %s658, 2
        %s660 = smul.addr %s659, 8
        %s661 = scalar_lea.vmem %s1, %s660
        %v663 = vld [vmem:[%s656] sm:$0xff]
        %v664 = vld [vmem:[%s656 + $0x8] sm:$0xff]
        %v665 = vrot.slane %v663, 7
        %v666 = vrot.slane %v664, 7
        %v667 = vlaneseq
        %v668 = vshrl.u32 %v667, 7
        %vm669 = vcmp.lt.s32.totalorder %v668, 1
        %v670 = vsel %vm669, %v665, %v666
        %v671 = vsel %vm669, %v666, %v665
        %v672 = vrot.slane %v663, 1
        %v673 = vrot.slane %v664, 1
        %vm674 = vcmp.lt.s32.totalorder %v668, 7
        %v675 = vsel %vm674, %v672, %v673
        %v676 = vsel %vm674, %v673, %v672
        %v677 = vpack.c.bf16 %v670, %v671
        %v678 = vld [vmem:[%s2] sm:$0x3]
        %v679 = vpack.c.bf16 %v664, %v663
        %s680 = scalar_lea.vmem %s2, 2
        %v681 = vld [vmem:[%s680] sm:$0x3]
        %vm682 = vcmask 31744
        %v684 = vsel %vm682, %v679, 0
        %vm686 = vcmask 1041408
        %v688 = vsel %vm686, %v681, 0
        %690 = vmatprep.subr.bf16.mxu0 0
        %691 = vmatpush1.bf16.msra.mxu0 %v688
        %692 = vmatprep.subr.bf16.mxu0 0
        %693 = vmatpush1.bf16.msra.mxu0 0
        %694 = vmatprep.subr.bf16.mxu0 0
        %695 = vmatpush1.bf16.msra.mxu0 0
        %696 = vmatprep.subr.bf16.mxu0 0
        %697 = vmatpush1.bf16.msra.mxu0 0
        %698 = vmatprep.subr.bf16.mxu0 0
        %699 = vmatpush1.bf16.msra.mxu0 0
        %700 = vmatprep.subr.bf16.mxu0 0
        %701 = vmatpush1.bf16.msra.mxu0 0
        %702 = vmatprep.subr.bf16.mxu0 0
        %703 = vmatpush1.bf16.msra.mxu0 0
        %704 = vmatprep.subr.bf16.mxu0 0
        %705 = vmatpush1.bf16.msra.mxu0 0
        %706 = vmatprep.subr.bf16.mxu0 0
        %707 = vmatpush1.bf16.msra.mxu0 0
        %708 = vmatprep.subr.bf16.mxu0 0
        %709 = vmatpush1.bf16.msra.mxu0 0
        %710 = vmatprep.subr.bf16.mxu0 0
        %711 = vmatpush1.bf16.msra.mxu0 0
        %712 = vmatprep.subr.bf16.mxu0 0
        %713 = vmatpush1.bf16.msra.mxu0 0
        %714 = vmatprep.subr.bf16.mxu0 0
        %715 = vmatpush1.bf16.msra.mxu0 0
        %716 = vmatprep.subr.bf16.mxu0 0
        %717 = vmatpush1.bf16.msra.mxu0 0
        %718 = vmatprep.subr.bf16.mxu0 0
        %719 = vmatpush1.bf16.msra.mxu0 0
        %720 = vmatprep.subr.bf16.mxu0 0
        %721 = vmatpush1.bf16.msra.mxu0 0
        %722 = vmatprep.mubr.bf16.mxu0 0
        %723 = vmatmul.mubr.bf16.gmra.mrb[0].mxu0 %v684
        %v724 = vpop.f32.mrb[0].mxu0
        %v725 = vadd.f32 0.0, %v724
        %v726 = vpop.f32.mrb[0].mxu0
        %v727 = vpop.f32.mrb[0].mxu0
        %v728 = vadd.f32 0.0, %v727
        %v729 = vpop.f32.mrb[0].mxu0
        %730 = vdwg.mxu0
        %v732 = vsel %vm682, %v677, 0
        %v735 = vsel %vm686, %v678, 0
        %737 = vmatprep.subr.bf16.mxu0 0
        %738 = vmatpush1.bf16.msra.mxu0 %v735
        %739 = vmatprep.subr.bf16.mxu0 0
        %740 = vmatpush1.bf16.msra.mxu0 0
        %741 = vmatprep.subr.bf16.mxu0 0
        %742 = vmatpush1.bf16.msra.mxu0 0
        %743 = vmatprep.subr.bf16.mxu0 0
        %744 = vmatpush1.bf16.msra.mxu0 0
        %745 = vmatprep.subr.bf16.mxu0 0
        %746 = vmatpush1.bf16.msra.mxu0 0
        %747 = vmatprep.subr.bf16.mxu0 0
        %748 = vmatpush1.bf16.msra.mxu0 0
        %749 = vmatprep.subr.bf16.mxu0 0
        %750 = vmatpush1.bf16.msra.mxu0 0
        %751 = vmatprep.subr.bf16.mxu0 0
        %752 = vmatpush1.bf16.msra.mxu0 0
        %753 = vmatprep.subr.bf16.mxu0 0
        %754 = vmatpush1.bf16.msra.mxu0 0
        %755 = vmatprep.subr.bf16.mxu0 0
        %756 = vmatpush1.bf16.msra.mxu0 0
        %757 = vmatprep.subr.bf16.mxu0 0
        %758 = vmatpush1.bf16.msra.mxu0 0
        %759 = vmatprep.subr.bf16.mxu0 0
        %760 = vmatpush1.bf16.msra.mxu0 0
        %761 = vmatprep.subr.bf16.mxu0 0
        %762 = vmatpush1.bf16.msra.mxu0 0
        %763 = vmatprep.subr.bf16.mxu0 0
        %764 = vmatpush1.bf16.msra.mxu0 0
        %765 = vmatprep.subr.bf16.mxu0 0
        %766 = vmatpush1.bf16.msra.mxu0 0
        %767 = vmatprep.subr.bf16.mxu0 0
        %768 = vmatpush1.bf16.msra.mxu0 0
        %769 = vmatprep.mubr.bf16.mxu0 0
        %770 = vmatmul.mubr.bf16.gmra.mrb[0].mxu0 %v732
        %v771 = vpop.f32.mrb[0].mxu0
        %v772 = vadd.f32 %v725, %v771
        %v773 = vpop.f32.mrb[0].mxu0
        %v774 = vpop.f32.mrb[0].mxu0
        %v775 = vadd.f32 %v728, %v774
        %v776 = vpop.f32.mrb[0].mxu0
        %777 = vdwg.mxu0
        %v778 = vpack.c.bf16 %v676, %v675
        %s779 = scalar_lea.vmem %s2, 4
        %v780 = vld [vmem:[%s779] sm:$0x3]
        %v782 = vsel %vm682, %v778, 0
        %v785 = vsel %vm686, %v780, 0
        %787 = vmatprep.subr.bf16.mxu0 0
        %788 = vmatpush1.bf16.msra.mxu0 %v785
        %789 = vmatprep.subr.bf16.mxu0 0
        %790 = vmatpush1.bf16.msra.mxu0 0
        %791 = vmatprep.subr.bf16.mxu0 0
        %792 = vmatpush1.bf16.msra.mxu0 0
        %793 = vmatprep.subr.bf16.mxu0 0
        %794 = vmatpush1.bf16.msra.mxu0 0
        %795 = vmatprep.subr.bf16.mxu0 0
        %796 = vmatpush1.bf16.msra.mxu0 0
        %797 = vmatprep.subr.bf16.mxu0 0
        %798 = vmatpush1.bf16.msra.mxu0 0
        %799 = vmatprep.subr.bf16.mxu0 0
        %800 = vmatpush1.bf16.msra.mxu0 0
        %801 = vmatprep.subr.bf16.mxu0 0
        %802 = vmatpush1.bf16.msra.mxu0 0
        %803 = vmatprep.subr.bf16.mxu0 0
        %804 = vmatpush1.bf16.msra.mxu0 0
        %805 = vmatprep.subr.bf16.mxu0 0
        %806 = vmatpush1.bf16.msra.mxu0 0
        %807 = vmatprep.subr.bf16.mxu0 0
        %808 = vmatpush1.bf16.msra.mxu0 0
        %809 = vmatprep.subr.bf16.mxu0 0
        %810 = vmatpush1.bf16.msra.mxu0 0
        %811 = vmatprep.subr.bf16.mxu0 0
        %812 = vmatpush1.bf16.msra.mxu0 0
        %813 = vmatprep.subr.bf16.mxu0 0
        %814 = vmatpush1.bf16.msra.mxu0 0
        %815 = vmatprep.subr.bf16.mxu0 0
        %816 = vmatpush1.bf16.msra.mxu0 0
        %817 = vmatprep.subr.bf16.mxu0 0
        %818 = vmatpush1.bf16.msra.mxu0 0
        %819 = vmatprep.mubr.bf16.mxu0 0
        %820 = vmatmul.mubr.bf16.gmra.mrb[0].mxu0 %v782
        %v821 = vpop.f32.mrb[0].mxu0
        %v822 = vadd.f32 0.0, %v821
        %v823 = vpop.f32.mrb[0].mxu0
        %v824 = vpop.f32.mrb[0].mxu0
        %v825 = vadd.f32 0.0, %v824
        %v826 = vpop.f32.mrb[0].mxu0
        %827 = vdwg.mxu0
        %v828 = vadd.f32 %v772, %v822
        %v829 = vadd.f32 %v775, %v825
        %v830 = vld [vmem:[%s3] sm:$0xff]
        %v831 = vld [vmem:[%s3 + $0x8] sm:$0xff]
        %v832 = vadd.f32 %v828, %v830
        %v833 = vadd.f32 %v829, %v831
        %v834 = vpack.c.bf16 %v833, %v832
        %v835 = vld [vmem:[%s4] sm:$0xf]
        %v836 = vld [vmem:[%s4 + $0x4] sm:$0xf]
        %v837 = vld [vmem:[%s4 + $0x8] sm:$0xf]
        %v838 = vld [vmem:[%s4 + $0xc] sm:$0xf]
        %v839 = vld [vmem:[%s5] sm:$0x1]
        %v841 = vlaneseq
        %v842 = vshrl.u32 %v841, 7
        %v843 = vsub.s32 0, %v842
        %v844 = vrot.slane %v839, %v843
        %v850 = vunpack.c.l.b16 %v835
        %v851 = vunpack.c.l.b16 %v836
        %v852 = vunpack.c.l.b16 %v837
        %v853 = vunpack.c.l.b16 %v838
        %v854 = vpack.c.b16 %v851, %v850
        %v855 = vpack.c.b16 %v853, %v852
        %vm858 = vcmask 261120
        %v860 = vsel %vm858, %v834, 0
        %862 = vmatprep.subr.bf16.mxu0 0
        %863 = vmatpush1.bf16.msra.mxu0 %v854
        %864 = vmatprep.subr.bf16.mxu0 0
        %865 = vmatpush1.bf16.msra.mxu0 %v855
        %866 = vmatprep.subr.bf16.mxu0 0
        %867 = vmatpush1.bf16.msra.mxu0 0
        %868 = vmatprep.subr.bf16.mxu0 0
        %869 = vmatpush1.bf16.msra.mxu0 0
        %870 = vmatprep.subr.bf16.mxu0 0
        %871 = vmatpush1.bf16.msra.mxu0 0
        %872 = vmatprep.subr.bf16.mxu0 0
        %873 = vmatpush1.bf16.msra.mxu0 0
        %874 = vmatprep.subr.bf16.mxu0 0
        %875 = vmatpush1.bf16.msra.mxu0 0
        %876 = vmatprep.subr.bf16.mxu0 0
        %877 = vmatpush1.bf16.msra.mxu0 0
        %878 = vmatprep.subr.bf16.mxu0 0
        %879 = vmatpush1.bf16.msra.mxu0 0
        %880 = vmatprep.subr.bf16.mxu0 0
        %881 = vmatpush1.bf16.msra.mxu0 0
        %882 = vmatprep.subr.bf16.mxu0 0
        %883 = vmatpush1.bf16.msra.mxu0 0
        %884 = vmatprep.subr.bf16.mxu0 0
        %885 = vmatpush1.bf16.msra.mxu0 0
        %886 = vmatprep.subr.bf16.mxu0 0
        %887 = vmatpush1.bf16.msra.mxu0 0
        %888 = vmatprep.subr.bf16.mxu0 0
        %889 = vmatpush1.bf16.msra.mxu0 0
        %890 = vmatprep.subr.bf16.mxu0 0
        %891 = vmatpush1.bf16.msra.mxu0 0
        %892 = vmatprep.subr.bf16.mxu0 0
        %893 = vmatpush1.bf16.msra.mxu0 0
        %894 = vmatprep.mubr.bf16.mxu0 0
        %895 = vmatmul.mubr.bf16.gmra.mrb[0].mxu0 %v860
        %v896 = vpop.f32.mrb[0].mxu0
        %v897 = vadd.f32 %v844, %v896
        %v898 = vpop.f32.mrb[0].mxu0
        %v899 = vpop.f32.mrb[0].mxu0
        %v900 = vadd.f32 %v844, %v899
        %v901 = vpop.f32.mrb[0].mxu0
        %902 = vdwg.mxu0
        %905 = vrot.lane.b32.xlu0 %v897, 96
        %v906 = vpop.permute.xlu0 %905
        %907 = vrot.lane.b32.xlu0 %v900, 96
        %v908 = vpop.permute.xlu0 %907
        %vm909 = vcmask 64512
        %v910 = vsel %vm909, %v897, 0
        %v912 = vsel %vm909, %v900, 0
        %v914 = vsel %vm909, %v906, 0
        %v916 = vsel %vm909, %v908, 0
        %918 = vmatprep.subr.mxu0 0.0
        %919 = vmatpush1.xpose.msra.mxu0 %v914
        %920 = vmatprep.subr.mxu0 0.0
        %921 = vmatpush1.xpose.msra.mxu0 %v916
        %922 = vmatprep.subr.mxu0 0.0
        %923 = vmatpush1.xpose.msra.mxu0 0.0
        %924 = vmatprep.subr.mxu0 0.0
        %925 = vmatpush1.xpose.msra.mxu0 0.0
        %926 = vmatprep.subr.mxu0 0.0
        %927 = vmatpush1.xpose.msra.mxu0 0.0
        %928 = vmatprep.subr.mxu0 0.0
        %929 = vmatpush1.xpose.msra.mxu0 0.0
        %930 = vmatprep.subr.mxu0 0.0
        %931 = vmatpush1.xpose.msra.mxu0 0.0
        %932 = vmatprep.subr.mxu0 0.0
        %933 = vmatpush1.xpose.msra.mxu0 0.0
        %934 = vmatprep.subr.mxu0 0.0
        %935 = vmatpush1.xpose.msra.mxu0 0.0
        %936 = vmatprep.subr.mxu0 0.0
        %937 = vmatpush1.xpose.msra.mxu0 0.0
        %938 = vmatprep.subr.mxu0 0.0
        %939 = vmatpush1.xpose.msra.mxu0 0.0
        %940 = vmatprep.subr.mxu0 0.0
        %941 = vmatpush1.xpose.msra.mxu0 0.0
        %942 = vmatprep.subr.mxu0 0.0
        %943 = vmatpush1.xpose.msra.mxu0 0.0
        %944 = vmatprep.subr.mxu0 0.0
        %945 = vmatpush1.xpose.msra.mxu0 0.0
        %946 = vmatprep.subr.mxu0 0.0
        %947 = vmatpush1.xpose.msra.mxu0 0.0
        %948 = vmatprep.subr.mxu0 0.0
        %949 = vmatpush1.xpose.msra.mxu0 0.0
        %950 = vmatprep.subr.mxu0 0.0
        %951 = vmatpush1.xpose.msra.mxu0 0.0
        %952 = vmatprep.subr.mxu0 0.0
        %953 = vmatpush1.xpose.msra.mxu0 0.0
        %954 = vmatprep.subr.mxu0 0.0
        %955 = vmatpush1.xpose.msra.mxu0 0.0
        %956 = vmatprep.subr.mxu0 0.0
        %957 = vmatpush1.xpose.msra.mxu0 0.0
        %958 = vmatprep.subr.mxu0 0.0
        %959 = vmatpush1.xpose.msra.mxu0 0.0
        %960 = vmatprep.subr.mxu0 0.0
        %961 = vmatpush1.xpose.msra.mxu0 0.0
        %962 = vmatprep.subr.mxu0 0.0
        %963 = vmatpush1.xpose.msra.mxu0 0.0
        %964 = vmatprep.subr.mxu0 0.0
        %965 = vmatpush1.xpose.msra.mxu0 0.0
        %966 = vmatprep.subr.mxu0 0.0
        %967 = vmatpush1.xpose.msra.mxu0 0.0
        %968 = vmatprep.subr.mxu0 0.0
        %969 = vmatpush1.xpose.msra.mxu0 0.0
        %970 = vmatprep.subr.mxu0 0.0
        %971 = vmatpush1.xpose.msra.mxu0 0.0
        %972 = vmatprep.subr.mxu0 0.0
        %973 = vmatpush1.xpose.msra.mxu0 0.0
        %974 = vmatprep.subr.mxu0 0.0
        %975 = vmatpush1.xpose.msra.mxu0 0.0
        %976 = vmatprep.subr.mxu0 0.0
        %977 = vmatpush1.xpose.msra.mxu0 0.0
        %978 = vmatprep.subr.mxu0 0.0
        %979 = vmatpush1.xpose.msra.mxu0 0.0
        %980 = vmatprep.subr.mxu0 0.0
        %981 = vmatpush1.xpose.msra.mxu0 0.0
        %982 = vmatprep.mubr.f32.mxu0 0.0
        %983 = vmatmul.mubr.f32.gmra.mrb[0].mxu0 %v910
        %v984 = vpop.f32.mrb[0].mxu0
        %v985 = vadd.f32 0.0, %v984
        %v986 = vpop.f32.mrb[0].mxu0
        %987 = vmatprep.mubr.f32.mxu0 0.0
        %988 = vmatmul.mubr.f32.gmra.mrb[0].mxu0 %v912
        %v989 = vpop.f32.mrb[0].mxu0
        %v990 = vadd.f32 0.0, %v989
        %v991 = vpop.f32.mrb[0].mxu0
        %992 = vdwg.mxu0
        %vm993 = vcmask 130048
        %v994 = vsel %vm993, %v985, -inf
        %995 = vmax.xlane.f32.xlu0 %v994
        %v996 = vpop.xlane.xlu0 %995
        %v997 = vsel %vm993, %v990, -inf
        %998 = vmax.xlane.f32.xlu0 %v997
        %v999 = vpop.xlane.xlu0 %998
        %v1000 = vsub.f32 %v985, %v996
        %v1001 = vsub.f32 %v990, %v999
        %v1002 = vmul.f32 %v1000, 1.442695
        %v1003 = vpow.pop %v1002
        %v1004 = vmul.f32 %v1001, 1.442695
        %v1005 = vpow.pop %v1004
        %v1006 = vsel %vm993, %v1003, 0.0
        %1007 = vadd.xlane.f32.xlu0 %v1006
        %v1008 = vpop.xlane.xlu0 %1007
        %v1009 = vsel %vm993, %v1005, 0.0
        %1010 = vadd.xlane.f32.xlu0 %v1009
        %v1011 = vpop.xlane.xlu0 %1010
        %v1012 = vrcp.pop %v1008
        %v1013 = vrcp.pop %v1011
        %v1014 = vmul.f32 %v1003, %v1012
        %v1015 = vmul.f32 %v1005, %v1013
        %1016 = vrot.lane.b32.xlu0 %v897, 64
        %v1017 = vpop.permute.xlu0 %1016
        %1018 = vrot.lane.b32.xlu0 %v900, 64
        %v1019 = vpop.permute.xlu0 %1018
        %v1023 = vsel %vm993, %v1014, 0
        %v1026 = vsel %vm993, %v1015, 0
        %1028 = vmatprep.subr.mxu0 0.0
        %1029 = vmatpush1.msra.mxu0 %v1017
        %1030 = vmatprep.subr.mxu0 0.0
        %1031 = vmatpush1.msra.mxu0 %v1019
        %1032 = vmatprep.subr.mxu0 0.0
        %1033 = vmatpush1.msra.mxu0 0.0
        %1034 = vmatprep.subr.mxu0 0.0
        %1035 = vmatpush1.msra.mxu0 0.0
        %1036 = vmatprep.subr.mxu0 0.0
        %1037 = vmatpush1.msra.mxu0 0.0
        %1038 = vmatprep.subr.mxu0 0.0
        %1039 = vmatpush1.msra.mxu0 0.0
        %1040 = vmatprep.subr.mxu0 0.0
        %1041 = vmatpush1.msra.mxu0 0.0
        %1042 = vmatprep.subr.mxu0 0.0
        %1043 = vmatpush1.msra.mxu0 0.0
        %1044 = vmatprep.subr.mxu0 0.0
        %1045 = vmatpush1.msra.mxu0 0.0
        %1046 = vmatprep.subr.mxu0 0.0
        %1047 = vmatpush1.msra.mxu0 0.0
        %1048 = vmatprep.subr.mxu0 0.0
        %1049 = vmatpush1.msra.mxu0 0.0
        %1050 = vmatprep.subr.mxu0 0.0
        %1051 = vmatpush1.msra.mxu0 0.0
        %1052 = vmatprep.subr.mxu0 0.0
        %1053 = vmatpush1.msra.mxu0 0.0
        %1054 = vmatprep.subr.mxu0 0.0
        %1055 = vmatpush1.msra.mxu0 0.0
        %1056 = vmatprep.subr.mxu0 0.0
        %1057 = vmatpush1.msra.mxu0 0.0
        %1058 = vmatprep.subr.mxu0 0.0
        %1059 = vmatpush1.msra.mxu0 0.0
        %1060 = vmatprep.subr.mxu0 0.0
        %1061 = vmatpush1.msra.mxu0 0.0
        %1062 = vmatprep.subr.mxu0 0.0
        %1063 = vmatpush1.msra.mxu0 0.0
        %1064 = vmatprep.subr.mxu0 0.0
        %1065 = vmatpush1.msra.mxu0 0.0
        %1066 = vmatprep.subr.mxu0 0.0
        %1067 = vmatpush1.msra.mxu0 0.0
        %1068 = vmatprep.subr.mxu0 0.0
        %1069 = vmatpush1.msra.mxu0 0.0
        %1070 = vmatprep.subr.mxu0 0.0
        %1071 = vmatpush1.msra.mxu0 0.0
        %1072 = vmatprep.subr.mxu0 0.0
        %1073 = vmatpush1.msra.mxu0 0.0
        %1074 = vmatprep.subr.mxu0 0.0
        %1075 = vmatpush1.msra.mxu0 0.0
        %1076 = vmatprep.subr.mxu0 0.0
        %1077 = vmatpush1.msra.mxu0 0.0
        %1078 = vmatprep.subr.mxu0 0.0
        %1079 = vmatpush1.msra.mxu0 0.0
        %1080 = vmatprep.subr.mxu0 0.0
        %1081 = vmatpush1.msra.mxu0 0.0
        %1082 = vmatprep.subr.mxu0 0.0
        %1083 = vmatpush1.msra.mxu0 0.0
        %1084 = vmatprep.subr.mxu0 0.0
        %1085 = vmatpush1.msra.mxu0 0.0
        %1086 = vmatprep.subr.mxu0 0.0
        %1087 = vmatpush1.msra.mxu0 0.0
        %1088 = vmatprep.subr.mxu0 0.0
        %1089 = vmatpush1.msra.mxu0 0.0
        %1090 = vmatprep.subr.mxu0 0.0
        %1091 = vmatpush1.msra.mxu0 0.0
        %1092 = vmatprep.mubr.f32.mxu0 0.0
        %1093 = vmatmul.mubr.f32.gmra.mrb[0].mxu0 %v1023
        %v1094 = vpop.f32.mrb[0].mxu0
        %v1095 = vadd.f32 0.0, %v1094
        %v1096 = vpop.f32.mrb[0].mxu0
        %1097 = vmatprep.mubr.f32.mxu0 0.0
        %1098 = vmatmul.mubr.f32.gmra.mrb[0].mxu0 %v1026
        %v1099 = vpop.f32.mrb[0].mxu0
        %v1100 = vadd.f32 0.0, %v1099
        %v1101 = vpop.f32.mrb[0].mxu0
        %1102 = vdwg.mxu0
        %v1103 = vpack.c.bf16 %v1100, %v1095
        %v1104 = vld [vmem:[%s6] sm:$0xf]
        %1105 = vrot.lane.b32.xlu0 %v897, 120
        %v1106 = vpop.permute.xlu0 %1105
        %1107 = vrot.lane.b32.xlu0 %v900, 120
        %v1108 = vpop.permute.xlu0 %1107
        %1109 = vrot.lane.b32.xlu0 %v897, 88
        %v1110 = vpop.permute.xlu0 %1109
        %1111 = vrot.lane.b32.xlu0 %v900, 88
        %v1112 = vpop.permute.xlu0 %1111
        %v1113 = vsel %vm909, %v1106, 0
        %v1115 = vsel %vm909, %v1108, 0
        %v1117 = vsel %vm909, %v1110, 0
        %v1119 = vsel %vm909, %v1112, 0
        %1121 = vmatprep.subr.mxu0 0.0
        %1122 = vmatpush1.xpose.msra.mxu0 %v1117
        %1123 = vmatprep.subr.mxu0 0.0
        %1124 = vmatpush1.xpose.msra.mxu0 %v1119
        %1125 = vmatprep.subr.mxu0 0.0
        %1126 = vmatpush1.xpose.msra.mxu0 0.0
        %1127 = vmatprep.subr.mxu0 0.0
        %1128 = vmatpush1.xpose.msra.mxu0 0.0
        %1129 = vmatprep.subr.mxu0 0.0
        %1130 = vmatpush1.xpose.msra.mxu0 0.0
        %1131 = vmatprep.subr.mxu0 0.0
        %1132 = vmatpush1.xpose.msra.mxu0 0.0
        %1133 = vmatprep.subr.mxu0 0.0
        %1134 = vmatpush1.xpose.msra.mxu0 0.0
        %1135 = vmatprep.subr.mxu0 0.0
        %1136 = vmatpush1.xpose.msra.mxu0 0.0
        %1137 = vmatprep.subr.mxu0 0.0
        %1138 = vmatpush1.xpose.msra.mxu0 0.0
        %1139 = vmatprep.subr.mxu0 0.0
        %1140 = vmatpush1.xpose.msra.mxu0 0.0
        %1141 = vmatprep.subr.mxu0 0.0
        %1142 = vmatpush1.xpose.msra.mxu0 0.0
        %1143 = vmatprep.subr.mxu0 0.0
        %1144 = vmatpush1.xpose.msra.mxu0 0.0
        %1145 = vmatprep.subr.mxu0 0.0
        %1146 = vmatpush1.xpose.msra.mxu0 0.0
        %1147 = vmatprep.subr.mxu0 0.0
        %1148 = vmatpush1.xpose.msra.mxu0 0.0
        %1149 = vmatprep.subr.mxu0 0.0
        %1150 = vmatpush1.xpose.msra.mxu0 0.0
        %1151 = vmatprep.subr.mxu0 0.0
        %1152 = vmatpush1.xpose.msra.mxu0 0.0
        %1153 = vmatprep.subr.mxu0 0.0
        %1154 = vmatpush1.xpose.msra.mxu0 0.0
        %1155 = vmatprep.subr.mxu0 0.0
        %1156 = vmatpush1.xpose.msra.mxu0 0.0
        %1157 = vmatprep.subr.mxu0 0.0
        %1158 = vmatpush1.xpose.msra.mxu0 0.0
        %1159 = vmatprep.subr.mxu0 0.0
        %1160 = vmatpush1.xpose.msra.mxu0 0.0
        %1161 = vmatprep.subr.mxu0 0.0
        %1162 = vmatpush1.xpose.msra.mxu0 0.0
        %1163 = vmatprep.subr.mxu0 0.0
        %1164 = vmatpush1.xpose.msra.mxu0 0.0
        %1165 = vmatprep.subr.mxu0 0.0
        %1166 = vmatpush1.xpose.msra.mxu0 0.0
        %1167 = vmatprep.subr.mxu0 0.0
        %1168 = vmatpush1.xpose.msra.mxu0 0.0
        %1169 = vmatprep.subr.mxu0 0.0
        %1170 = vmatpush1.xpose.msra.mxu0 0.0
        %1171 = vmatprep.subr.mxu0 0.0
        %1172 = vmatpush1.xpose.msra.mxu0 0.0
        %1173 = vmatprep.subr.mxu0 0.0
        %1174 = vmatpush1.xpose.msra.mxu0 0.0
        %1175 = vmatprep.subr.mxu0 0.0
        %1176 = vmatpush1.xpose.msra.mxu0 0.0
        %1177 = vmatprep.subr.mxu0 0.0
        %1178 = vmatpush1.xpose.msra.mxu0 0.0
        %1179 = vmatprep.subr.mxu0 0.0
        %1180 = vmatpush1.xpose.msra.mxu0 0.0
        %1181 = vmatprep.subr.mxu0 0.0
        %1182 = vmatpush1.xpose.msra.mxu0 0.0
        %1183 = vmatprep.subr.mxu0 0.0
        %1184 = vmatpush1.xpose.msra.mxu0 0.0
        %1185 = vmatprep.mubr.f32.mxu0 0.0
        %1186 = vmatmul.mubr.f32.gmra.mrb[0].mxu0 %v1113
        %v1187 = vpop.f32.mrb[0].mxu0
        %v1188 = vadd.f32 0.0, %v1187
        %v1189 = vpop.f32.mrb[0].mxu0
        %1190 = vmatprep.mubr.f32.mxu0 0.0
        %1191 = vmatmul.mubr.f32.gmra.mrb[0].mxu0 %v1115
        %v1192 = vpop.f32.mrb[0].mxu0
        %v1193 = vadd.f32 0.0, %v1192
        %v1194 = vpop.f32.mrb[0].mxu0
        %1195 = vdwg.mxu0
        %v1196 = vsel %vm993, %v1188, -inf
        %1197 = vmax.xlane.f32.xlu0 %v1196
        %v1198 = vpop.xlane.xlu0 %1197
        %v1199 = vsel %vm993, %v1193, -inf
        %1200 = vmax.xlane.f32.xlu0 %v1199
        %v1201 = vpop.xlane.xlu0 %1200
        %v1202 = vsub.f32 %v1188, %v1198
        %v1203 = vsub.f32 %v1193, %v1201
        %v1204 = vmul.f32 %v1202, 1.442695
        %v1205 = vpow.pop %v1204
        %v1206 = vmul.f32 %v1203, 1.442695
        %v1207 = vpow.pop %v1206
        %v1208 = vsel %vm993, %v1205, 0.0
        %1209 = vadd.xlane.f32.xlu0 %v1208
        %v1210 = vpop.xlane.xlu0 %1209
        %v1211 = vsel %vm993, %v1207, 0.0
        %1212 = vadd.xlane.f32.xlu0 %v1211
        %v1213 = vpop.xlane.xlu0 %1212
        %v1214 = vrcp.pop %v1210
        %v1215 = vrcp.pop %v1213
        %v1216 = vmul.f32 %v1205, %v1214
        %v1217 = vmul.f32 %v1207, %v1215
        %1218 = vrot.lane.b32.xlu0 %v897, 56
        %v1219 = vpop.permute.xlu0 %1218
        %1220 = vrot.lane.b32.xlu0 %v900, 56
        %v1221 = vpop.permute.xlu0 %1220
        %v1225 = vsel %vm993, %v1216, 0
        %v1228 = vsel %vm993, %v1217, 0
        %1230 = vmatprep.subr.mxu0 0.0
        %1231 = vmatpush1.msra.mxu0 %v1219
        %1232 = vmatprep.subr.mxu0 0.0
        %1233 = vmatpush1.msra.mxu0 %v1221
        %1234 = vmatprep.subr.mxu0 0.0
        %1235 = vmatpush1.msra.mxu0 0.0
        %1236 = vmatprep.subr.mxu0 0.0
        %1237 = vmatpush1.msra.mxu0 0.0
        %1238 = vmatprep.subr.mxu0 0.0
        %1239 = vmatpush1.msra.mxu0 0.0
        %1240 = vmatprep.subr.mxu0 0.0
        %1241 = vmatpush1.msra.mxu0 0.0
        %1242 = vmatprep.subr.mxu0 0.0
        %1243 = vmatpush1.msra.mxu0 0.0
        %1244 = vmatprep.subr.mxu0 0.0
        %1245 = vmatpush1.msra.mxu0 0.0
        %1246 = vmatprep.subr.mxu0 0.0
        %1247 = vmatpush1.msra.mxu0 0.0
        %1248 = vmatprep.subr.mxu0 0.0
        %1249 = vmatpush1.msra.mxu0 0.0
        %1250 = vmatprep.subr.mxu0 0.0
        %1251 = vmatpush1.msra.mxu0 0.0
        %1252 = vmatprep.subr.mxu0 0.0
        %1253 = vmatpush1.msra.mxu0 0.0
        %1254 = vmatprep.subr.mxu0 0.0
        %1255 = vmatpush1.msra.mxu0 0.0
        %1256 = vmatprep.subr.mxu0 0.0
        %1257 = vmatpush1.msra.mxu0 0.0
        %1258 = vmatprep.subr.mxu0 0.0
        %1259 = vmatpush1.msra.mxu0 0.0
        %1260 = vmatprep.subr.mxu0 0.0
        %1261 = vmatpush1.msra.mxu0 0.0
        %1262 = vmatprep.subr.mxu0 0.0
        %1263 = vmatpush1.msra.mxu0 0.0
        %1264 = vmatprep.subr.mxu0 0.0
        %1265 = vmatpush1.msra.mxu0 0.0
        %1266 = vmatprep.subr.mxu0 0.0
        %1267 = vmatpush1.msra.mxu0 0.0
        %1268 = vmatprep.subr.mxu0 0.0
        %1269 = vmatpush1.msra.mxu0 0.0
        %1270 = vmatprep.subr.mxu0 0.0
        %1271 = vmatpush1.msra.mxu0 0.0
        %1272 = vmatprep.subr.mxu0 0.0
        %1273 = vmatpush1.msra.mxu0 0.0
        %1274 = vmatprep.subr.mxu0 0.0
        %1275 = vmatpush1.msra.mxu0 0.0
        %1276 = vmatprep.subr.mxu0 0.0
        %1277 = vmatpush1.msra.mxu0 0.0
        %1278 = vmatprep.subr.mxu0 0.0
        %1279 = vmatpush1.msra.mxu0 0.0
        %1280 = vmatprep.subr.mxu0 0.0
        %1281 = vmatpush1.msra.mxu0 0.0
        %1282 = vmatprep.subr.mxu0 0.0
        %1283 = vmatpush1.msra.mxu0 0.0
        %1284 = vmatprep.subr.mxu0 0.0
        %1285 = vmatpush1.msra.mxu0 0.0
        %1286 = vmatprep.subr.mxu0 0.0
        %1287 = vmatpush1.msra.mxu0 0.0
        %1288 = vmatprep.subr.mxu0 0.0
        %1289 = vmatpush1.msra.mxu0 0.0
        %1290 = vmatprep.subr.mxu0 0.0
        %1291 = vmatpush1.msra.mxu0 0.0
        %1292 = vmatprep.subr.mxu0 0.0
        %1293 = vmatpush1.msra.mxu0 0.0
        %1294 = vmatprep.mubr.f32.mxu0 0.0
        %1295 = vmatmul.mubr.f32.gmra.mrb[0].mxu0 %v1225
        %v1296 = vpop.f32.mrb[0].mxu0
        %v1297 = vadd.f32 0.0, %v1296
        %v1298 = vpop.f32.mrb[0].mxu0
        %1299 = vmatprep.mubr.f32.mxu0 0.0
        %1300 = vmatmul.mubr.f32.gmra.mrb[0].mxu0 %v1228
        %v1301 = vpop.f32.mrb[0].mxu0
        %v1302 = vadd.f32 0.0, %v1301
        %v1303 = vpop.f32.mrb[0].mxu0
        %1304 = vdwg.mxu0
        %v1305 = vpack.c.bf16 %v1302, %v1297
        %s1306 = scalar_lea.vmem %s6, 4
        %v1307 = vld [vmem:[%s1306] sm:$0xf]
        %v1309 = vsel %vm909, %v1305, 0
        %vm1311 = vcmask 1043456
        %v1313 = vsel %vm1311, %v1307, 0
        %1315 = vmatprep.subr.bf16.mxu0 0
        %1316 = vmatpush1.bf16.msra.mxu0 %v1313
        %1317 = vmatprep.subr.bf16.mxu0 0
        %1318 = vmatpush1.bf16.msra.mxu0 0
        %1319 = vmatprep.subr.bf16.mxu0 0
        %1320 = vmatpush1.bf16.msra.mxu0 0
        %1321 = vmatprep.subr.bf16.mxu0 0
        %1322 = vmatpush1.bf16.msra.mxu0 0
        %1323 = vmatprep.subr.bf16.mxu0 0
        %1324 = vmatpush1.bf16.msra.mxu0 0
        %1325 = vmatprep.subr.bf16.mxu0 0
        %1326 = vmatpush1.bf16.msra.mxu0 0
        %1327 = vmatprep.subr.bf16.mxu0 0
        %1328 = vmatpush1.bf16.msra.mxu0 0
        %1329 = vmatprep.subr.bf16.mxu0 0
        %1330 = vmatpush1.bf16.msra.mxu0 0
        %1331 = vmatprep.subr.bf16.mxu0 0
        %1332 = vmatpush1.bf16.msra.mxu0 0
        %1333 = vmatprep.subr.bf16.mxu0 0
        %1334 = vmatpush1.bf16.msra.mxu0 0
        %1335 = vmatprep.subr.bf16.mxu0 0
        %1336 = vmatpush1.bf16.msra.mxu0 0
        %1337 = vmatprep.subr.bf16.mxu0 0
        %1338 = vmatpush1.bf16.msra.mxu0 0
        %1339 = vmatprep.subr.bf16.mxu0 0
        %1340 = vmatpush1.bf16.msra.mxu0 0
        %1341 = vmatprep.subr.bf16.mxu0 0
        %1342 = vmatpush1.bf16.msra.mxu0 0
        %1343 = vmatprep.subr.bf16.mxu0 0
        %1344 = vmatpush1.bf16.msra.mxu0 0
        %1345 = vmatprep.subr.bf16.mxu0 0
        %1346 = vmatpush1.bf16.msra.mxu0 0
        %1347 = vmatprep.mubr.bf16.mxu0 0
        %1348 = vmatmul.mubr.bf16.gmra.mrb[0].mxu0 %v1309
        %v1349 = vpop.f32.mrb[0].mxu0
        %v1350 = vadd.f32 0.0, %v1349
        %v1351 = vpop.f32.mrb[0].mxu0
        %v1352 = vpop.f32.mrb[0].mxu0
        %v1353 = vadd.f32 0.0, %v1352
        %v1354 = vpop.f32.mrb[0].mxu0
        %1355 = vdwg.mxu0
        %v1357 = vsel %vm909, %v1103, 0
        %v1360 = vsel %vm1311, %v1104, 0
        %1362 = vmatprep.subr.bf16.mxu0 0
        %1363 = vmatpush1.bf16.msra.mxu0 %v1360
        %1364 = vmatprep.subr.bf16.mxu0 0
        %1365 = vmatpush1.bf16.msra.mxu0 0
        %1366 = vmatprep.subr.bf16.mxu0 0
        %1367 = vmatpush1.bf16.msra.mxu0 0
        %1368 = vmatprep.subr.bf16.mxu0 0
        %1369 = vmatpush1.bf16.msra.mxu0 0
        %1370 = vmatprep.subr.bf16.mxu0 0
        %1371 = vmatpush1.bf16.msra.mxu0 0
        %1372 = vmatprep.subr.bf16.mxu0 0
        %1373 = vmatpush1.bf16.msra.mxu0 0
        %1374 = vmatprep.subr.bf16.mxu0 0
        %1375 = vmatpush1.bf16.msra.mxu0 0
        %1376 = vmatprep.subr.bf16.mxu0 0
        %1377 = vmatpush1.bf16.msra.mxu0 0
        %1378 = vmatprep.subr.bf16.mxu0 0
        %1379 = vmatpush1.bf16.msra.mxu0 0
        %1380 = vmatprep.subr.bf16.mxu0 0
        %1381 = vmatpush1.bf16.msra.mxu0 0
        %1382 = vmatprep.subr.bf16.mxu0 0
        %1383 = vmatpush1.bf16.msra.mxu0 0
        %1384 = vmatprep.subr.bf16.mxu0 0
        %1385 = vmatpush1.bf16.msra.mxu0 0
        %1386 = vmatprep.subr.bf16.mxu0 0
        %1387 = vmatpush1.bf16.msra.mxu0 0
        %1388 = vmatprep.subr.bf16.mxu0 0
        %1389 = vmatpush1.bf16.msra.mxu0 0
        %1390 = vmatprep.subr.bf16.mxu0 0
        %1391 = vmatpush1.bf16.msra.mxu0 0
        %1392 = vmatprep.subr.bf16.mxu0 0
        %1393 = vmatpush1.bf16.msra.mxu0 0
        %1394 = vmatprep.mubr.bf16.mxu0 0
        %1395 = vmatmul.mubr.bf16.gmra.mrb[0].mxu0 %v1357
        %v1396 = vpop.f32.mrb[0].mxu0
        %v1397 = vadd.f32 %v1350, %v1396
        %v1398 = vpop.f32.mrb[0].mxu0
        %v1399 = vpop.f32.mrb[0].mxu0
        %v1400 = vadd.f32 %v1353, %v1399
        %v1401 = vpop.f32.mrb[0].mxu0
        %1402 = vdwg.mxu0
        %1403 = vrot.lane.b32.xlu0 %v897, 112
        %v1404 = vpop.permute.xlu0 %1403
        %1405 = vrot.lane.b32.xlu0 %v900, 112
        %v1406 = vpop.permute.xlu0 %1405
        %1407 = vrot.lane.b32.xlu0 %v897, 80
        %v1408 = vpop.permute.xlu0 %1407
        %1409 = vrot.lane.b32.xlu0 %v900, 80
        %v1410 = vpop.permute.xlu0 %1409
        %v1411 = vsel %vm909, %v1404, 0
        %v1413 = vsel %vm909, %v1406, 0
        %v1415 = vsel %vm909, %v1408, 0
        %v1417 = vsel %vm909, %v1410, 0
        %1419 = vmatprep.subr.mxu0 0.0
        %1420 = vmatpush1.xpose.msra.mxu0 %v1415
        %1421 = vmatprep.subr.mxu0 0.0
        %1422 = vmatpush1.xpose.msra.mxu0 %v1417
        %1423 = vmatprep.subr.mxu0 0.0
        %1424 = vmatpush1.xpose.msra.mxu0 0.0
        %1425 = vmatprep.subr.mxu0 0.0
        %1426 = vmatpush1.xpose.msra.mxu0 0.0
        %1427 = vmatprep.subr.mxu0 0.0
        %1428 = vmatpush1.xpose.msra.mxu0 0.0
        %1429 = vmatprep.subr.mxu0 0.0
        %1430 = vmatpush1.xpose.msra.mxu0 0.0
        %1431 = vmatprep.subr.mxu0 0.0
        %1432 = vmatpush1.xpose.msra.mxu0 0.0
        %1433 = vmatprep.subr.mxu0 0.0
        %1434 = vmatpush1.xpose.msra.mxu0 0.0
        %1435 = vmatprep.subr.mxu0 0.0
        %1436 = vmatpush1.xpose.msra.mxu0 0.0
        %1437 = vmatprep.subr.mxu0 0.0
        %1438 = vmatpush1.xpose.msra.mxu0 0.0
        %1439 = vmatprep.subr.mxu0 0.0
        %1440 = vmatpush1.xpose.msra.mxu0 0.0
        %1441 = vmatprep.subr.mxu0 0.0
        %1442 = vmatpush1.xpose.msra.mxu0 0.0
        %1443 = vmatprep.subr.mxu0 0.0
        %1444 = vmatpush1.xpose.msra.mxu0 0.0
        %1445 = vmatprep.subr.mxu0 0.0
        %1446 = vmatpush1.xpose.msra.mxu0 0.0
        %1447 = vmatprep.subr.mxu0 0.0
        %1448 = vmatpush1.xpose.msra.mxu0 0.0
        %1449 = vmatprep.subr.mxu0 0.0
        %1450 = vmatpush1.xpose.msra.mxu0 0.0
        %1451 = vmatprep.subr.mxu0 0.0
        %1452 = vmatpush1.xpose.msra.mxu0 0.0
        %1453 = vmatprep.subr.mxu0 0.0
        %1454 = vmatpush1.xpose.msra.mxu0 0.0
        %1455 = vmatprep.subr.mxu0 0.0
        %1456 = vmatpush1.xpose.msra.mxu0 0.0
        %1457 = vmatprep.subr.mxu0 0.0
        %1458 = vmatpush1.xpose.msra.mxu0 0.0
        %1459 = vmatprep.subr.mxu0 0.0
        %1460 = vmatpush1.xpose.msra.mxu0 0.0
        %1461 = vmatprep.subr.mxu0 0.0
        %1462 = vmatpush1.xpose.msra.mxu0 0.0
        %1463 = vmatprep.subr.mxu0 0.0
        %1464 = vmatpush1.xpose.msra.mxu0 0.0
        %1465 = vmatprep.subr.mxu0 0.0
        %1466 = vmatpush1.xpose.msra.mxu0 0.0
        %1467 = vmatprep.subr.mxu0 0.0
        %1468 = vmatpush1.xpose.msra.mxu0 0.0
        %1469 = vmatprep.subr.mxu0 0.0
        %1470 = vmatpush1.xpose.msra.mxu0 0.0
        %1471 = vmatprep.subr.mxu0 0.0
        %1472 = vmatpush1.xpose.msra.mxu0 0.0
        %1473 = vmatprep.subr.mxu0 0.0
        %1474 = vmatpush1.xpose.msra.mxu0 0.0
        %1475 = vmatprep.subr.mxu0 0.0
        %1476 = vmatpush1.xpose.msra.mxu0 0.0
        %1477 = vmatprep.subr.mxu0 0.0
        %1478 = vmatpush1.xpose.msra.mxu0 0.0
        %1479 = vmatprep.subr.mxu0 0.0
        %1480 = vmatpush1.xpose.msra.mxu0 0.0
        %1481 = vmatprep.subr.mxu0 0.0
        %1482 = vmatpush1.xpose.msra.mxu0 0.0
        %1483 = vmatprep.mubr.f32.mxu0 0.0
        %1484 = vmatmul.mubr.f32.gmra.mrb[0].mxu0 %v1411
        %v1485 = vpop.f32.mrb[0].mxu0
        %v1486 = vadd.f32 0.0, %v1485
        %v1487 = vpop.f32.mrb[0].mxu0
        %1488 = vmatprep.mubr.f32.mxu0 0.0
        %1489 = vmatmul.mubr.f32.gmra.mrb[0].mxu0 %v1413
        %v1490 = vpop.f32.mrb[0].mxu0
        %v1491 = vadd.f32 0.0, %v1490
        %v1492 = vpop.f32.mrb[0].mxu0
        %1493 = vdwg.mxu0
        %v1494 = vsel %vm993, %v1486, -inf
        %1495 = vmax.xlane.f32.xlu0 %v1494
        %v1496 = vpop.xlane.xlu0 %1495
        %v1497 = vsel %vm993, %v1491, -inf
        %1498 = vmax.xlane.f32.xlu0 %v1497
        %v1499 = vpop.xlane.xlu0 %1498
        %v1500 = vsub.f32 %v1486, %v1496
        %v1501 = vsub.f32 %v1491, %v1499
        %v1502 = vmul.f32 %v1500, 1.442695
        %v1503 = vpow.pop %v1502
        %v1504 = vmul.f32 %v1501, 1.442695
        %v1505 = vpow.pop %v1504
        %v1506 = vsel %vm993, %v1503, 0.0
        %1507 = vadd.xlane.f32.xlu0 %v1506
        %v1508 = vpop.xlane.xlu0 %1507
        %v1509 = vsel %vm993, %v1505, 0.0
        %1510 = vadd.xlane.f32.xlu0 %v1509
        %v1511 = vpop.xlane.xlu0 %1510
        %v1512 = vrcp.pop %v1508
        %v1513 = vrcp.pop %v1511
        %v1514 = vmul.f32 %v1503, %v1512
        %v1515 = vmul.f32 %v1505, %v1513
        %1516 = vrot.lane.b32.xlu0 %v897, 48
        %v1517 = vpop.permute.xlu0 %1516
        %1518 = vrot.lane.b32.xlu0 %v900, 48
        %v1519 = vpop.permute.xlu0 %1518
        %v1523 = vsel %vm993, %v1514, 0
        %v1526 = vsel %vm993, %v1515, 0
        %1528 = vmatprep.subr.mxu0 0.0
        %1529 = vmatpush1.msra.mxu0 %v1517
        %1530 = vmatprep.subr.mxu0 0.0
        %1531 = vmatpush1.msra.mxu0 %v1519
        %1532 = vmatprep.subr.mxu0 0.0
        %1533 = vmatpush1.msra.mxu0 0.0
        %1534 = vmatprep.subr.mxu0 0.0
        %1535 = vmatpush1.msra.mxu0 0.0
        %1536 = vmatprep.subr.mxu0 0.0
        %1537 = vmatpush1.msra.mxu0 0.0
        %1538 = vmatprep.subr.mxu0 0.0
        %1539 = vmatpush1.msra.mxu0 0.0
        %1540 = vmatprep.subr.mxu0 0.0
        %1541 = vmatpush1.msra.mxu0 0.0
        %1542 = vmatprep.subr.mxu0 0.0
        %1543 = vmatpush1.msra.mxu0 0.0
        %1544 = vmatprep.subr.mxu0 0.0
        %1545 = vmatpush1.msra.mxu0 0.0
        %1546 = vmatprep.subr.mxu0 0.0
        %1547 = vmatpush1.msra.mxu0 0.0
        %1548 = vmatprep.subr.mxu0 0.0
        %1549 = vmatpush1.msra.mxu0 0.0
        %1550 = vmatprep.subr.mxu0 0.0
        %1551 = vmatpush1.msra.mxu0 0.0
        %1552 = vmatprep.subr.mxu0 0.0
        %1553 = vmatpush1.msra.mxu0 0.0
        %1554 = vmatprep.subr.mxu0 0.0
        %1555 = vmatpush1.msra.mxu0 0.0
        %1556 = vmatprep.subr.mxu0 0.0
        %1557 = vmatpush1.msra.mxu0 0.0
        %1558 = vmatprep.subr.mxu0 0.0
        %1559 = vmatpush1.msra.mxu0 0.0
        %1560 = vmatprep.subr.mxu0 0.0
        %1561 = vmatpush1.msra.mxu0 0.0
        %1562 = vmatprep.subr.mxu0 0.0
        %1563 = vmatpush1.msra.mxu0 0.0
        %1564 = vmatprep.subr.mxu0 0.0
        %1565 = vmatpush1.msra.mxu0 0.0
        %1566 = vmatprep.subr.mxu0 0.0
        %1567 = vmatpush1.msra.mxu0 0.0
        %1568 = vmatprep.subr.mxu0 0.0
        %1569 = vmatpush1.msra.mxu0 0.0
        %1570 = vmatprep.subr.mxu0 0.0
        %1571 = vmatpush1.msra.mxu0 0.0
        %1572 = vmatprep.subr.mxu0 0.0
        %1573 = vmatpush1.msra.mxu0 0.0
        %1574 = vmatprep.subr.mxu0 0.0
        %1575 = vmatpush1.msra.mxu0 0.0
        %1576 = vmatprep.subr.mxu0 0.0
        %1577 = vmatpush1.msra.mxu0 0.0
        %1578 = vmatprep.subr.mxu0 0.0
        %1579 = vmatpush1.msra.mxu0 0.0
        %1580 = vmatprep.subr.mxu0 0.0
        %1581 = vmatpush1.msra.mxu0 0.0
        %1582 = vmatprep.subr.mxu0 0.0
        %1583 = vmatpush1.msra.mxu0 0.0
        %1584 = vmatprep.subr.mxu0 0.0
        %1585 = vmatpush1.msra.mxu0 0.0
        %1586 = vmatprep.subr.mxu0 0.0
        %1587 = vmatpush1.msra.mxu0 0.0
        %1588 = vmatprep.subr.mxu0 0.0
        %1589 = vmatpush1.msra.mxu0 0.0
        %1590 = vmatprep.subr.mxu0 0.0
        %1591 = vmatpush1.msra.mxu0 0.0
        %1592 = vmatprep.mubr.f32.mxu0 0.0
        %1593 = vmatmul.mubr.f32.gmra.mrb[0].mxu0 %v1523
        %v1594 = vpop.f32.mrb[0].mxu0
        %v1595 = vadd.f32 0.0, %v1594
        %v1596 = vpop.f32.mrb[0].mxu0
        %1597 = vmatprep.mubr.f32.mxu0 0.0
        %1598 = vmatmul.mubr.f32.gmra.mrb[0].mxu0 %v1526
        %v1599 = vpop.f32.mrb[0].mxu0
        %v1600 = vadd.f32 0.0, %v1599
        %v1601 = vpop.f32.mrb[0].mxu0
        %1602 = vdwg.mxu0
        %v1603 = vpack.c.bf16 %v1600, %v1595
        %s1604 = scalar_lea.vmem %s6, 8
        %v1605 = vld [vmem:[%s1604] sm:$0xf]
        %v1607 = vsel %vm909, %v1603, 0
        %v1610 = vsel %vm1311, %v1605, 0
        %1612 = vmatprep.subr.bf16.mxu0 0
        %1613 = vmatpush1.bf16.msra.mxu0 %v1610
        %1614 = vmatprep.subr.bf16.mxu0 0
        %1615 = vmatpush1.bf16.msra.mxu0 0
        %1616 = vmatprep.subr.bf16.mxu0 0
        %1617 = vmatpush1.bf16.msra.mxu0 0
        %1618 = vmatprep.subr.bf16.mxu0 0
        %1619 = vmatpush1.bf16.msra.mxu0 0
        %1620 = vmatprep.subr.bf16.mxu0 0
        %1621 = vmatpush1.bf16.msra.mxu0 0
        %1622 = vmatprep.subr.bf16.mxu0 0
        %1623 = vmatpush1.bf16.msra.mxu0 0
        %1624 = vmatprep.subr.bf16.mxu0 0
        %1625 = vmatpush1.bf16.msra.mxu0 0
        %1626 = vmatprep.subr.bf16.mxu0 0
        %1627 = vmatpush1.bf16.msra.mxu0 0
        %1628 = vmatprep.subr.bf16.mxu0 0
        %1629 = vmatpush1.bf16.msra.mxu0 0
        %1630 = vmatprep.subr.bf16.mxu0 0
        %1631 = vmatpush1.bf16.msra.mxu0 0
        %1632 = vmatprep.subr.bf16.mxu0 0
        %1633 = vmatpush1.bf16.msra.mxu0 0
        %1634 = vmatprep.subr.bf16.mxu0 0
        %1635 = vmatpush1.bf16.msra.mxu0 0
        %1636 = vmatprep.subr.bf16.mxu0 0
        %1637 = vmatpush1.bf16.msra.mxu0 0
        %1638 = vmatprep.subr.bf16.mxu0 0
        %1639 = vmatpush1.bf16.msra.mxu0 0
        %1640 = vmatprep.subr.bf16.mxu0 0
        %1641 = vmatpush1.bf16.msra.mxu0 0
        %1642 = vmatprep.subr.bf16.mxu0 0
        %1643 = vmatpush1.bf16.msra.mxu0 0
        %1644 = vmatprep.mubr.bf16.mxu0 0
        %1645 = vmatmul.mubr.bf16.gmra.mrb[0].mxu0 %v1607
        %v1646 = vpop.f32.mrb[0].mxu0
        %v1647 = vadd.f32 0.0, %v1646
        %v1648 = vpop.f32.mrb[0].mxu0
        %v1649 = vpop.f32.mrb[0].mxu0
        %v1650 = vadd.f32 0.0, %v1649
        %v1651 = vpop.f32.mrb[0].mxu0
        %1652 = vdwg.mxu0
        %v1653 = vadd.f32 %v1397, %v1647
        %v1654 = vadd.f32 %v1400, %v1650
        %1655 = vrot.lane.b32.xlu0 %v897, 104
        %v1656 = vpop.permute.xlu0 %1655
        %1657 = vrot.lane.b32.xlu0 %v900, 104
        %v1658 = vpop.permute.xlu0 %1657
        %1659 = vrot.lane.b32.xlu0 %v897, 72
        %v1660 = vpop.permute.xlu0 %1659
        %1661 = vrot.lane.b32.xlu0 %v900, 72
        %v1662 = vpop.permute.xlu0 %1661
        %v1663 = vsel %vm909, %v1656, 0
        %v1665 = vsel %vm909, %v1658, 0
        %v1667 = vsel %vm909, %v1660, 0
        %v1669 = vsel %vm909, %v1662, 0
        %1671 = vmatprep.subr.mxu0 0.0
        %1672 = vmatpush1.xpose.msra.mxu0 %v1667
        %1673 = vmatprep.subr.mxu0 0.0
        %1674 = vmatpush1.xpose.msra.mxu0 %v1669
        %1675 = vmatprep.subr.mxu0 0.0
        %1676 = vmatpush1.xpose.msra.mxu0 0.0
        %1677 = vmatprep.subr.mxu0 0.0
        %1678 = vmatpush1.xpose.msra.mxu0 0.0
        %1679 = vmatprep.subr.mxu0 0.0
        %1680 = vmatpush1.xpose.msra.mxu0 0.0
        %1681 = vmatprep.subr.mxu0 0.0
        %1682 = vmatpush1.xpose.msra.mxu0 0.0
        %1683 = vmatprep.subr.mxu0 0.0
        %1684 = vmatpush1.xpose.msra.mxu0 0.0
        %1685 = vmatprep.subr.mxu0 0.0
        %1686 = vmatpush1.xpose.msra.mxu0 0.0
        %1687 = vmatprep.subr.mxu0 0.0
        %1688 = vmatpush1.xpose.msra.mxu0 0.0
        %1689 = vmatprep.subr.mxu0 0.0
        %1690 = vmatpush1.xpose.msra.mxu0 0.0
        %1691 = vmatprep.subr.mxu0 0.0
        %1692 = vmatpush1.xpose.msra.mxu0 0.0
        %1693 = vmatprep.subr.mxu0 0.0
        %1694 = vmatpush1.xpose.msra.mxu0 0.0
        %1695 = vmatprep.subr.mxu0 0.0
        %1696 = vmatpush1.xpose.msra.mxu0 0.0
        %1697 = vmatprep.subr.mxu0 0.0
        %1698 = vmatpush1.xpose.msra.mxu0 0.0
        %1699 = vmatprep.subr.mxu0 0.0
        %1700 = vmatpush1.xpose.msra.mxu0 0.0
        %1701 = vmatprep.subr.mxu0 0.0
        %1702 = vmatpush1.xpose.msra.mxu0 0.0
        %1703 = vmatprep.subr.mxu0 0.0
        %1704 = vmatpush1.xpose.msra.mxu0 0.0
        %1705 = vmatprep.subr.mxu0 0.0
        %1706 = vmatpush1.xpose.msra.mxu0 0.0
        %1707 = vmatprep.subr.mxu0 0.0
        %1708 = vmatpush1.xpose.msra.mxu0 0.0
        %1709 = vmatprep.subr.mxu0 0.0
        %1710 = vmatpush1.xpose.msra.mxu0 0.0
        %1711 = vmatprep.subr.mxu0 0.0
        %1712 = vmatpush1.xpose.msra.mxu0 0.0
        %1713 = vmatprep.subr.mxu0 0.0
        %1714 = vmatpush1.xpose.msra.mxu0 0.0
        %1715 = vmatprep.subr.mxu0 0.0
        %1716 = vmatpush1.xpose.msra.mxu0 0.0
        %1717 = vmatprep.subr.mxu0 0.0
        %1718 = vmatpush1.xpose.msra.mxu0 0.0
        %1719 = vmatprep.subr.mxu0 0.0
        %1720 = vmatpush1.xpose.msra.mxu0 0.0
        %1721 = vmatprep.subr.mxu0 0.0
        %1722 = vmatpush1.xpose.msra.mxu0 0.0
        %1723 = vmatprep.subr.mxu0 0.0
        %1724 = vmatpush1.xpose.msra.mxu0 0.0
        %1725 = vmatprep.subr.mxu0 0.0
        %1726 = vmatpush1.xpose.msra.mxu0 0.0
        %1727 = vmatprep.subr.mxu0 0.0
        %1728 = vmatpush1.xpose.msra.mxu0 0.0
        %1729 = vmatprep.subr.mxu0 0.0
        %1730 = vmatpush1.xpose.msra.mxu0 0.0
        %1731 = vmatprep.subr.mxu0 0.0
        %1732 = vmatpush1.xpose.msra.mxu0 0.0
        %1733 = vmatprep.subr.mxu0 0.0
        %1734 = vmatpush1.xpose.msra.mxu0 0.0
        %1735 = vmatprep.mubr.f32.mxu0 0.0
        %1736 = vmatmul.mubr.f32.gmra.mrb[0].mxu0 %v1663
        %v1737 = vpop.f32.mrb[0].mxu0
        %v1738 = vadd.f32 0.0, %v1737
        %v1739 = vpop.f32.mrb[0].mxu0
        %1740 = vmatprep.mubr.f32.mxu0 0.0
        %1741 = vmatmul.mubr.f32.gmra.mrb[0].mxu0 %v1665
        %v1742 = vpop.f32.mrb[0].mxu0
        %v1743 = vadd.f32 0.0, %v1742
        %v1744 = vpop.f32.mrb[0].mxu0
        %1745 = vdwg.mxu0
        %v1746 = vsel %vm993, %v1738, -inf
        %1747 = vmax.xlane.f32.xlu0 %v1746
        %v1748 = vpop.xlane.xlu0 %1747
        %v1749 = vsel %vm993, %v1743, -inf
        %1750 = vmax.xlane.f32.xlu0 %v1749
        %v1751 = vpop.xlane.xlu0 %1750
        %v1752 = vsub.f32 %v1738, %v1748
        %v1753 = vsub.f32 %v1743, %v1751
        %v1754 = vmul.f32 %v1752, 1.442695
        %v1755 = vpow.pop %v1754
        %v1756 = vmul.f32 %v1753, 1.442695
        %v1757 = vpow.pop %v1756
        %v1758 = vsel %vm993, %v1755, 0.0
        %1759 = vadd.xlane.f32.xlu0 %v1758
        %v1760 = vpop.xlane.xlu0 %1759
        %v1761 = vsel %vm993, %v1757, 0.0
        %1762 = vadd.xlane.f32.xlu0 %v1761
        %v1763 = vpop.xlane.xlu0 %1762
        %v1764 = vrcp.pop %v1760
        %v1765 = vrcp.pop %v1763
        %v1766 = vmul.f32 %v1755, %v1764
        %v1767 = vmul.f32 %v1757, %v1765
        %1768 = vrot.lane.b32.xlu0 %v897, 40
        %v1769 = vpop.permute.xlu0 %1768
        %1770 = vrot.lane.b32.xlu0 %v900, 40
        %v1771 = vpop.permute.xlu0 %1770
        %v1775 = vsel %vm993, %v1766, 0
        %v1778 = vsel %vm993, %v1767, 0
        %1780 = vmatprep.subr.mxu0 0.0
        %1781 = vmatpush1.msra.mxu0 %v1769
        %1782 = vmatprep.subr.mxu0 0.0
        %1783 = vmatpush1.msra.mxu0 %v1771
        %1784 = vmatprep.subr.mxu0 0.0
        %1785 = vmatpush1.msra.mxu0 0.0
        %1786 = vmatprep.subr.mxu0 0.0
        %1787 = vmatpush1.msra.mxu0 0.0
        %1788 = vmatprep.subr.mxu0 0.0
        %1789 = vmatpush1.msra.mxu0 0.0
        %1790 = vmatprep.subr.mxu0 0.0
        %1791 = vmatpush1.msra.mxu0 0.0
        %1792 = vmatprep.subr.mxu0 0.0
        %1793 = vmatpush1.msra.mxu0 0.0
        %1794 = vmatprep.subr.mxu0 0.0
        %1795 = vmatpush1.msra.mxu0 0.0
        %1796 = vmatprep.subr.mxu0 0.0
        %1797 = vmatpush1.msra.mxu0 0.0
        %1798 = vmatprep.subr.mxu0 0.0
        %1799 = vmatpush1.msra.mxu0 0.0
        %1800 = vmatprep.subr.mxu0 0.0
        %1801 = vmatpush1.msra.mxu0 0.0
        %1802 = vmatprep.subr.mxu0 0.0
        %1803 = vmatpush1.msra.mxu0 0.0
        %1804 = vmatprep.subr.mxu0 0.0
        %1805 = vmatpush1.msra.mxu0 0.0
        %1806 = vmatprep.subr.mxu0 0.0
        %1807 = vmatpush1.msra.mxu0 0.0
        %1808 = vmatprep.subr.mxu0 0.0
        %1809 = vmatpush1.msra.mxu0 0.0
        %1810 = vmatprep.subr.mxu0 0.0
        %1811 = vmatpush1.msra.mxu0 0.0
        %1812 = vmatprep.subr.mxu0 0.0
        %1813 = vmatpush1.msra.mxu0 0.0
        %1814 = vmatprep.subr.mxu0 0.0
        %1815 = vmatpush1.msra.mxu0 0.0
        %1816 = vmatprep.subr.mxu0 0.0
        %1817 = vmatpush1.msra.mxu0 0.0
        %1818 = vmatprep.subr.mxu0 0.0
        %1819 = vmatpush1.msra.mxu0 0.0
        %1820 = vmatprep.subr.mxu0 0.0
        %1821 = vmatpush1.msra.mxu0 0.0
        %1822 = vmatprep.subr.mxu0 0.0
        %1823 = vmatpush1.msra.mxu0 0.0
        %1824 = vmatprep.subr.mxu0 0.0
        %1825 = vmatpush1.msra.mxu0 0.0
        %1826 = vmatprep.subr.mxu0 0.0
        %1827 = vmatpush1.msra.mxu0 0.0
        %1828 = vmatprep.subr.mxu0 0.0
        %1829 = vmatpush1.msra.mxu0 0.0
        %1830 = vmatprep.subr.mxu0 0.0
        %1831 = vmatpush1.msra.mxu0 0.0
        %1832 = vmatprep.subr.mxu0 0.0
        %1833 = vmatpush1.msra.mxu0 0.0
        %1834 = vmatprep.subr.mxu0 0.0
        %1835 = vmatpush1.msra.mxu0 0.0
        %1836 = vmatprep.subr.mxu0 0.0
        %1837 = vmatpush1.msra.mxu0 0.0
        %1838 = vmatprep.subr.mxu0 0.0
        %1839 = vmatpush1.msra.mxu0 0.0
        %1840 = vmatprep.subr.mxu0 0.0
        %1841 = vmatpush1.msra.mxu0 0.0
        %1842 = vmatprep.subr.mxu0 0.0
        %1843 = vmatpush1.msra.mxu0 0.0
        %1844 = vmatprep.mubr.f32.mxu0 0.0
        %1845 = vmatmul.mubr.f32.gmra.mrb[0].mxu0 %v1775
        %v1846 = vpop.f32.mrb[0].mxu0
        %v1847 = vadd.f32 0.0, %v1846
        %v1848 = vpop.f32.mrb[0].mxu0
        %1849 = vmatprep.mubr.f32.mxu0 0.0
        %1850 = vmatmul.mubr.f32.gmra.mrb[0].mxu0 %v1778
        %v1851 = vpop.f32.mrb[0].mxu0
        %v1852 = vadd.f32 0.0, %v1851
        %v1853 = vpop.f32.mrb[0].mxu0
        %1854 = vdwg.mxu0
        %v1855 = vpack.c.bf16 %v1852, %v1847
        %s1856 = scalar_lea.vmem %s6, 12
        %v1857 = vld [vmem:[%s1856] sm:$0xf]
        %v1859 = vsel %vm909, %v1855, 0
        %v1862 = vsel %vm1311, %v1857, 0
        %1864 = vmatprep.subr.bf16.mxu0 0
        %1865 = vmatpush1.bf16.msra.mxu0 %v1862
        %1866 = vmatprep.subr.bf16.mxu0 0
        %1867 = vmatpush1.bf16.msra.mxu0 0
        %1868 = vmatprep.subr.bf16.mxu0 0
        %1869 = vmatpush1.bf16.msra.mxu0 0
        %1870 = vmatprep.subr.bf16.mxu0 0
        %1871 = vmatpush1.bf16.msra.mxu0 0
        %1872 = vmatprep.subr.bf16.mxu0 0
        %1873 = vmatpush1.bf16.msra.mxu0 0
        %1874 = vmatprep.subr.bf16.mxu0 0
        %1875 = vmatpush1.bf16.msra.mxu0 0
        %1876 = vmatprep.subr.bf16.mxu0 0
        %1877 = vmatpush1.bf16.msra.mxu0 0
        %1878 = vmatprep.subr.bf16.mxu0 0
        %1879 = vmatpush1.bf16.msra.mxu0 0
        %1880 = vmatprep.subr.bf16.mxu0 0
        %1881 = vmatpush1.bf16.msra.mxu0 0
        %1882 = vmatprep.subr.bf16.mxu0 0
        %1883 = vmatpush1.bf16.msra.mxu0 0
        %1884 = vmatprep.subr.bf16.mxu0 0
        %1885 = vmatpush1.bf16.msra.mxu0 0
        %1886 = vmatprep.subr.bf16.mxu0 0
        %1887 = vmatpush1.bf16.msra.mxu0 0
        %1888 = vmatprep.subr.bf16.mxu0 0
        %1889 = vmatpush1.bf16.msra.mxu0 0
        %1890 = vmatprep.subr.bf16.mxu0 0
        %1891 = vmatpush1.bf16.msra.mxu0 0
        %1892 = vmatprep.subr.bf16.mxu0 0
        %1893 = vmatpush1.bf16.msra.mxu0 0
        %1894 = vmatprep.subr.bf16.mxu0 0
        %1895 = vmatpush1.bf16.msra.mxu0 0
        %1896 = vmatprep.mubr.bf16.mxu0 0
        %1897 = vmatmul.mubr.bf16.gmra.mrb[0].mxu0 %v1859
        %v1898 = vpop.f32.mrb[0].mxu0
        %v1899 = vadd.f32 0.0, %v1898
        %v1900 = vpop.f32.mrb[0].mxu0
        %v1901 = vpop.f32.mrb[0].mxu0
        %v1902 = vadd.f32 0.0, %v1901
        %v1903 = vpop.f32.mrb[0].mxu0
        %1904 = vdwg.mxu0
        %v1905 = vadd.f32 %v1653, %v1899
        %v1906 = vadd.f32 %v1654, %v1902
        %v1907 = vld [vmem:[%s7] sm:$0x1]
        %v1909 = vlaneseq
        %v1910 = vshrl.u32 %v1909, 7
        %v1911 = vsub.s32 0, %v1910
        %v1912 = vrot.slane %v1907, %v1911
        %v1914 = vadd.f32 %v1905, %v1912
        %v1915 = vadd.f32 %v1906, %v1912
        %v1916 = vadd.f32 %v832, %v1914
        %v1917 = vadd.f32 %v833, %v1915
        %v1918 = vld [vmem:[%s8] sm:$0x1]
        %v1919 = vld [vmem:[%s9] sm:$0x1]
        %v1920 = vsel %vm858, %v1916, 0.0
        %1921 = vadd.xlane.f32.xlu0 %v1920
        %v1922 = vpop.xlane.xlu0 %1921
        %v1923 = vsel %vm858, %v1917, 0.0
        %1924 = vadd.xlane.f32.xlu0 %v1923
        %v1925 = vpop.xlane.xlu0 %1924
        %v1926 = vrcp.pop 32.0
        %v1927 = vmul.f32 %v1922, %v1926
        %v1928 = vmul.f32 %v1925, %v1926
        %v1929 = vsub.f32 %v1916, %v1927
        %v1930 = vsub.f32 %v1917, %v1928
        %v1931 = vmul.f32 %v1929, %v1929
        %v1932 = vmul.f32 %v1930, %v1930
        %v1933 = vsel %vm858, %v1931, 0.0
        %1934 = vadd.xlane.f32.xlu0 %v1933
        %v1935 = vpop.xlane.xlu0 %1934
        %v1936 = vsel %vm858, %v1932, 0.0
        %1937 = vadd.xlane.f32.xlu0 %v1936
        %v1938 = vpop.xlane.xlu0 %1937
        %v1939 = vmul.f32 %v1935, %v1926
        %v1940 = vmul.f32 %v1938, %v1926
        %v1941 = vadd.f32 %v1939, 1e-05
        %v1942 = vadd.f32 %v1940, 1e-05
        %v1943 = vrsqrt.pop %v1941
        %v1944 = vrsqrt.pop %v1942
        %v1945 = vmul.f32 %v1929, %v1943
        %v1946 = vmul.f32 %v1930, %v1944
        %v1948 = vlaneseq
        %v1949 = vshrl.u32 %v1948, 7
        %v1950 = vsub.s32 0, %v1949
        %v1951 = vrot.slane %v1918, %v1950
        %v1953 = vmul.f32 %v1945, %v1951
        %v1954 = vmul.f32 %v1946, %v1951
        %v1956 = vlaneseq
        %v1957 = vshrl.u32 %v1956, 7
        %v1958 = vsub.s32 0, %v1957
        %v1959 = vrot.slane %v1919, %v1958
        %v1961 = vadd.f32 %v1953, %v1959
        %v1962 = vadd.f32 %v1954, %v1959
        %v1963 = vpack.c.bf16 %v1962, %v1961
        %v1964 = vld [vmem:[%s10] sm:$0xf]
        %v1965 = vld [vmem:[%s10 + $0x4] sm:$0xf]
        %v1966 = vld [vmem:[%s10 + $0x8] sm:$0xf]
        %v1967 = vld [vmem:[%s10 + $0xc] sm:$0xf]
        %v1968 = vld [vmem:[%s11] sm:$0x1]
        %v1970 = vlaneseq
        %v1971 = vshrl.u32 %v1970, 7
        %v1972 = vsub.s32 0, %v1971
        %v1973 = vrot.slane %v1968, %v1972
        %v1979 = vunpack.c.l.b16 %v1964
        %v1980 = vunpack.c.l.b16 %v1965
        %v1981 = vunpack.c.l.b16 %v1966
        %v1982 = vunpack.c.l.b16 %v1967
        %v1983 = vpack.c.b16 %v1980, %v1979
        %v1984 = vpack.c.b16 %v1982, %v1981
        %v1988 = vsel %vm858, %v1963, 0
        %1990 = vmatprep.subr.bf16.mxu0 0
        %1991 = vmatpush1.bf16.msra.mxu0 %v1983
        %1992 = vmatprep.subr.bf16.mxu0 0
        %1993 = vmatpush1.bf16.msra.mxu0 %v1984
        %1994 = vmatprep.subr.bf16.mxu0 0
        %1995 = vmatpush1.bf16.msra.mxu0 0
        %1996 = vmatprep.subr.bf16.mxu0 0
        %1997 = vmatpush1.bf16.msra.mxu0 0
        %1998 = vmatprep.subr.bf16.mxu0 0
        %1999 = vmatpush1.bf16.msra.mxu0 0
        %2000 = vmatprep.subr.bf16.mxu0 0
        %2001 = vmatpush1.bf16.msra.mxu0 0
        %2002 = vmatprep.subr.bf16.mxu0 0
        %2003 = vmatpush1.bf16.msra.mxu0 0
        %2004 = vmatprep.subr.bf16.mxu0 0
        %2005 = vmatpush1.bf16.msra.mxu0 0
        %2006 = vmatprep.subr.bf16.mxu0 0
        %2007 = vmatpush1.bf16.msra.mxu0 0
        %2008 = vmatprep.subr.bf16.mxu0 0
        %2009 = vmatpush1.bf16.msra.mxu0 0
        %2010 = vmatprep.subr.bf16.mxu0 0
        %2011 = vmatpush1.bf16.msra.mxu0 0
        %2012 = vmatprep.subr.bf16.mxu0 0
        %2013 = vmatpush1.bf16.msra.mxu0 0
        %2014 = vmatprep.subr.bf16.mxu0 0
        %2015 = vmatpush1.bf16.msra.mxu0 0
        %2016 = vmatprep.subr.bf16.mxu0 0
        %2017 = vmatpush1.bf16.msra.mxu0 0
        %2018 = vmatprep.subr.bf16.mxu0 0
        %2019 = vmatpush1.bf16.msra.mxu0 0
        %2020 = vmatprep.subr.bf16.mxu0 0
        %2021 = vmatpush1.bf16.msra.mxu0 0
        %2022 = vmatprep.mubr.bf16.mxu0 0
        %2023 = vmatmul.mubr.bf16.gmra.mrb[0].mxu0 %v1988
        %v2024 = vpop.f32.mrb[0].mxu0
        %v2025 = vadd.f32 %v1973, %v2024
        %v2026 = vpop.f32.mrb[0].mxu0
        %v2027 = vpop.f32.mrb[0].mxu0
        %v2028 = vadd.f32 %v1973, %v2027
        %v2029 = vpop.f32.mrb[0].mxu0
        %2030 = vdwg.mxu0
        %v2031 = vmul.f32 %v2025, 0.5
        %v2032 = vmul.f32 %v2028, 0.5
        %v2033 = vmul.f32 %v2025, 0.70710677
        %v2034 = vmul.f32 %v2028, 0.70710677
        %v2035 = vand.u32 2147483647, %v2033
        %v2036 = vand.u32 2147483647, %v2034
        %v2037 = vmul.f32 %v2035, 0.3275911
        %v2038 = vmul.f32 %v2036, 0.3275911
        %v2039 = vadd.f32 %v2037, 1.0
        %v2040 = vadd.f32 %v2038, 1.0
        %v2041 = vrcp.pop %v2039
        %v2042 = vmul.f32 1.0, %v2041
        %v2043 = vrcp.pop %v2040
        %v2044 = vmul.f32 1.0, %v2043
        %v2045 = vmul.f32 %v2042, 1.0614054
        %v2046 = vmul.f32 %v2044, 1.0614054
        %v2047 = vadd.f32 %v2045, -1.4531521
        %v2048 = vadd.f32 %v2046, -1.4531521
        %v2049 = vmul.f32 %v2047, %v2042
        %v2050 = vmul.f32 %v2048, %v2044
        %v2051 = vadd.f32 %v2049, 1.4214138
        %v2052 = vadd.f32 %v2050, 1.4214138
        %v2053 = vmul.f32 %v2051, %v2042
        %v2054 = vmul.f32 %v2052, %v2044
        %v2055 = vadd.f32 %v2053, -0.28449672
        %v2056 = vadd.f32 %v2054, -0.28449672
        %v2057 = vmul.f32 %v2055, %v2042
        %v2058 = vmul.f32 %v2056, %v2044
        %v2059 = vadd.f32 %v2057, 0.2548296
        %v2060 = vadd.f32 %v2058, 0.2548296
        %v2061 = vmul.f32 %v2059, %v2042
        %v2062 = vmul.f32 %v2060, %v2044
        %v2063 = vmul.f32 %v2035, %v2035
        %v2064 = vmul.f32 %v2036, %v2036
        %v2065 = vsub.f32 0.0, %v2063
        %v2066 = vsub.f32 0.0, %v2064
        %v2067 = vmul.f32 %v2065, 1.442695
        %v2068 = vpow.pop %v2067
        %v2069 = vmul.f32 %v2066, 1.442695
        %v2070 = vpow.pop %v2069
        %v2071 = vmul.f32 %v2061, %v2068
        %v2072 = vmul.f32 %v2062, %v2070
        %v2073 = vsub.f32 1.0, %v2071
        %v2074 = vsub.f32 1.0, %v2072
        %vm2075 = vcmp.ge.f32.partialorder %v2033, 0.0
        %vm2076 = vcmp.ge.f32.partialorder %v2034, 0.0
        %v2077 = vsub.f32 0.0, %v2073
        %v2078 = vsub.f32 0.0, %v2074
        %v2079 = vsel %vm2075, %v2073, %v2077
        %v2080 = vsel %vm2076, %v2074, %v2078
        %v2081 = vadd.f32 %v2079, 1.0
        %v2082 = vadd.f32 %v2080, 1.0
        %v2083 = vmul.f32 %v2031, %v2081
        %v2084 = vmul.f32 %v2032, %v2082
        %v2085 = vpack.c.bf16 %v2084, %v2083
        %v2086 = vld [vmem:[%s12] sm:$0xf]
        %v2087 = vld [vmem:[%s12 + $0x4] sm:$0xf]
        %v2088 = vld [vmem:[%s12 + $0x8] sm:$0xf]
        %v2089 = vld [vmem:[%s12 + $0xc] sm:$0xf]
        %v2090 = vld [vmem:[%s12 + $0x10] sm:$0xf]
        %v2091 = vld [vmem:[%s12 + $0x14] sm:$0xf]
        %v2092 = vld [vmem:[%s12 + $0x18] sm:$0xf]
        %v2093 = vld [vmem:[%s12 + $0x1c] sm:$0xf]
        %v2094 = vld [vmem:[%s13] sm:$0x1]
        %v2096 = vlaneseq
        %v2097 = vshrl.u32 %v2096, 7
        %v2098 = vsub.s32 0, %v2097
        %v2099 = vrot.slane %v2094, %v2098
        %v2109 = vunpack.c.l.b16 %v2086
        %v2110 = vunpack.c.l.b16 %v2087
        %v2111 = vunpack.c.l.b16 %v2088
        %v2112 = vunpack.c.l.b16 %v2089
        %v2113 = vunpack.c.l.b16 %v2090
        %v2114 = vunpack.c.l.b16 %v2091
        %v2115 = vunpack.c.l.b16 %v2092
        %v2116 = vunpack.c.l.b16 %v2093
        %v2117 = vpack.c.b16 %v2110, %v2109
        %v2118 = vpack.c.b16 %v2112, %v2111
        %v2119 = vpack.c.b16 %v2114, %v2113
        %v2120 = vpack.c.b16 %v2116, %v2115
        %vm2125 = vcmask 523264
        %v2127 = vsel %vm2125, %v2085, 0
        %2129 = vmatprep.subr.bf16.mxu0 0
        %2130 = vmatpush1.bf16.msra.mxu0 %v2117
        %2131 = vmatprep.subr.bf16.mxu0 0
        %2132 = vmatpush1.bf16.msra.mxu0 %v2118
        %2133 = vmatprep.subr.bf16.mxu0 0
        %2134 = vmatpush1.bf16.msra.mxu0 %v2119
        %2135 = vmatprep.subr.bf16.mxu0 0
        %2136 = vmatpush1.bf16.msra.mxu0 %v2120
        %2137 = vmatprep.subr.bf16.mxu0 0
        %2138 = vmatpush1.bf16.msra.mxu0 0
        %2139 = vmatprep.subr.bf16.mxu0 0
        %2140 = vmatpush1.bf16.msra.mxu0 0
        %2141 = vmatprep.subr.bf16.mxu0 0
        %2142 = vmatpush1.bf16.msra.mxu0 0
        %2143 = vmatprep.subr.bf16.mxu0 0
        %2144 = vmatpush1.bf16.msra.mxu0 0
        %2145 = vmatprep.subr.bf16.mxu0 0
        %2146 = vmatpush1.bf16.msra.mxu0 0
        %2147 = vmatprep.subr.bf16.mxu0 0
        %2148 = vmatpush1.bf16.msra.mxu0 0
        %2149 = vmatprep.subr.bf16.mxu0 0
        %2150 = vmatpush1.bf16.msra.mxu0 0
        %2151 = vmatprep.subr.bf16.mxu0 0
        %2152 = vmatpush1.bf16.msra.mxu0 0
        %2153 = vmatprep.subr.bf16.mxu0 0
        %2154 = vmatpush1.bf16.msra.mxu0 0
        %2155 = vmatprep.subr.bf16.mxu0 0
        %2156 = vmatpush1.bf16.msra.mxu0 0
        %2157 = vmatprep.subr.bf16.mxu0 0
        %2158 = vmatpush1.bf16.msra.mxu0 0
        %2159 = vmatprep.subr.bf16.mxu0 0
        %2160 = vmatpush1.bf16.msra.mxu0 0
        %2161 = vmatprep.mubr.bf16.mxu0 0
        %2162 = vmatmul.mubr.bf16.gmra.mrb[0].mxu0 %v2127
        %v2163 = vpop.f32.mrb[0].mxu0
        %v2164 = vadd.f32 %v2099, %v2163
        %v2165 = vpop.f32.mrb[0].mxu0
        %v2166 = vpop.f32.mrb[0].mxu0
        %v2167 = vadd.f32 %v2099, %v2166
        %v2168 = vpop.f32.mrb[0].mxu0
        %2169 = vdwg.mxu0
        %v2170 = vadd.f32 %v1961, %v2164
        %v2171 = vadd.f32 %v1962, %v2167
        %v2172 = vld [vmem:[%s14] sm:$0x1]
        %v2173 = vld [vmem:[%s15] sm:$0x1]
        %v2174 = vsel %vm858, %v2170, 0.0
        %2175 = vadd.xlane.f32.xlu0 %v2174
        %v2176 = vpop.xlane.xlu0 %2175
        %v2177 = vsel %vm858, %v2171, 0.0
        %2178 = vadd.xlane.f32.xlu0 %v2177
        %v2179 = vpop.xlane.xlu0 %2178
        %v2180 = vmul.f32 %v2176, %v1926
        %v2181 = vmul.f32 %v2179, %v1926
        %v2182 = vsub.f32 %v2170, %v2180
        %v2183 = vsub.f32 %v2171, %v2181
        %v2184 = vmul.f32 %v2182, %v2182
        %v2185 = vmul.f32 %v2183, %v2183
        %v2186 = vsel %vm858, %v2184, 0.0
        %2187 = vadd.xlane.f32.xlu0 %v2186
        %v2188 = vpop.xlane.xlu0 %2187
        %v2189 = vsel %vm858, %v2185, 0.0
        %2190 = vadd.xlane.f32.xlu0 %v2189
        %v2191 = vpop.xlane.xlu0 %2190
        %v2192 = vmul.f32 %v2188, %v1926
        %v2193 = vmul.f32 %v2191, %v1926
        %v2194 = vadd.f32 %v2192, 1e-05
        %v2195 = vadd.f32 %v2193, 1e-05
        %v2196 = vrsqrt.pop %v2194
        %v2197 = vrsqrt.pop %v2195
        %v2198 = vmul.f32 %v2182, %v2196
        %v2199 = vmul.f32 %v2183, %v2197
        %v2201 = vlaneseq
        %v2202 = vshrl.u32 %v2201, 7
        %v2203 = vsub.s32 0, %v2202
        %v2204 = vrot.slane %v2172, %v2203
        %v2206 = vmul.f32 %v2198, %v2204
        %v2207 = vmul.f32 %v2199, %v2204
        %v2209 = vlaneseq
        %v2210 = vshrl.u32 %v2209, 7
        %v2211 = vsub.s32 0, %v2210
        %v2212 = vrot.slane %v2173, %v2211
        %v2214 = vadd.f32 %v2206, %v2212
        %v2215 = vadd.f32 %v2207, %v2212
        %v2216 = vpack.c.bf16 %v2215, %v2214
        %s2217 = scalar_lea.vmem %s4, 16
        %v2218 = vld [vmem:[%s2217] sm:$0xf]
        %v2219 = vld [vmem:[%s2217 + $0x4] sm:$0xf]
        %v2220 = vld [vmem:[%s2217 + $0x8] sm:$0xf]
        %v2221 = vld [vmem:[%s2217 + $0xc] sm:$0xf]
        %s2222 = scalar_lea.vmem %s5, 1
        %v2223 = vld [vmem:[%s2222] sm:$0x1]
        %v2225 = vlaneseq
        %v2226 = vshrl.u32 %v2225, 7
        %v2227 = vsub.s32 0, %v2226
        %v2228 = vrot.slane %v2223, %v2227
        %v2234 = vunpack.c.l.b16 %v2218
        %v2235 = vunpack.c.l.b16 %v2219
        %v2236 = vunpack.c.l.b16 %v2220
        %v2237 = vunpack.c.l.b16 %v2221
        %v2238 = vpack.c.b16 %v2235, %v2234
        %v2239 = vpack.c.b16 %v2237, %v2236
        %v2243 = vsel %vm858, %v2216, 0
        %2245 = vmatprep.subr.bf16.mxu0 0
        %2246 = vmatpush1.bf16.msra.mxu0 %v2238
        %2247 = vmatprep.subr.bf16.mxu0 0
        %2248 = vmatpush1.bf16.msra.mxu0 %v2239
        %2249 = vmatprep.subr.bf16.mxu0 0
        %2250 = vmatpush1.bf16.msra.mxu0 0
        %2251 = vmatprep.subr.bf16.mxu0 0
        %2252 = vmatpush1.bf16.msra.mxu0 0
        %2253 = vmatprep.subr.bf16.mxu0 0
        %2254 = vmatpush1.bf16.msra.mxu0 0
        %2255 = vmatprep.subr.bf16.mxu0 0
        %2256 = vmatpush1.bf16.msra.mxu0 0
        %2257 = vmatprep.subr.bf16.mxu0 0
        %2258 = vmatpush1.bf16.msra.mxu0 0
        %2259 = vmatprep.subr.bf16.mxu0 0
        %2260 = vmatpush1.bf16.msra.mxu0 0
        %2261 = vmatprep.subr.bf16.mxu0 0
        %2262 = vmatpush1.bf16.msra.mxu0 0
        %2263 = vmatprep.subr.bf16.mxu0 0
        %2264 = vmatpush1.bf16.msra.mxu0 0
        %2265 = vmatprep.subr.bf16.mxu0 0
        %2266 = vmatpush1.bf16.msra.mxu0 0
        %2267 = vmatprep.subr.bf16.mxu0 0
        %2268 = vmatpush1.bf16.msra.mxu0 0
        %2269 = vmatprep.subr.bf16.mxu0 0
        %2270 = vmatpush1.bf16.msra.mxu0 0
        %2271 = vmatprep.subr.bf16.mxu0 0
        %2272 = vmatpush1.bf16.msra.mxu0 0
        %2273 = vmatprep.subr.bf16.mxu0 0
        %2274 = vmatpush1.bf16.msra.mxu0 0
        %2275 = vmatprep.subr.bf16.mxu0 0
        %2276 = vmatpush1.bf16.msra.mxu0 0
        %2277 = vmatprep.mubr.bf16.mxu0 0
        %2278 = vmatmul.mubr.bf16.gmra.mrb[0].mxu0 %v2243
        %v2279 = vpop.f32.mrb[0].mxu0
        %v2280 = vadd.f32 %v2228, %v2279
        %v2281 = vpop.f32.mrb[0].mxu0
        %v2282 = vpop.f32.mrb[0].mxu0
        %v2283 = vadd.f32 %v2228, %v2282
        %v2284 = vpop.f32.mrb[0].mxu0
        %2285 = vdwg.mxu0
        %2288 = vrot.lane.b32.xlu0 %v2280, 96
        %v2289 = vpop.permute.xlu0 %2288
        %2290 = vrot.lane.b32.xlu0 %v2283, 96
        %v2291 = vpop.permute.xlu0 %2290
        %v2292 = vsel %vm909, %v2280, 0
        %v2294 = vsel %vm909, %v2283, 0
        %v2296 = vsel %vm909, %v2289, 0
        %v2298 = vsel %vm909, %v2291, 0
        %2300 = vmatprep.subr.mxu0 0.0
        %2301 = vmatpush1.xpose.msra.mxu0 %v2296
        %2302 = vmatprep.subr.mxu0 0.0
        %2303 = vmatpush1.xpose.msra.mxu0 %v2298
        %2304 = vmatprep.subr.mxu0 0.0
        %2305 = vmatpush1.xpose.msra.mxu0 0.0
        %2306 = vmatprep.subr.mxu0 0.0
        %2307 = vmatpush1.xpose.msra.mxu0 0.0
        %2308 = vmatprep.subr.mxu0 0.0
        %2309 = vmatpush1.xpose.msra.mxu0 0.0
        %2310 = vmatprep.subr.mxu0 0.0
        %2311 = vmatpush1.xpose.msra.mxu0 0.0
        %2312 = vmatprep.subr.mxu0 0.0
        %2313 = vmatpush1.xpose.msra.mxu0 0.0
        %2314 = vmatprep.subr.mxu0 0.0
        %2315 = vmatpush1.xpose.msra.mxu0 0.0
        %2316 = vmatprep.subr.mxu0 0.0
        %2317 = vmatpush1.xpose.msra.mxu0 0.0
        %2318 = vmatprep.subr.mxu0 0.0
        %2319 = vmatpush1.xpose.msra.mxu0 0.0
        %2320 = vmatprep.subr.mxu0 0.0
        %2321 = vmatpush1.xpose.msra.mxu0 0.0
        %2322 = vmatprep.subr.mxu0 0.0
        %2323 = vmatpush1.xpose.msra.mxu0 0.0
        %2324 = vmatprep.subr.mxu0 0.0
        %2325 = vmatpush1.xpose.msra.mxu0 0.0
        %2326 = vmatprep.subr.mxu0 0.0
        %2327 = vmatpush1.xpose.msra.mxu0 0.0
        %2328 = vmatprep.subr.mxu0 0.0
        %2329 = vmatpush1.xpose.msra.mxu0 0.0
        %2330 = vmatprep.subr.mxu0 0.0
        %2331 = vmatpush1.xpose.msra.mxu0 0.0
        %2332 = vmatprep.subr.mxu0 0.0
        %2333 = vmatpush1.xpose.msra.mxu0 0.0
        %2334 = vmatprep.subr.mxu0 0.0
        %2335 = vmatpush1.xpose.msra.mxu0 0.0
        %2336 = vmatprep.subr.mxu0 0.0
        %2337 = vmatpush1.xpose.msra.mxu0 0.0
        %2338 = vmatprep.subr.mxu0 0.0
        %2339 = vmatpush1.xpose.msra.mxu0 0.0
        %2340 = vmatprep.subr.mxu0 0.0
        %2341 = vmatpush1.xpose.msra.mxu0 0.0
        %2342 = vmatprep.subr.mxu0 0.0
        %2343 = vmatpush1.xpose.msra.mxu0 0.0
        %2344 = vmatprep.subr.mxu0 0.0
        %2345 = vmatpush1.xpose.msra.mxu0 0.0
        %2346 = vmatprep.subr.mxu0 0.0
        %2347 = vmatpush1.xpose.msra.mxu0 0.0
        %2348 = vmatprep.subr.mxu0 0.0
        %2349 = vmatpush1.xpose.msra.mxu0 0.0
        %2350 = vmatprep.subr.mxu0 0.0
        %2351 = vmatpush1.xpose.msra.mxu0 0.0
        %2352 = vmatprep.subr.mxu0 0.0
        %2353 = vmatpush1.xpose.msra.mxu0 0.0
        %2354 = vmatprep.subr.mxu0 0.0
        %2355 = vmatpush1.xpose.msra.mxu0 0.0
        %2356 = vmatprep.subr.mxu0 0.0
        %2357 = vmatpush1.xpose.msra.mxu0 0.0
        %2358 = vmatprep.subr.mxu0 0.0
        %2359 = vmatpush1.xpose.msra.mxu0 0.0
        %2360 = vmatprep.subr.mxu0 0.0
        %2361 = vmatpush1.xpose.msra.mxu0 0.0
        %2362 = vmatprep.subr.mxu0 0.0
        %2363 = vmatpush1.xpose.msra.mxu0 0.0
        %2364 = vmatprep.mubr.f32.mxu0 0.0
        %2365 = vmatmul.mubr.f32.gmra.mrb[0].mxu0 %v2292
        %v2366 = vpop.f32.mrb[0].mxu0
        %v2367 = vadd.f32 0.0, %v2366
        %v2368 = vpop.f32.mrb[0].mxu0
        %2369 = vmatprep.mubr.f32.mxu0 0.0
        %2370 = vmatmul.mubr.f32.gmra.mrb[0].mxu0 %v2294
        %v2371 = vpop.f32.mrb[0].mxu0
        %v2372 = vadd.f32 0.0, %v2371
        %v2373 = vpop.f32.mrb[0].mxu0
        %2374 = vdwg.mxu0
        %v2375 = vsel %vm993, %v2367, -inf
        %2376 = vmax.xlane.f32.xlu0 %v2375
        %v2377 = vpop.xlane.xlu0 %2376
        %v2378 = vsel %vm993, %v2372, -inf
        %2379 = vmax.xlane.f32.xlu0 %v2378
        %v2380 = vpop.xlane.xlu0 %2379
        %v2381 = vsub.f32 %v2367, %v2377
        %v2382 = vsub.f32 %v2372, %v2380
        %v2383 = vmul.f32 %v2381, 1.442695
        %v2384 = vpow.pop %v2383
        %v2385 = vmul.f32 %v2382, 1.442695
        %v2386 = vpow.pop %v2385
        %v2387 = vsel %vm993, %v2384, 0.0
        %2388 = vadd.xlane.f32.xlu0 %v2387
        %v2389 = vpop.xlane.xlu0 %2388
        %v2390 = vsel %vm993, %v2386, 0.0
        %2391 = vadd.xlane.f32.xlu0 %v2390
        %v2392 = vpop.xlane.xlu0 %2391
        %v2393 = vrcp.pop %v2389
        %v2394 = vrcp.pop %v2392
        %v2395 = vmul.f32 %v2384, %v2393
        %v2396 = vmul.f32 %v2386, %v2394
        %2397 = vrot.lane.b32.xlu0 %v2280, 64
        %v2398 = vpop.permute.xlu0 %2397
        %2399 = vrot.lane.b32.xlu0 %v2283, 64
        %v2400 = vpop.permute.xlu0 %2399
        %v2404 = vsel %vm993, %v2395, 0
        %v2407 = vsel %vm993, %v2396, 0
        %2409 = vmatprep.subr.mxu0 0.0
        %2410 = vmatpush1.msra.mxu0 %v2398
        %2411 = vmatprep.subr.mxu0 0.0
        %2412 = vmatpush1.msra.mxu0 %v2400
        %2413 = vmatprep.subr.mxu0 0.0
        %2414 = vmatpush1.msra.mxu0 0.0
        %2415 = vmatprep.subr.mxu0 0.0
        %2416 = vmatpush1.msra.mxu0 0.0
        %2417 = vmatprep.subr.mxu0 0.0
        %2418 = vmatpush1.msra.mxu0 0.0
        %2419 = vmatprep.subr.mxu0 0.0
        %2420 = vmatpush1.msra.mxu0 0.0
        %2421 = vmatprep.subr.mxu0 0.0
        %2422 = vmatpush1.msra.mxu0 0.0
        %2423 = vmatprep.subr.mxu0 0.0
        %2424 = vmatpush1.msra.mxu0 0.0
        %2425 = vmatprep.subr.mxu0 0.0
        %2426 = vmatpush1.msra.mxu0 0.0
        %2427 = vmatprep.subr.mxu0 0.0
        %2428 = vmatpush1.msra.mxu0 0.0
        %2429 = vmatprep.subr.mxu0 0.0
        %2430 = vmatpush1.msra.mxu0 0.0
        %2431 = vmatprep.subr.mxu0 0.0
        %2432 = vmatpush1.msra.mxu0 0.0
        %2433 = vmatprep.subr.mxu0 0.0
        %2434 = vmatpush1.msra.mxu0 0.0
        %2435 = vmatprep.subr.mxu0 0.0
        %2436 = vmatpush1.msra.mxu0 0.0
        %2437 = vmatprep.subr.mxu0 0.0
        %2438 = vmatpush1.msra.mxu0 0.0
        %2439 = vmatprep.subr.mxu0 0.0
        %2440 = vmatpush1.msra.mxu0 0.0
        %2441 = vmatprep.subr.mxu0 0.0
        %2442 = vmatpush1.msra.mxu0 0.0
        %2443 = vmatprep.subr.mxu0 0.0
        %2444 = vmatpush1.msra.mxu0 0.0
        %2445 = vmatprep.subr.mxu0 0.0
        %2446 = vmatpush1.msra.mxu0 0.0
        %2447 = vmatprep.subr.mxu0 0.0
        %2448 = vmatpush1.msra.mxu0 0.0
        %2449 = vmatprep.subr.mxu0 0.0
        %2450 = vmatpush1.msra.mxu0 0.0
        %2451 = vmatprep.subr.mxu0 0.0
        %2452 = vmatpush1.msra.mxu0 0.0
        %2453 = vmatprep.subr.mxu0 0.0
        %2454 = vmatpush1.msra.mxu0 0.0
        %2455 = vmatprep.subr.mxu0 0.0
        %2456 = vmatpush1.msra.mxu0 0.0
        %2457 = vmatprep.subr.mxu0 0.0
        %2458 = vmatpush1.msra.mxu0 0.0
        %2459 = vmatprep.subr.mxu0 0.0
        %2460 = vmatpush1.msra.mxu0 0.0
        %2461 = vmatprep.subr.mxu0 0.0
        %2462 = vmatpush1.msra.mxu0 0.0
        %2463 = vmatprep.subr.mxu0 0.0
        %2464 = vmatpush1.msra.mxu0 0.0
        %2465 = vmatprep.subr.mxu0 0.0
        %2466 = vmatpush1.msra.mxu0 0.0
        %2467 = vmatprep.subr.mxu0 0.0
        %2468 = vmatpush1.msra.mxu0 0.0
        %2469 = vmatprep.subr.mxu0 0.0
        %2470 = vmatpush1.msra.mxu0 0.0
        %2471 = vmatprep.subr.mxu0 0.0
        %2472 = vmatpush1.msra.mxu0 0.0
        %2473 = vmatprep.mubr.f32.mxu0 0.0
        %2474 = vmatmul.mubr.f32.gmra.mrb[0].mxu0 %v2404
        %v2475 = vpop.f32.mrb[0].mxu0
        %v2476 = vadd.f32 0.0, %v2475
        %v2477 = vpop.f32.mrb[0].mxu0
        %2478 = vmatprep.mubr.f32.mxu0 0.0
        %2479 = vmatmul.mubr.f32.gmra.mrb[0].mxu0 %v2407
        %v2480 = vpop.f32.mrb[0].mxu0
        %v2481 = vadd.f32 0.0, %v2480
        %v2482 = vpop.f32.mrb[0].mxu0
        %2483 = vdwg.mxu0
        %v2484 = vpack.c.bf16 %v2481, %v2476
        %s2485 = scalar_lea.vmem %s6, 16
        %v2486 = vld [vmem:[%s2485] sm:$0xf]
        %2487 = vrot.lane.b32.xlu0 %v2280, 120
        %v2488 = vpop.permute.xlu0 %2487
        %2489 = vrot.lane.b32.xlu0 %v2283, 120
        %v2490 = vpop.permute.xlu0 %2489
        %2491 = vrot.lane.b32.xlu0 %v2280, 88
        %v2492 = vpop.permute.xlu0 %2491
        %2493 = vrot.lane.b32.xlu0 %v2283, 88
        %v2494 = vpop.permute.xlu0 %2493
        %v2495 = vsel %vm909, %v2488, 0
        %v2497 = vsel %vm909, %v2490, 0
        %v2499 = vsel %vm909, %v2492, 0
        %v2501 = vsel %vm909, %v2494, 0
        %2503 = vmatprep.subr.mxu0 0.0
        %2504 = vmatpush1.xpose.msra.mxu0 %v2499
        %2505 = vmatprep.subr.mxu0 0.0
        %2506 = vmatpush1.xpose.msra.mxu0 %v2501
        %2507 = vmatprep.subr.mxu0 0.0
        %2508 = vmatpush1.xpose.msra.mxu0 0.0
        %2509 = vmatprep.subr.mxu0 0.0
        %2510 = vmatpush1.xpose.msra.mxu0 0.0
        %2511 = vmatprep.subr.mxu0 0.0
        %2512 = vmatpush1.xpose.msra.mxu0 0.0
        %2513 = vmatprep.subr.mxu0 0.0
        %2514 = vmatpush1.xpose.msra.mxu0 0.0
        %2515 = vmatprep.subr.mxu0 0.0
        %2516 = vmatpush1.xpose.msra.mxu0 0.0
        %2517 = vmatprep.subr.mxu0 0.0
        %2518 = vmatpush1.xpose.msra.mxu0 0.0
        %2519 = vmatprep.subr.mxu0 0.0
        %2520 = vmatpush1.xpose.msra.mxu0 0.0
        %2521 = vmatprep.subr.mxu0 0.0
        %2522 = vmatpush1.xpose.msra.mxu0 0.0
        %2523 = vmatprep.subr.mxu0 0.0
        %2524 = vmatpush1.xpose.msra.mxu0 0.0
        %2525 = vmatprep.subr.mxu0 0.0
        %2526 = vmatpush1.xpose.msra.mxu0 0.0
        %2527 = vmatprep.subr.mxu0 0.0
        %2528 = vmatpush1.xpose.msra.mxu0 0.0
        %2529 = vmatprep.subr.mxu0 0.0
        %2530 = vmatpush1.xpose.msra.mxu0 0.0
        %2531 = vmatprep.subr.mxu0 0.0
        %2532 = vmatpush1.xpose.msra.mxu0 0.0
        %2533 = vmatprep.subr.mxu0 0.0
        %2534 = vmatpush1.xpose.msra.mxu0 0.0
        %2535 = vmatprep.subr.mxu0 0.0
        %2536 = vmatpush1.xpose.msra.mxu0 0.0
        %2537 = vmatprep.subr.mxu0 0.0
        %2538 = vmatpush1.xpose.msra.mxu0 0.0
        %2539 = vmatprep.subr.mxu0 0.0
        %2540 = vmatpush1.xpose.msra.mxu0 0.0
        %2541 = vmatprep.subr.mxu0 0.0
        %2542 = vmatpush1.xpose.msra.mxu0 0.0
        %2543 = vmatprep.subr.mxu0 0.0
        %2544 = vmatpush1.xpose.msra.mxu0 0.0
        %2545 = vmatprep.subr.mxu0 0.0
        %2546 = vmatpush1.xpose.msra.mxu0 0.0
        %2547 = vmatprep.subr.mxu0 0.0
        %2548 = vmatpush1.xpose.msra.mxu0 0.0
        %2549 = vmatprep.subr.mxu0 0.0
        %2550 = vmatpush1.xpose.msra.mxu0 0.0
        %2551 = vmatprep.subr.mxu0 0.0
        %2552 = vmatpush1.xpose.msra.mxu0 0.0
        %2553 = vmatprep.subr.mxu0 0.0
        %2554 = vmatpush1.xpose.msra.mxu0 0.0
        %2555 = vmatprep.subr.mxu0 0.0
        %2556 = vmatpush1.xpose.msra.mxu0 0.0
        %2557 = vmatprep.subr.mxu0 0.0
        %2558 = vmatpush1.xpose.msra.mxu0 0.0
        %2559 = vmatprep.subr.mxu0 0.0
        %2560 = vmatpush1.xpose.msra.mxu0 0.0
        %2561 = vmatprep.subr.mxu0 0.0
        %2562 = vmatpush1.xpose.msra.mxu0 0.0
        %2563 = vmatprep.subr.mxu0 0.0
        %2564 = vmatpush1.xpose.msra.mxu0 0.0
        %2565 = vmatprep.subr.mxu0 0.0
        %2566 = vmatpush1.xpose.msra.mxu0 0.0
        %2567 = vmatprep.mubr.f32.mxu0 0.0
        %2568 = vmatmul.mubr.f32.gmra.mrb[0].mxu0 %v2495
        %v2569 = vpop.f32.mrb[0].mxu0
        %v2570 = vadd.f32 0.0, %v2569
        %v2571 = vpop.f32.mrb[0].mxu0
        %2572 = vmatprep.mubr.f32.mxu0 0.0
        %2573 = vmatmul.mubr.f32.gmra.mrb[0].mxu0 %v2497
        %v2574 = vpop.f32.mrb[0].mxu0
        %v2575 = vadd.f32 0.0, %v2574
        %v2576 = vpop.f32.mrb[0].mxu0
        %2577 = vdwg.mxu0
        %v2578 = vsel %vm993, %v2570, -inf
        %2579 = vmax.xlane.f32.xlu0 %v2578
        %v2580 = vpop.xlane.xlu0 %2579
        %v2581 = vsel %vm993, %v2575, -inf
        %2582 = vmax.xlane.f32.xlu0 %v2581
        %v2583 = vpop.xlane.xlu0 %2582
        %v2584 = vsub.f32 %v2570, %v2580
        %v2585 = vsub.f32 %v2575, %v2583
        %v2586 = vmul.f32 %v2584, 1.442695
        %v2587 = vpow.pop %v2586
        %v2588 = vmul.f32 %v2585, 1.442695
        %v2589 = vpow.pop %v2588
        %v2590 = vsel %vm993, %v2587, 0.0
        %2591 = vadd.xlane.f32.xlu0 %v2590
        %v2592 = vpop.xlane.xlu0 %2591
        %v2593 = vsel %vm993, %v2589, 0.0
        %2594 = vadd.xlane.f32.xlu0 %v2593
        %v2595 = vpop.xlane.xlu0 %2594
        %v2596 = vrcp.pop %v2592
        %v2597 = vrcp.pop %v2595
        %v2598 = vmul.f32 %v2587, %v2596
        %v2599 = vmul.f32 %v2589, %v2597
        %2600 = vrot.lane.b32.xlu0 %v2280, 56
        %v2601 = vpop.permute.xlu0 %2600
        %2602 = vrot.lane.b32.xlu0 %v2283, 56
        %v2603 = vpop.permute.xlu0 %2602
        %v2607 = vsel %vm993, %v2598, 0
        %v2610 = vsel %vm993, %v2599, 0
        %2612 = vmatprep.subr.mxu0 0.0
        %2613 = vmatpush1.msra.mxu0 %v2601
        %2614 = vmatprep.subr.mxu0 0.0
        %2615 = vmatpush1.msra.mxu0 %v2603
        %2616 = vmatprep.subr.mxu0 0.0
        %2617 = vmatpush1.msra.mxu0 0.0
        %2618 = vmatprep.subr.mxu0 0.0
        %2619 = vmatpush1.msra.mxu0 0.0
        %2620 = vmatprep.subr.mxu0 0.0
        %2621 = vmatpush1.msra.mxu0 0.0
        %2622 = vmatprep.subr.mxu0 0.0
        %2623 = vmatpush1.msra.mxu0 0.0
        %2624 = vmatprep.subr.mxu0 0.0
        %2625 = vmatpush1.msra.mxu0 0.0
        %2626 = vmatprep.subr.mxu0 0.0
        %2627 = vmatpush1.msra.mxu0 0.0
        %2628 = vmatprep.subr.mxu0 0.0
        %2629 = vmatpush1.msra.mxu0 0.0
        %2630 = vmatprep.subr.mxu0 0.0
        %2631 = vmatpush1.msra.mxu0 0.0
        %2632 = vmatprep.subr.mxu0 0.0
        %2633 = vmatpush1.msra.mxu0 0.0
        %2634 = vmatprep.subr.mxu0 0.0
        %2635 = vmatpush1.msra.mxu0 0.0
        %2636 = vmatprep.subr.mxu0 0.0
        %2637 = vmatpush1.msra.mxu0 0.0
        %2638 = vmatprep.subr.mxu0 0.0
        %2639 = vmatpush1.msra.mxu0 0.0
        %2640 = vmatprep.subr.mxu0 0.0
        %2641 = vmatpush1.msra.mxu0 0.0
        %2642 = vmatprep.subr.mxu0 0.0
        %2643 = vmatpush1.msra.mxu0 0.0
        %2644 = vmatprep.subr.mxu0 0.0
        %2645 = vmatpush1.msra.mxu0 0.0
        %2646 = vmatprep.subr.mxu0 0.0
        %2647 = vmatpush1.msra.mxu0 0.0
        %2648 = vmatprep.subr.mxu0 0.0
        %2649 = vmatpush1.msra.mxu0 0.0
        %2650 = vmatprep.subr.mxu0 0.0
        %2651 = vmatpush1.msra.mxu0 0.0
        %2652 = vmatprep.subr.mxu0 0.0
        %2653 = vmatpush1.msra.mxu0 0.0
        %2654 = vmatprep.subr.mxu0 0.0
        %2655 = vmatpush1.msra.mxu0 0.0
        %2656 = vmatprep.subr.mxu0 0.0
        %2657 = vmatpush1.msra.mxu0 0.0
        %2658 = vmatprep.subr.mxu0 0.0
        %2659 = vmatpush1.msra.mxu0 0.0
        %2660 = vmatprep.subr.mxu0 0.0
        %2661 = vmatpush1.msra.mxu0 0.0
        %2662 = vmatprep.subr.mxu0 0.0
        %2663 = vmatpush1.msra.mxu0 0.0
        %2664 = vmatprep.subr.mxu0 0.0
        %2665 = vmatpush1.msra.mxu0 0.0
        %2666 = vmatprep.subr.mxu0 0.0
        %2667 = vmatpush1.msra.mxu0 0.0
        %2668 = vmatprep.subr.mxu0 0.0
        %2669 = vmatpush1.msra.mxu0 0.0
        %2670 = vmatprep.subr.mxu0 0.0
        %2671 = vmatpush1.msra.mxu0 0.0
        %2672 = vmatprep.subr.mxu0 0.0
        %2673 = vmatpush1.msra.mxu0 0.0
        %2674 = vmatprep.subr.mxu0 0.0
        %2675 = vmatpush1.msra.mxu0 0.0
        %2676 = vmatprep.mubr.f32.mxu0 0.0
        %2677 = vmatmul.mubr.f32.gmra.mrb[0].mxu0 %v2607
        %v2678 = vpop.f32.mrb[0].mxu0
        %v2679 = vadd.f32 0.0, %v2678
        %v2680 = vpop.f32.mrb[0].mxu0
        %2681 = vmatprep.mubr.f32.mxu0 0.0
        %2682 = vmatmul.mubr.f32.gmra.mrb[0].mxu0 %v2610
        %v2683 = vpop.f32.mrb[0].mxu0
        %v2684 = vadd.f32 0.0, %v2683
        %v2685 = vpop.f32.mrb[0].mxu0
        %2686 = vdwg.mxu0
        %v2687 = vpack.c.bf16 %v2684, %v2679
        %s2688 = scalar_lea.vmem %s6, 20
        %v2689 = vld [vmem:[%s2688] sm:$0xf]
        %v2691 = vsel %vm909, %v2687, 0
        %v2694 = vsel %vm1311, %v2689, 0
        %2696 = vmatprep.subr.bf16.mxu0 0
        %2697 = vmatpush1.bf16.msra.mxu0 %v2694
        %2698 = vmatprep.subr.bf16.mxu0 0
        %2699 = vmatpush1.bf16.msra.mxu0 0
        %2700 = vmatprep.subr.bf16.mxu0 0
        %2701 = vmatpush1.bf16.msra.mxu0 0
        %2702 = vmatprep.subr.bf16.mxu0 0
        %2703 = vmatpush1.bf16.msra.mxu0 0
        %2704 = vmatprep.subr.bf16.mxu0 0
        %2705 = vmatpush1.bf16.msra.mxu0 0
        %2706 = vmatprep.subr.bf16.mxu0 0
        %2707 = vmatpush1.bf16.msra.mxu0 0
        %2708 = vmatprep.subr.bf16.mxu0 0
        %2709 = vmatpush1.bf16.msra.mxu0 0
        %2710 = vmatprep.subr.bf16.mxu0 0
        %2711 = vmatpush1.bf16.msra.mxu0 0
        %2712 = vmatprep.subr.bf16.mxu0 0
        %2713 = vmatpush1.bf16.msra.mxu0 0
        %2714 = vmatprep.subr.bf16.mxu0 0
        %2715 = vmatpush1.bf16.msra.mxu0 0
        %2716 = vmatprep.subr.bf16.mxu0 0
        %2717 = vmatpush1.bf16.msra.mxu0 0
        %2718 = vmatprep.subr.bf16.mxu0 0
        %2719 = vmatpush1.bf16.msra.mxu0 0
        %2720 = vmatprep.subr.bf16.mxu0 0
        %2721 = vmatpush1.bf16.msra.mxu0 0
        %2722 = vmatprep.subr.bf16.mxu0 0
        %2723 = vmatpush1.bf16.msra.mxu0 0
        %2724 = vmatprep.subr.bf16.mxu0 0
        %2725 = vmatpush1.bf16.msra.mxu0 0
        %2726 = vmatprep.subr.bf16.mxu0 0
        %2727 = vmatpush1.bf16.msra.mxu0 0
        %2728 = vmatprep.mubr.bf16.mxu0 0
        %2729 = vmatmul.mubr.bf16.gmra.mrb[0].mxu0 %v2691
        %v2730 = vpop.f32.mrb[0].mxu0
        %v2731 = vadd.f32 0.0, %v2730
        %v2732 = vpop.f32.mrb[0].mxu0
        %v2733 = vpop.f32.mrb[0].mxu0
        %v2734 = vadd.f32 0.0, %v2733
        %v2735 = vpop.f32.mrb[0].mxu0
        %2736 = vdwg.mxu0
        %v2738 = vsel %vm909, %v2484, 0
        %v2741 = vsel %vm1311, %v2486, 0
        %2743 = vmatprep.subr.bf16.mxu0 0
        %2744 = vmatpush1.bf16.msra.mxu0 %v2741
        %2745 = vmatprep.subr.bf16.mxu0 0
        %2746 = vmatpush1.bf16.msra.mxu0 0
        %2747 = vmatprep.subr.bf16.mxu0 0
        %2748 = vmatpush1.bf16.msra.mxu0 0
        %2749 = vmatprep.subr.bf16.mxu0 0
        %2750 = vmatpush1.bf16.msra.mxu0 0
        %2751 = vmatprep.subr.bf16.mxu0 0
        %2752 = vmatpush1.bf16.msra.mxu0 0
        %2753 = vmatprep.subr.bf16.mxu0 0
        %2754 = vmatpush1.bf16.msra.mxu0 0
        %2755 = vmatprep.subr.bf16.mxu0 0
        %2756 = vmatpush1.bf16.msra.mxu0 0
        %2757 = vmatprep.subr.bf16.mxu0 0
        %2758 = vmatpush1.bf16.msra.mxu0 0
        %2759 = vmatprep.subr.bf16.mxu0 0
        %2760 = vmatpush1.bf16.msra.mxu0 0
        %2761 = vmatprep.subr.bf16.mxu0 0
        %2762 = vmatpush1.bf16.msra.mxu0 0
        %2763 = vmatprep.subr.bf16.mxu0 0
        %2764 = vmatpush1.bf16.msra.mxu0 0
        %2765 = vmatprep.subr.bf16.mxu0 0
        %2766 = vmatpush1.bf16.msra.mxu0 0
        %2767 = vmatprep.subr.bf16.mxu0 0
        %2768 = vmatpush1.bf16.msra.mxu0 0
        %2769 = vmatprep.subr.bf16.mxu0 0
        %2770 = vmatpush1.bf16.msra.mxu0 0
        %2771 = vmatprep.subr.bf16.mxu0 0
        %2772 = vmatpush1.bf16.msra.mxu0 0
        %2773 = vmatprep.subr.bf16.mxu0 0
        %2774 = vmatpush1.bf16.msra.mxu0 0
        %2775 = vmatprep.mubr.bf16.mxu0 0
        %2776 = vmatmul.mubr.bf16.gmra.mrb[0].mxu0 %v2738
        %v2777 = vpop.f32.mrb[0].mxu0
        %v2778 = vadd.f32 %v2731, %v2777
        %v2779 = vpop.f32.mrb[0].mxu0
        %v2780 = vpop.f32.mrb[0].mxu0
        %v2781 = vadd.f32 %v2734, %v2780
        %v2782 = vpop.f32.mrb[0].mxu0
        %2783 = vdwg.mxu0
        %2784 = vrot.lane.b32.xlu0 %v2280, 112
        %v2785 = vpop.permute.xlu0 %2784
        %2786 = vrot.lane.b32.xlu0 %v2283, 112
        %v2787 = vpop.permute.xlu0 %2786
        %2788 = vrot.lane.b32.xlu0 %v2280, 80
        %v2789 = vpop.permute.xlu0 %2788
        %2790 = vrot.lane.b32.xlu0 %v2283, 80
        %v2791 = vpop.permute.xlu0 %2790
        %v2792 = vsel %vm909, %v2785, 0
        %v2794 = vsel %vm909, %v2787, 0
        %v2796 = vsel %vm909, %v2789, 0
        %v2798 = vsel %vm909, %v2791, 0
        %2800 = vmatprep.subr.mxu0 0.0
        %2801 = vmatpush1.xpose.msra.mxu0 %v2796
        %2802 = vmatprep.subr.mxu0 0.0
        %2803 = vmatpush1.xpose.msra.mxu0 %v2798
        %2804 = vmatprep.subr.mxu0 0.0
        %2805 = vmatpush1.xpose.msra.mxu0 0.0
        %2806 = vmatprep.subr.mxu0 0.0
        %2807 = vmatpush1.xpose.msra.mxu0 0.0
        %2808 = vmatprep.subr.mxu0 0.0
        %2809 = vmatpush1.xpose.msra.mxu0 0.0
        %2810 = vmatprep.subr.mxu0 0.0
        %2811 = vmatpush1.xpose.msra.mxu0 0.0
        %2812 = vmatprep.subr.mxu0 0.0
        %2813 = vmatpush1.xpose.msra.mxu0 0.0
        %2814 = vmatprep.subr.mxu0 0.0
        %2815 = vmatpush1.xpose.msra.mxu0 0.0
        %2816 = vmatprep.subr.mxu0 0.0
        %2817 = vmatpush1.xpose.msra.mxu0 0.0
        %2818 = vmatprep.subr.mxu0 0.0
        %2819 = vmatpush1.xpose.msra.mxu0 0.0
        %2820 = vmatprep.subr.mxu0 0.0
        %2821 = vmatpush1.xpose.msra.mxu0 0.0
        %2822 = vmatprep.subr.mxu0 0.0
        %2823 = vmatpush1.xpose.msra.mxu0 0.0
        %2824 = vmatprep.subr.mxu0 0.0
        %2825 = vmatpush1.xpose.msra.mxu0 0.0
        %2826 = vmatprep.subr.mxu0 0.0
        %2827 = vmatpush1.xpose.msra.mxu0 0.0
        %2828 = vmatprep.subr.mxu0 0.0
        %2829 = vmatpush1.xpose.msra.mxu0 0.0
        %2830 = vmatprep.subr.mxu0 0.0
        %2831 = vmatpush1.xpose.msra.mxu0 0.0
        %2832 = vmatprep.subr.mxu0 0.0
        %2833 = vmatpush1.xpose.msra.mxu0 0.0
        %2834 = vmatprep.subr.mxu0 0.0
        %2835 = vmatpush1.xpose.msra.mxu0 0.0
        %2836 = vmatprep.subr.mxu0 0.0
        %2837 = vmatpush1.xpose.msra.mxu0 0.0
        %2838 = vmatprep.subr.mxu0 0.0
        %2839 = vmatpush1.xpose.msra.mxu0 0.0
        %2840 = vmatprep.subr.mxu0 0.0
        %2841 = vmatpush1.xpose.msra.mxu0 0.0
        %2842 = vmatprep.subr.mxu0 0.0
        %2843 = vmatpush1.xpose.msra.mxu0 0.0
        %2844 = vmatprep.subr.mxu0 0.0
        %2845 = vmatpush1.xpose.msra.mxu0 0.0
        %2846 = vmatprep.subr.mxu0 0.0
        %2847 = vmatpush1.xpose.msra.mxu0 0.0
        %2848 = vmatprep.subr.mxu0 0.0
        %2849 = vmatpush1.xpose.msra.mxu0 0.0
        %2850 = vmatprep.subr.mxu0 0.0
        %2851 = vmatpush1.xpose.msra.mxu0 0.0
        %2852 = vmatprep.subr.mxu0 0.0
        %2853 = vmatpush1.xpose.msra.mxu0 0.0
        %2854 = vmatprep.subr.mxu0 0.0
        %2855 = vmatpush1.xpose.msra.mxu0 0.0
        %2856 = vmatprep.subr.mxu0 0.0
        %2857 = vmatpush1.xpose.msra.mxu0 0.0
        %2858 = vmatprep.subr.mxu0 0.0
        %2859 = vmatpush1.xpose.msra.mxu0 0.0
        %2860 = vmatprep.subr.mxu0 0.0
        %2861 = vmatpush1.xpose.msra.mxu0 0.0
        %2862 = vmatprep.subr.mxu0 0.0
        %2863 = vmatpush1.xpose.msra.mxu0 0.0
        %2864 = vmatprep.mubr.f32.mxu0 0.0
        %2865 = vmatmul.mubr.f32.gmra.mrb[0].mxu0 %v2792
        %v2866 = vpop.f32.mrb[0].mxu0
        %v2867 = vadd.f32 0.0, %v2866
        %v2868 = vpop.f32.mrb[0].mxu0
        %2869 = vmatprep.mubr.f32.mxu0 0.0
        %2870 = vmatmul.mubr.f32.gmra.mrb[0].mxu0 %v2794
        %v2871 = vpop.f32.mrb[0].mxu0
        %v2872 = vadd.f32 0.0, %v2871
        %v2873 = vpop.f32.mrb[0].mxu0
        %2874 = vdwg.mxu0
        %v2875 = vsel %vm993, %v2867, -inf
        %2876 = vmax.xlane.f32.xlu0 %v2875
        %v2877 = vpop.xlane.xlu0 %2876
        %v2878 = vsel %vm993, %v2872, -inf
        %2879 = vmax.xlane.f32.xlu0 %v2878
        %v2880 = vpop.xlane.xlu0 %2879
        %v2881 = vsub.f32 %v2867, %v2877
        %v2882 = vsub.f32 %v2872, %v2880
        %v2883 = vmul.f32 %v2881, 1.442695
        %v2884 = vpow.pop %v2883
        %v2885 = vmul.f32 %v2882, 1.442695
        %v2886 = vpow.pop %v2885
        %v2887 = vsel %vm993, %v2884, 0.0
        %2888 = vadd.xlane.f32.xlu0 %v2887
        %v2889 = vpop.xlane.xlu0 %2888
        %v2890 = vsel %vm993, %v2886, 0.0
        %2891 = vadd.xlane.f32.xlu0 %v2890
        %v2892 = vpop.xlane.xlu0 %2891
        %v2893 = vrcp.pop %v2889
        %v2894 = vrcp.pop %v2892
        %v2895 = vmul.f32 %v2884, %v2893
        %v2896 = vmul.f32 %v2886, %v2894
        %2897 = vrot.lane.b32.xlu0 %v2280, 48
        %v2898 = vpop.permute.xlu0 %2897
        %2899 = vrot.lane.b32.xlu0 %v2283, 48
        %v2900 = vpop.permute.xlu0 %2899
        %v2904 = vsel %vm993, %v2895, 0
        %v2907 = vsel %vm993, %v2896, 0
        %2909 = vmatprep.subr.mxu0 0.0
        %2910 = vmatpush1.msra.mxu0 %v2898
        %2911 = vmatprep.subr.mxu0 0.0
        %2912 = vmatpush1.msra.mxu0 %v2900
        %2913 = vmatprep.subr.mxu0 0.0
        %2914 = vmatpush1.msra.mxu0 0.0
        %2915 = vmatprep.subr.mxu0 0.0
        %2916 = vmatpush1.msra.mxu0 0.0
        %2917 = vmatprep.subr.mxu0 0.0
        %2918 = vmatpush1.msra.mxu0 0.0
        %2919 = vmatprep.subr.mxu0 0.0
        %2920 = vmatpush1.msra.mxu0 0.0
        %2921 = vmatprep.subr.mxu0 0.0
        %2922 = vmatpush1.msra.mxu0 0.0
        %2923 = vmatprep.subr.mxu0 0.0
        %2924 = vmatpush1.msra.mxu0 0.0
        %2925 = vmatprep.subr.mxu0 0.0
        %2926 = vmatpush1.msra.mxu0 0.0
        %2927 = vmatprep.subr.mxu0 0.0
        %2928 = vmatpush1.msra.mxu0 0.0
        %2929 = vmatprep.subr.mxu0 0.0
        %2930 = vmatpush1.msra.mxu0 0.0
        %2931 = vmatprep.subr.mxu0 0.0
        %2932 = vmatpush1.msra.mxu0 0.0
        %2933 = vmatprep.subr.mxu0 0.0
        %2934 = vmatpush1.msra.mxu0 0.0
        %2935 = vmatprep.subr.mxu0 0.0
        %2936 = vmatpush1.msra.mxu0 0.0
        %2937 = vmatprep.subr.mxu0 0.0
        %2938 = vmatpush1.msra.mxu0 0.0
        %2939 = vmatprep.subr.mxu0 0.0
        %2940 = vmatpush1.msra.mxu0 0.0
        %2941 = vmatprep.subr.mxu0 0.0
        %2942 = vmatpush1.msra.mxu0 0.0
        %2943 = vmatprep.subr.mxu0 0.0
        %2944 = vmatpush1.msra.mxu0 0.0
        %2945 = vmatprep.subr.mxu0 0.0
        %2946 = vmatpush1.msra.mxu0 0.0
        %2947 = vmatprep.subr.mxu0 0.0
        %2948 = vmatpush1.msra.mxu0 0.0
        %2949 = vmatprep.subr.mxu0 0.0
        %2950 = vmatpush1.msra.mxu0 0.0
        %2951 = vmatprep.subr.mxu0 0.0
        %2952 = vmatpush1.msra.mxu0 0.0
        %2953 = vmatprep.subr.mxu0 0.0
        %2954 = vmatpush1.msra.mxu0 0.0
        %2955 = vmatprep.subr.mxu0 0.0
        %2956 = vmatpush1.msra.mxu0 0.0
        %2957 = vmatprep.subr.mxu0 0.0
        %2958 = vmatpush1.msra.mxu0 0.0
        %2959 = vmatprep.subr.mxu0 0.0
        %2960 = vmatpush1.msra.mxu0 0.0
        %2961 = vmatprep.subr.mxu0 0.0
        %2962 = vmatpush1.msra.mxu0 0.0
        %2963 = vmatprep.subr.mxu0 0.0
        %2964 = vmatpush1.msra.mxu0 0.0
        %2965 = vmatprep.subr.mxu0 0.0
        %2966 = vmatpush1.msra.mxu0 0.0
        %2967 = vmatprep.subr.mxu0 0.0
        %2968 = vmatpush1.msra.mxu0 0.0
        %2969 = vmatprep.subr.mxu0 0.0
        %2970 = vmatpush1.msra.mxu0 0.0
        %2971 = vmatprep.subr.mxu0 0.0
        %2972 = vmatpush1.msra.mxu0 0.0
        %2973 = vmatprep.mubr.f32.mxu0 0.0
        %2974 = vmatmul.mubr.f32.gmra.mrb[0].mxu0 %v2904
        %v2975 = vpop.f32.mrb[0].mxu0
        %v2976 = vadd.f32 0.0, %v2975
        %v2977 = vpop.f32.mrb[0].mxu0
        %2978 = vmatprep.mubr.f32.mxu0 0.0
        %2979 = vmatmul.mubr.f32.gmra.mrb[0].mxu0 %v2907
        %v2980 = vpop.f32.mrb[0].mxu0
        %v2981 = vadd.f32 0.0, %v2980
        %v2982 = vpop.f32.mrb[0].mxu0
        %2983 = vdwg.mxu0
        %v2984 = vpack.c.bf16 %v2981, %v2976
        %s2985 = scalar_lea.vmem %s6, 24
        %v2986 = vld [vmem:[%s2985] sm:$0xf]
        %v2988 = vsel %vm909, %v2984, 0
        %v2991 = vsel %vm1311, %v2986, 0
        %2993 = vmatprep.subr.bf16.mxu0 0
        %2994 = vmatpush1.bf16.msra.mxu0 %v2991
        %2995 = vmatprep.subr.bf16.mxu0 0
        %2996 = vmatpush1.bf16.msra.mxu0 0
        %2997 = vmatprep.subr.bf16.mxu0 0
        %2998 = vmatpush1.bf16.msra.mxu0 0
        %2999 = vmatprep.subr.bf16.mxu0 0
        %3000 = vmatpush1.bf16.msra.mxu0 0
        %3001 = vmatprep.subr.bf16.mxu0 0
        %3002 = vmatpush1.bf16.msra.mxu0 0
        %3003 = vmatprep.subr.bf16.mxu0 0
        %3004 = vmatpush1.bf16.msra.mxu0 0
        %3005 = vmatprep.subr.bf16.mxu0 0
        %3006 = vmatpush1.bf16.msra.mxu0 0
        %3007 = vmatprep.subr.bf16.mxu0 0
        %3008 = vmatpush1.bf16.msra.mxu0 0
        %3009 = vmatprep.subr.bf16.mxu0 0
        %3010 = vmatpush1.bf16.msra.mxu0 0
        %3011 = vmatprep.subr.bf16.mxu0 0
        %3012 = vmatpush1.bf16.msra.mxu0 0
        %3013 = vmatprep.subr.bf16.mxu0 0
        %3014 = vmatpush1.bf16.msra.mxu0 0
        %3015 = vmatprep.subr.bf16.mxu0 0
        %3016 = vmatpush1.bf16.msra.mxu0 0
        %3017 = vmatprep.subr.bf16.mxu0 0
        %3018 = vmatpush1.bf16.msra.mxu0 0
        %3019 = vmatprep.subr.bf16.mxu0 0
        %3020 = vmatpush1.bf16.msra.mxu0 0
        %3021 = vmatprep.subr.bf16.mxu0 0
        %3022 = vmatpush1.bf16.msra.mxu0 0
        %3023 = vmatprep.subr.bf16.mxu0 0
        %3024 = vmatpush1.bf16.msra.mxu0 0
        %3025 = vmatprep.mubr.bf16.mxu0 0
        %3026 = vmatmul.mubr.bf16.gmra.mrb[0].mxu0 %v2988
        %v3027 = vpop.f32.mrb[0].mxu0
        %v3028 = vadd.f32 0.0, %v3027
        %v3029 = vpop.f32.mrb[0].mxu0
        %v3030 = vpop.f32.mrb[0].mxu0
        %v3031 = vadd.f32 0.0, %v3030
        %v3032 = vpop.f32.mrb[0].mxu0
        %3033 = vdwg.mxu0
        %v3034 = vadd.f32 %v2778, %v3028
        %v3035 = vadd.f32 %v2781, %v3031
        %3036 = vrot.lane.b32.xlu0 %v2280, 104
        %v3037 = vpop.permute.xlu0 %3036
        %3038 = vrot.lane.b32.xlu0 %v2283, 104
        %v3039 = vpop.permute.xlu0 %3038
        %3040 = vrot.lane.b32.xlu0 %v2280, 72
        %v3041 = vpop.permute.xlu0 %3040
        %3042 = vrot.lane.b32.xlu0 %v2283, 72
        %v3043 = vpop.permute.xlu0 %3042
        %v3044 = vsel %vm909, %v3037, 0
        %v3046 = vsel %vm909, %v3039, 0
        %v3048 = vsel %vm909, %v3041, 0
        %v3050 = vsel %vm909, %v3043, 0
        %3052 = vmatprep.subr.mxu0 0.0
        %3053 = vmatpush1.xpose.msra.mxu0 %v3048
        %3054 = vmatprep.subr.mxu0 0.0
        %3055 = vmatpush1.xpose.msra.mxu0 %v3050
        %3056 = vmatprep.subr.mxu0 0.0
        %3057 = vmatpush1.xpose.msra.mxu0 0.0
        %3058 = vmatprep.subr.mxu0 0.0
        %3059 = vmatpush1.xpose.msra.mxu0 0.0
        %3060 = vmatprep.subr.mxu0 0.0
        %3061 = vmatpush1.xpose.msra.mxu0 0.0
        %3062 = vmatprep.subr.mxu0 0.0
        %3063 = vmatpush1.xpose.msra.mxu0 0.0
        %3064 = vmatprep.subr.mxu0 0.0
        %3065 = vmatpush1.xpose.msra.mxu0 0.0
        %3066 = vmatprep.subr.mxu0 0.0
        %3067 = vmatpush1.xpose.msra.mxu0 0.0
        %3068 = vmatprep.subr.mxu0 0.0
        %3069 = vmatpush1.xpose.msra.mxu0 0.0
        %3070 = vmatprep.subr.mxu0 0.0
        %3071 = vmatpush1.xpose.msra.mxu0 0.0
        %3072 = vmatprep.subr.mxu0 0.0
        %3073 = vmatpush1.xpose.msra.mxu0 0.0
        %3074 = vmatprep.subr.mxu0 0.0
        %3075 = vmatpush1.xpose.msra.mxu0 0.0
        %3076 = vmatprep.subr.mxu0 0.0
        %3077 = vmatpush1.xpose.msra.mxu0 0.0
        %3078 = vmatprep.subr.mxu0 0.0
        %3079 = vmatpush1.xpose.msra.mxu0 0.0
        %3080 = vmatprep.subr.mxu0 0.0
        %3081 = vmatpush1.xpose.msra.mxu0 0.0
        %3082 = vmatprep.subr.mxu0 0.0
        %3083 = vmatpush1.xpose.msra.mxu0 0.0
        %3084 = vmatprep.subr.mxu0 0.0
        %3085 = vmatpush1.xpose.msra.mxu0 0.0
        %3086 = vmatprep.subr.mxu0 0.0
        %3087 = vmatpush1.xpose.msra.mxu0 0.0
        %3088 = vmatprep.subr.mxu0 0.0
        %3089 = vmatpush1.xpose.msra.mxu0 0.0
        %3090 = vmatprep.subr.mxu0 0.0
        %3091 = vmatpush1.xpose.msra.mxu0 0.0
        %3092 = vmatprep.subr.mxu0 0.0
        %3093 = vmatpush1.xpose.msra.mxu0 0.0
        %3094 = vmatprep.subr.mxu0 0.0
        %3095 = vmatpush1.xpose.msra.mxu0 0.0
        %3096 = vmatprep.subr.mxu0 0.0
        %3097 = vmatpush1.xpose.msra.mxu0 0.0
        %3098 = vmatprep.subr.mxu0 0.0
        %3099 = vmatpush1.xpose.msra.mxu0 0.0
        %3100 = vmatprep.subr.mxu0 0.0
        %3101 = vmatpush1.xpose.msra.mxu0 0.0
        %3102 = vmatprep.subr.mxu0 0.0
        %3103 = vmatpush1.xpose.msra.mxu0 0.0
        %3104 = vmatprep.subr.mxu0 0.0
        %3105 = vmatpush1.xpose.msra.mxu0 0.0
        %3106 = vmatprep.subr.mxu0 0.0
        %3107 = vmatpush1.xpose.msra.mxu0 0.0
        %3108 = vmatprep.subr.mxu0 0.0
        %3109 = vmatpush1.xpose.msra.mxu0 0.0
        %3110 = vmatprep.subr.mxu0 0.0
        %3111 = vmatpush1.xpose.msra.mxu0 0.0
        %3112 = vmatprep.subr.mxu0 0.0
        %3113 = vmatpush1.xpose.msra.mxu0 0.0
        %3114 = vmatprep.subr.mxu0 0.0
        %3115 = vmatpush1.xpose.msra.mxu0 0.0
        %3116 = vmatprep.mubr.f32.mxu0 0.0
        %3117 = vmatmul.mubr.f32.gmra.mrb[0].mxu0 %v3044
        %v3118 = vpop.f32.mrb[0].mxu0
        %v3119 = vadd.f32 0.0, %v3118
        %v3120 = vpop.f32.mrb[0].mxu0
        %3121 = vmatprep.mubr.f32.mxu0 0.0
        %3122 = vmatmul.mubr.f32.gmra.mrb[0].mxu0 %v3046
        %v3123 = vpop.f32.mrb[0].mxu0
        %v3124 = vadd.f32 0.0, %v3123
        %v3125 = vpop.f32.mrb[0].mxu0
        %3126 = vdwg.mxu0
        %v3127 = vsel %vm993, %v3119, -inf
        %3128 = vmax.xlane.f32.xlu0 %v3127
        %v3129 = vpop.xlane.xlu0 %3128
        %v3130 = vsel %vm993, %v3124, -inf
        %3131 = vmax.xlane.f32.xlu0 %v3130
        %v3132 = vpop.xlane.xlu0 %3131
        %v3133 = vsub.f32 %v3119, %v3129
        %v3134 = vsub.f32 %v3124, %v3132
        %v3135 = vmul.f32 %v3133, 1.442695
        %v3136 = vpow.pop %v3135
        %v3137 = vmul.f32 %v3134, 1.442695
        %v3138 = vpow.pop %v3137
        %v3139 = vsel %vm993, %v3136, 0.0
        %3140 = vadd.xlane.f32.xlu0 %v3139
        %v3141 = vpop.xlane.xlu0 %3140
        %v3142 = vsel %vm993, %v3138, 0.0
        %3143 = vadd.xlane.f32.xlu0 %v3142
        %v3144 = vpop.xlane.xlu0 %3143
        %v3145 = vrcp.pop %v3141
        %v3146 = vrcp.pop %v3144
        %v3147 = vmul.f32 %v3136, %v3145
        %v3148 = vmul.f32 %v3138, %v3146
        %3149 = vrot.lane.b32.xlu0 %v2280, 40
        %v3150 = vpop.permute.xlu0 %3149
        %3151 = vrot.lane.b32.xlu0 %v2283, 40
        %v3152 = vpop.permute.xlu0 %3151
        %v3156 = vsel %vm993, %v3147, 0
        %v3159 = vsel %vm993, %v3148, 0
        %3161 = vmatprep.subr.mxu0 0.0
        %3162 = vmatpush1.msra.mxu0 %v3150
        %3163 = vmatprep.subr.mxu0 0.0
        %3164 = vmatpush1.msra.mxu0 %v3152
        %3165 = vmatprep.subr.mxu0 0.0
        %3166 = vmatpush1.msra.mxu0 0.0
        %3167 = vmatprep.subr.mxu0 0.0
        %3168 = vmatpush1.msra.mxu0 0.0
        %3169 = vmatprep.subr.mxu0 0.0
        %3170 = vmatpush1.msra.mxu0 0.0
        %3171 = vmatprep.subr.mxu0 0.0
        %3172 = vmatpush1.msra.mxu0 0.0
        %3173 = vmatprep.subr.mxu0 0.0
        %3174 = vmatpush1.msra.mxu0 0.0
        %3175 = vmatprep.subr.mxu0 0.0
        %3176 = vmatpush1.msra.mxu0 0.0
        %3177 = vmatprep.subr.mxu0 0.0
        %3178 = vmatpush1.msra.mxu0 0.0
        %3179 = vmatprep.subr.mxu0 0.0
        %3180 = vmatpush1.msra.mxu0 0.0
        %3181 = vmatprep.subr.mxu0 0.0
        %3182 = vmatpush1.msra.mxu0 0.0
        %3183 = vmatprep.subr.mxu0 0.0
        %3184 = vmatpush1.msra.mxu0 0.0
        %3185 = vmatprep.subr.mxu0 0.0
        %3186 = vmatpush1.msra.mxu0 0.0
        %3187 = vmatprep.subr.mxu0 0.0
        %3188 = vmatpush1.msra.mxu0 0.0
        %3189 = vmatprep.subr.mxu0 0.0
        %3190 = vmatpush1.msra.mxu0 0.0
        %3191 = vmatprep.subr.mxu0 0.0
        %3192 = vmatpush1.msra.mxu0 0.0
        %3193 = vmatprep.subr.mxu0 0.0
        %3194 = vmatpush1.msra.mxu0 0.0
        %3195 = vmatprep.subr.mxu0 0.0
        %3196 = vmatpush1.msra.mxu0 0.0
        %3197 = vmatprep.subr.mxu0 0.0
        %3198 = vmatpush1.msra.mxu0 0.0
        %3199 = vmatprep.subr.mxu0 0.0
        %3200 = vmatpush1.msra.mxu0 0.0
        %3201 = vmatprep.subr.mxu0 0.0
        %3202 = vmatpush1.msra.mxu0 0.0
        %3203 = vmatprep.subr.mxu0 0.0
        %3204 = vmatpush1.msra.mxu0 0.0
        %3205 = vmatprep.subr.mxu0 0.0
        %3206 = vmatpush1.msra.mxu0 0.0
        %3207 = vmatprep.subr.mxu0 0.0
        %3208 = vmatpush1.msra.mxu0 0.0
        %3209 = vmatprep.subr.mxu0 0.0
        %3210 = vmatpush1.msra.mxu0 0.0
        %3211 = vmatprep.subr.mxu0 0.0
        %3212 = vmatpush1.msra.mxu0 0.0
        %3213 = vmatprep.subr.mxu0 0.0
        %3214 = vmatpush1.msra.mxu0 0.0
        %3215 = vmatprep.subr.mxu0 0.0
        %3216 = vmatpush1.msra.mxu0 0.0
        %3217 = vmatprep.subr.mxu0 0.0
        %3218 = vmatpush1.msra.mxu0 0.0
        %3219 = vmatprep.subr.mxu0 0.0
        %3220 = vmatpush1.msra.mxu0 0.0
        %3221 = vmatprep.subr.mxu0 0.0
        %3222 = vmatpush1.msra.mxu0 0.0
        %3223 = vmatprep.subr.mxu0 0.0
        %3224 = vmatpush1.msra.mxu0 0.0
        %3225 = vmatprep.mubr.f32.mxu0 0.0
        %3226 = vmatmul.mubr.f32.gmra.mrb[0].mxu0 %v3156
        %v3227 = vpop.f32.mrb[0].mxu0
        %v3228 = vadd.f32 0.0, %v3227
        %v3229 = vpop.f32.mrb[0].mxu0
        %3230 = vmatprep.mubr.f32.mxu0 0.0
        %3231 = vmatmul.mubr.f32.gmra.mrb[0].mxu0 %v3159
        %v3232 = vpop.f32.mrb[0].mxu0
        %v3233 = vadd.f32 0.0, %v3232
        %v3234 = vpop.f32.mrb[0].mxu0
        %3235 = vdwg.mxu0
        %v3236 = vpack.c.bf16 %v3233, %v3228
        %s3237 = scalar_lea.vmem %s6, 28
        %v3238 = vld [vmem:[%s3237] sm:$0xf]
        %v3240 = vsel %vm909, %v3236, 0
        %v3243 = vsel %vm1311, %v3238, 0
        %3245 = vmatprep.subr.bf16.mxu0 0
        %3246 = vmatpush1.bf16.msra.mxu0 %v3243
        %3247 = vmatprep.subr.bf16.mxu0 0
        %3248 = vmatpush1.bf16.msra.mxu0 0
        %3249 = vmatprep.subr.bf16.mxu0 0
        %3250 = vmatpush1.bf16.msra.mxu0 0
        %3251 = vmatprep.subr.bf16.mxu0 0
        %3252 = vmatpush1.bf16.msra.mxu0 0
        %3253 = vmatprep.subr.bf16.mxu0 0
        %3254 = vmatpush1.bf16.msra.mxu0 0
        %3255 = vmatprep.subr.bf16.mxu0 0
        %3256 = vmatpush1.bf16.msra.mxu0 0
        %3257 = vmatprep.subr.bf16.mxu0 0
        %3258 = vmatpush1.bf16.msra.mxu0 0
        %3259 = vmatprep.subr.bf16.mxu0 0
        %3260 = vmatpush1.bf16.msra.mxu0 0
        %3261 = vmatprep.subr.bf16.mxu0 0
        %3262 = vmatpush1.bf16.msra.mxu0 0
        %3263 = vmatprep.subr.bf16.mxu0 0
        %3264 = vmatpush1.bf16.msra.mxu0 0
        %3265 = vmatprep.subr.bf16.mxu0 0
        %3266 = vmatpush1.bf16.msra.mxu0 0
        %3267 = vmatprep.subr.bf16.mxu0 0
        %3268 = vmatpush1.bf16.msra.mxu0 0
        %3269 = vmatprep.subr.bf16.mxu0 0
        %3270 = vmatpush1.bf16.msra.mxu0 0
        %3271 = vmatprep.subr.bf16.mxu0 0
        %3272 = vmatpush1.bf16.msra.mxu0 0
        %3273 = vmatprep.subr.bf16.mxu0 0
        %3274 = vmatpush1.bf16.msra.mxu0 0
        %3275 = vmatprep.subr.bf16.mxu0 0
        %3276 = vmatpush1.bf16.msra.mxu0 0
        %3277 = vmatprep.mubr.bf16.mxu0 0
        %3278 = vmatmul.mubr.bf16.gmra.mrb[0].mxu0 %v3240
        %v3279 = vpop.f32.mrb[0].mxu0
        %v3280 = vadd.f32 0.0, %v3279
        %v3281 = vpop.f32.mrb[0].mxu0
        %v3282 = vpop.f32.mrb[0].mxu0
        %v3283 = vadd.f32 0.0, %v3282
        %v3284 = vpop.f32.mrb[0].mxu0
        %3285 = vdwg.mxu0
        %v3286 = vadd.f32 %v3034, %v3280
        %v3287 = vadd.f32 %v3035, %v3283
        %s3288 = scalar_lea.vmem %s7, 1
        %v3289 = vld [vmem:[%s3288] sm:$0x1]
        %v3291 = vlaneseq
        %v3292 = vshrl.u32 %v3291, 7
        %v3293 = vsub.s32 0, %v3292
        %v3294 = vrot.slane %v3289, %v3293
        %v3296 = vadd.f32 %v3286, %v3294
        %v3297 = vadd.f32 %v3287, %v3294
        %v3298 = vadd.f32 %v2214, %v3296
        %v3299 = vadd.f32 %v2215, %v3297
        %s3300 = scalar_lea.vmem %s8, 1
        %v3301 = vld [vmem:[%s3300] sm:$0x1]
        %s3302 = scalar_lea.vmem %s9, 1
        %v3303 = vld [vmem:[%s3302] sm:$0x1]
        %v3304 = vsel %vm858, %v3298, 0.0
        %3305 = vadd.xlane.f32.xlu0 %v3304
        %v3306 = vpop.xlane.xlu0 %3305
        %v3307 = vsel %vm858, %v3299, 0.0
        %3308 = vadd.xlane.f32.xlu0 %v3307
        %v3309 = vpop.xlane.xlu0 %3308
        %v3310 = vmul.f32 %v3306, %v1926
        %v3311 = vmul.f32 %v3309, %v1926
        %v3312 = vsub.f32 %v3298, %v3310
        %v3313 = vsub.f32 %v3299, %v3311
        %v3314 = vmul.f32 %v3312, %v3312
        %v3315 = vmul.f32 %v3313, %v3313
        %v3316 = vsel %vm858, %v3314, 0.0
        %3317 = vadd.xlane.f32.xlu0 %v3316
        %v3318 = vpop.xlane.xlu0 %3317
        %v3319 = vsel %vm858, %v3315, 0.0
        %3320 = vadd.xlane.f32.xlu0 %v3319
        %v3321 = vpop.xlane.xlu0 %3320
        %v3322 = vmul.f32 %v3318, %v1926
        %v3323 = vmul.f32 %v3321, %v1926
        %v3324 = vadd.f32 %v3322, 1e-05
        %v3325 = vadd.f32 %v3323, 1e-05
        %v3326 = vrsqrt.pop %v3324
        %v3327 = vrsqrt.pop %v3325
        %v3328 = vmul.f32 %v3312, %v3326
        %v3329 = vmul.f32 %v3313, %v3327
        %v3331 = vlaneseq
        %v3332 = vshrl.u32 %v3331, 7
        %v3333 = vsub.s32 0, %v3332
        %v3334 = vrot.slane %v3301, %v3333
        %v3336 = vmul.f32 %v3328, %v3334
        %v3337 = vmul.f32 %v3329, %v3334
        %v3339 = vlaneseq
        %v3340 = vshrl.u32 %v3339, 7
        %v3341 = vsub.s32 0, %v3340
        %v3342 = vrot.slane %v3303, %v3341
        %v3344 = vadd.f32 %v3336, %v3342
        %v3345 = vadd.f32 %v3337, %v3342
        %v3346 = vpack.c.bf16 %v3345, %v3344
        %s3347 = scalar_lea.vmem %s10, 16
        %v3348 = vld [vmem:[%s3347] sm:$0xf]
        %v3349 = vld [vmem:[%s3347 + $0x4] sm:$0xf]
        %v3350 = vld [vmem:[%s3347 + $0x8] sm:$0xf]
        %v3351 = vld [vmem:[%s3347 + $0xc] sm:$0xf]
        %s3352 = scalar_lea.vmem %s11, 1
        %v3353 = vld [vmem:[%s3352] sm:$0x1]
        %v3355 = vlaneseq
        %v3356 = vshrl.u32 %v3355, 7
        %v3357 = vsub.s32 0, %v3356
        %v3358 = vrot.slane %v3353, %v3357
        %v3364 = vunpack.c.l.b16 %v3348
        %v3365 = vunpack.c.l.b16 %v3349
        %v3366 = vunpack.c.l.b16 %v3350
        %v3367 = vunpack.c.l.b16 %v3351
        %v3368 = vpack.c.b16 %v3365, %v3364
        %v3369 = vpack.c.b16 %v3367, %v3366
        %v3373 = vsel %vm858, %v3346, 0
        %3375 = vmatprep.subr.bf16.mxu0 0
        %3376 = vmatpush1.bf16.msra.mxu0 %v3368
        %3377 = vmatprep.subr.bf16.mxu0 0
        %3378 = vmatpush1.bf16.msra.mxu0 %v3369
        %3379 = vmatprep.subr.bf16.mxu0 0
        %3380 = vmatpush1.bf16.msra.mxu0 0
        %3381 = vmatprep.subr.bf16.mxu0 0
        %3382 = vmatpush1.bf16.msra.mxu0 0
        %3383 = vmatprep.subr.bf16.mxu0 0
        %3384 = vmatpush1.bf16.msra.mxu0 0
        %3385 = vmatprep.subr.bf16.mxu0 0
        %3386 = vmatpush1.bf16.msra.mxu0 0
        %3387 = vmatprep.subr.bf16.mxu0 0
        %3388 = vmatpush1.bf16.msra.mxu0 0
        %3389 = vmatprep.subr.bf16.mxu0 0
        %3390 = vmatpush1.bf16.msra.mxu0 0
        %3391 = vmatprep.subr.bf16.mxu0 0
        %3392 = vmatpush1.bf16.msra.mxu0 0
        %3393 = vmatprep.subr.bf16.mxu0 0
        %3394 = vmatpush1.bf16.msra.mxu0 0
        %3395 = vmatprep.subr.bf16.mxu0 0
        %3396 = vmatpush1.bf16.msra.mxu0 0
        %3397 = vmatprep.subr.bf16.mxu0 0
        %3398 = vmatpush1.bf16.msra.mxu0 0
        %3399 = vmatprep.subr.bf16.mxu0 0
        %3400 = vmatpush1.bf16.msra.mxu0 0
        %3401 = vmatprep.subr.bf16.mxu0 0
        %3402 = vmatpush1.bf16.msra.mxu0 0
        %3403 = vmatprep.subr.bf16.mxu0 0
        %3404 = vmatpush1.bf16.msra.mxu0 0
        %3405 = vmatprep.subr.bf16.mxu0 0
        %3406 = vmatpush1.bf16.msra.mxu0 0
        %3407 = vmatprep.mubr.bf16.mxu0 0
        %3408 = vmatmul.mubr.bf16.gmra.mrb[0].mxu0 %v3373
        %v3409 = vpop.f32.mrb[0].mxu0
        %v3410 = vadd.f32 %v3358, %v3409
        %v3411 = vpop.f32.mrb[0].mxu0
        %v3412 = vpop.f32.mrb[0].mxu0
        %v3413 = vadd.f32 %v3358, %v3412
        %v3414 = vpop.f32.mrb[0].mxu0
        %3415 = vdwg.mxu0
        %v3416 = vmul.f32 %v3410, 0.5
        %v3417 = vmul.f32 %v3413, 0.5
        %v3418 = vmul.f32 %v3410, 0.70710677
        %v3419 = vmul.f32 %v3413, 0.70710677
        %v3420 = vand.u32 2147483647, %v3418
        %v3421 = vand.u32 2147483647, %v3419
        %v3422 = vmul.f32 %v3420, 0.3275911
        %v3423 = vmul.f32 %v3421, 0.3275911
        %v3424 = vadd.f32 %v3422, 1.0
        %v3425 = vadd.f32 %v3423, 1.0
        %v3426 = vrcp.pop %v3424
        %v3427 = vmul.f32 1.0, %v3426
        %v3428 = vrcp.pop %v3425
        %v3429 = vmul.f32 1.0, %v3428
        %v3430 = vmul.f32 %v3427, 1.0614054
        %v3431 = vmul.f32 %v3429, 1.0614054
        %v3432 = vadd.f32 %v3430, -1.4531521
        %v3433 = vadd.f32 %v3431, -1.4531521
        %v3434 = vmul.f32 %v3432, %v3427
        %v3435 = vmul.f32 %v3433, %v3429
        %v3436 = vadd.f32 %v3434, 1.4214138
        %v3437 = vadd.f32 %v3435, 1.4214138
        %v3438 = vmul.f32 %v3436, %v3427
        %v3439 = vmul.f32 %v3437, %v3429
        %v3440 = vadd.f32 %v3438, -0.28449672
        %v3441 = vadd.f32 %v3439, -0.28449672
        %v3442 = vmul.f32 %v3440, %v3427
        %v3443 = vmul.f32 %v3441, %v3429
        %v3444 = vadd.f32 %v3442, 0.2548296
        %v3445 = vadd.f32 %v3443, 0.2548296
        %v3446 = vmul.f32 %v3444, %v3427
        %v3447 = vmul.f32 %v3445, %v3429
        %v3448 = vmul.f32 %v3420, %v3420
        %v3449 = vmul.f32 %v3421, %v3421
        %v3450 = vsub.f32 0.0, %v3448
        %v3451 = vsub.f32 0.0, %v3449
        %v3452 = vmul.f32 %v3450, 1.442695
        %v3453 = vpow.pop %v3452
        %v3454 = vmul.f32 %v3451, 1.442695
        %v3455 = vpow.pop %v3454
        %v3456 = vmul.f32 %v3446, %v3453
        %v3457 = vmul.f32 %v3447, %v3455
        %v3458 = vsub.f32 1.0, %v3456
        %v3459 = vsub.f32 1.0, %v3457
        %vm3460 = vcmp.ge.f32.partialorder %v3418, 0.0
        %vm3461 = vcmp.ge.f32.partialorder %v3419, 0.0
        %v3462 = vsub.f32 0.0, %v3458
        %v3463 = vsub.f32 0.0, %v3459
        %v3464 = vsel %vm3460, %v3458, %v3462
        %v3465 = vsel %vm3461, %v3459, %v3463
        %v3466 = vadd.f32 %v3464, 1.0
        %v3467 = vadd.f32 %v3465, 1.0
        %v3468 = vmul.f32 %v3416, %v3466
        %v3469 = vmul.f32 %v3417, %v3467
        %v3470 = vpack.c.bf16 %v3469, %v3468
        %s3471 = scalar_lea.vmem %s12, 32
        %v3472 = vld [vmem:[%s3471] sm:$0xf]
        %v3473 = vld [vmem:[%s3471 + $0x4] sm:$0xf]
        %v3474 = vld [vmem:[%s3471 + $0x8] sm:$0xf]
        %v3475 = vld [vmem:[%s3471 + $0xc] sm:$0xf]
        %v3476 = vld [vmem:[%s3471 + $0x10] sm:$0xf]
        %v3477 = vld [vmem:[%s3471 + $0x14] sm:$0xf]
        %v3478 = vld [vmem:[%s3471 + $0x18] sm:$0xf]
        %v3479 = vld [vmem:[%s3471 + $0x1c] sm:$0xf]
        %s3480 = scalar_lea.vmem %s13, 1
        %v3481 = vld [vmem:[%s3480] sm:$0x1]
        %v3483 = vlaneseq
        %v3484 = vshrl.u32 %v3483, 7
        %v3485 = vsub.s32 0, %v3484
        %v3486 = vrot.slane %v3481, %v3485
        %v3496 = vunpack.c.l.b16 %v3472
        %v3497 = vunpack.c.l.b16 %v3473
        %v3498 = vunpack.c.l.b16 %v3474
        %v3499 = vunpack.c.l.b16 %v3475
        %v3500 = vunpack.c.l.b16 %v3476
        %v3501 = vunpack.c.l.b16 %v3477
        %v3502 = vunpack.c.l.b16 %v3478
        %v3503 = vunpack.c.l.b16 %v3479
        %v3504 = vpack.c.b16 %v3497, %v3496
        %v3505 = vpack.c.b16 %v3499, %v3498
        %v3506 = vpack.c.b16 %v3501, %v3500
        %v3507 = vpack.c.b16 %v3503, %v3502
        %v3513 = vsel %vm2125, %v3470, 0
        %3515 = vmatprep.subr.bf16.mxu0 0
        %3516 = vmatpush1.bf16.msra.mxu0 %v3504
        %3517 = vmatprep.subr.bf16.mxu0 0
        %3518 = vmatpush1.bf16.msra.mxu0 %v3505
        %3519 = vmatprep.subr.bf16.mxu0 0
        %3520 = vmatpush1.bf16.msra.mxu0 %v3506
        %3521 = vmatprep.subr.bf16.mxu0 0
        %3522 = vmatpush1.bf16.msra.mxu0 %v3507
        %3523 = vmatprep.subr.bf16.mxu0 0
        %3524 = vmatpush1.bf16.msra.mxu0 0
        %3525 = vmatprep.subr.bf16.mxu0 0
        %3526 = vmatpush1.bf16.msra.mxu0 0
        %3527 = vmatprep.subr.bf16.mxu0 0
        %3528 = vmatpush1.bf16.msra.mxu0 0
        %3529 = vmatprep.subr.bf16.mxu0 0
        %3530 = vmatpush1.bf16.msra.mxu0 0
        %3531 = vmatprep.subr.bf16.mxu0 0
        %3532 = vmatpush1.bf16.msra.mxu0 0
        %3533 = vmatprep.subr.bf16.mxu0 0
        %3534 = vmatpush1.bf16.msra.mxu0 0
        %3535 = vmatprep.subr.bf16.mxu0 0
        %3536 = vmatpush1.bf16.msra.mxu0 0
        %3537 = vmatprep.subr.bf16.mxu0 0
        %3538 = vmatpush1.bf16.msra.mxu0 0
        %3539 = vmatprep.subr.bf16.mxu0 0
        %3540 = vmatpush1.bf16.msra.mxu0 0
        %3541 = vmatprep.subr.bf16.mxu0 0
        %3542 = vmatpush1.bf16.msra.mxu0 0
        %3543 = vmatprep.subr.bf16.mxu0 0
        %3544 = vmatpush1.bf16.msra.mxu0 0
        %3545 = vmatprep.subr.bf16.mxu0 0
        %3546 = vmatpush1.bf16.msra.mxu0 0
        %3547 = vmatprep.mubr.bf16.mxu0 0
        %3548 = vmatmul.mubr.bf16.gmra.mrb[0].mxu0 %v3513
        %v3549 = vpop.f32.mrb[0].mxu0
        %v3550 = vadd.f32 %v3486, %v3549
        %v3551 = vpop.f32.mrb[0].mxu0
        %v3552 = vpop.f32.mrb[0].mxu0
        %v3553 = vadd.f32 %v3486, %v3552
        %v3554 = vpop.f32.mrb[0].mxu0
        %3555 = vdwg.mxu0
        %v3556 = vadd.f32 %v3344, %v3550
        %v3557 = vadd.f32 %v3345, %v3553
        %s3558 = scalar_lea.vmem %s14, 1
        %v3559 = vld [vmem:[%s3558] sm:$0x1]
        %s3560 = scalar_lea.vmem %s15, 1
        %v3561 = vld [vmem:[%s3560] sm:$0x1]
        %v3562 = vsel %vm858, %v3556, 0.0
        %3563 = vadd.xlane.f32.xlu0 %v3562
        %v3564 = vpop.xlane.xlu0 %3563
        %v3565 = vsel %vm858, %v3557, 0.0
        %3566 = vadd.xlane.f32.xlu0 %v3565
        %v3567 = vpop.xlane.xlu0 %3566
        %v3568 = vmul.f32 %v3564, %v1926
        %v3569 = vmul.f32 %v3567, %v1926
        %v3570 = vsub.f32 %v3556, %v3568
        %v3571 = vsub.f32 %v3557, %v3569
        %v3572 = vmul.f32 %v3570, %v3570
        %v3573 = vmul.f32 %v3571, %v3571
        %v3574 = vsel %vm858, %v3572, 0.0
        %3575 = vadd.xlane.f32.xlu0 %v3574
        %v3576 = vpop.xlane.xlu0 %3575
        %v3577 = vsel %vm858, %v3573, 0.0
        %3578 = vadd.xlane.f32.xlu0 %v3577
        %v3579 = vpop.xlane.xlu0 %3578
        %v3580 = vmul.f32 %v3576, %v1926
        %v3581 = vmul.f32 %v3579, %v1926
        %v3582 = vadd.f32 %v3580, 1e-05
        %v3583 = vadd.f32 %v3581, 1e-05
        %v3584 = vrsqrt.pop %v3582
        %v3585 = vrsqrt.pop %v3583
        %v3586 = vmul.f32 %v3570, %v3584
        %v3587 = vmul.f32 %v3571, %v3585
        %v3589 = vlaneseq
        %v3590 = vshrl.u32 %v3589, 7
        %v3591 = vsub.s32 0, %v3590
        %v3592 = vrot.slane %v3559, %v3591
        %v3594 = vmul.f32 %v3586, %v3592
        %v3595 = vmul.f32 %v3587, %v3592
        %v3597 = vlaneseq
        %v3598 = vshrl.u32 %v3597, 7
        %v3599 = vsub.s32 0, %v3598
        %v3600 = vrot.slane %v3561, %v3599
        %v3602 = vadd.f32 %v3594, %v3600
        %v3603 = vadd.f32 %v3595, %v3600
        %v3604 = vld [vmem:[%s16] sm:$0x1]
        %v3605 = vld [vmem:[%s17] sm:$0x1]
        %v3606 = vsel %vm858, %v3602, 0.0
        %3607 = vadd.xlane.f32.xlu0 %v3606
        %v3608 = vpop.xlane.xlu0 %3607
        %v3609 = vsel %vm858, %v3603, 0.0
        %3610 = vadd.xlane.f32.xlu0 %v3609
        %v3611 = vpop.xlane.xlu0 %3610
        %v3612 = vmul.f32 %v3608, %v1926
        %v3613 = vmul.f32 %v3611, %v1926
        %v3614 = vsub.f32 %v3602, %v3612
        %v3615 = vsub.f32 %v3603, %v3613
        %v3616 = vmul.f32 %v3614, %v3614
        %v3617 = vmul.f32 %v3615, %v3615
        %v3618 = vsel %vm858, %v3616, 0.0
        %3619 = vadd.xlane.f32.xlu0 %v3618
        %v3620 = vpop.xlane.xlu0 %3619
        %v3621 = vsel %vm858, %v3617, 0.0
        %3622 = vadd.xlane.f32.xlu0 %v3621
        %v3623 = vpop.xlane.xlu0 %3622
        %v3624 = vmul.f32 %v3620, %v1926
        %v3625 = vmul.f32 %v3623, %v1926
        %v3626 = vadd.f32 %v3624, 1e-05
        %v3627 = vadd.f32 %v3625, 1e-05
        %v3628 = vrsqrt.pop %v3626
        %v3629 = vrsqrt.pop %v3627
        %v3630 = vmul.f32 %v3614, %v3628
        %v3631 = vmul.f32 %v3615, %v3629
        %v3633 = vlaneseq
        %v3634 = vshrl.u32 %v3633, 7
        %v3635 = vsub.s32 0, %v3634
        %v3636 = vrot.slane %v3604, %v3635
        %v3638 = vmul.f32 %v3630, %v3636
        %v3639 = vmul.f32 %v3631, %v3636
        %v3641 = vlaneseq
        %v3642 = vshrl.u32 %v3641, 7
        %v3643 = vsub.s32 0, %v3642
        %v3644 = vrot.slane %v3605, %v3643
        %v3646 = vadd.f32 %v3638, %v3644
        %v3647 = vadd.f32 %v3639, %v3644
        %v3648 = vmul.f32 %v3646, 0.5
        %v3649 = vmul.f32 %v3647, 0.5
        %v3650 = vmul.f32 %v3646, 0.70710677
        %v3651 = vmul.f32 %v3647, 0.70710677
        %v3652 = vand.u32 2147483647, %v3650
        %v3653 = vand.u32 2147483647, %v3651
        %v3654 = vmul.f32 %v3652, 0.3275911
        %v3655 = vmul.f32 %v3653, 0.3275911
        %v3656 = vadd.f32 %v3654, 1.0
        %v3657 = vadd.f32 %v3655, 1.0
        %v3658 = vrcp.pop %v3656
        %v3659 = vmul.f32 1.0, %v3658
        %v3660 = vrcp.pop %v3657
        %v3661 = vmul.f32 1.0, %v3660
        %v3662 = vmul.f32 %v3659, 1.0614054
        %v3663 = vmul.f32 %v3661, 1.0614054
        %v3664 = vadd.f32 %v3662, -1.4531521
        %v3665 = vadd.f32 %v3663, -1.4531521
        %v3666 = vmul.f32 %v3664, %v3659
        %v3667 = vmul.f32 %v3665, %v3661
        %v3668 = vadd.f32 %v3666, 1.4214138
        %v3669 = vadd.f32 %v3667, 1.4214138
        %v3670 = vmul.f32 %v3668, %v3659
        %v3671 = vmul.f32 %v3669, %v3661
        %v3672 = vadd.f32 %v3670, -0.28449672
        %v3673 = vadd.f32 %v3671, -0.28449672
        %v3674 = vmul.f32 %v3672, %v3659
        %v3675 = vmul.f32 %v3673, %v3661
        %v3676 = vadd.f32 %v3674, 0.2548296
        %v3677 = vadd.f32 %v3675, 0.2548296
        %v3678 = vmul.f32 %v3676, %v3659
        %v3679 = vmul.f32 %v3677, %v3661
        %v3680 = vmul.f32 %v3652, %v3652
        %v3681 = vmul.f32 %v3653, %v3653
        %v3682 = vsub.f32 0.0, %v3680
        %v3683 = vsub.f32 0.0, %v3681
        %v3684 = vmul.f32 %v3682, 1.442695
        %v3685 = vpow.pop %v3684
        %v3686 = vmul.f32 %v3683, 1.442695
        %v3687 = vpow.pop %v3686
        %v3688 = vmul.f32 %v3678, %v3685
        %v3689 = vmul.f32 %v3679, %v3687
        %v3690 = vsub.f32 1.0, %v3688
        %v3691 = vsub.f32 1.0, %v3689
        %vm3692 = vcmp.ge.f32.partialorder %v3650, 0.0
        %vm3693 = vcmp.ge.f32.partialorder %v3651, 0.0
        %v3694 = vsub.f32 0.0, %v3690
        %v3695 = vsub.f32 0.0, %v3691
        %v3696 = vsel %vm3692, %v3690, %v3694
        %v3697 = vsel %vm3693, %v3691, %v3695
        %v3698 = vadd.f32 %v3696, 1.0
        %v3699 = vadd.f32 %v3697, 1.0
        %v3700 = vmul.f32 %v3648, %v3698
        %v3701 = vmul.f32 %v3649, %v3699
        %v3702 = vld [vmem:[%s661] sm:$0xff]
        %v3703 = vld [vmem:[%s661 + $0x8] sm:$0xff]
        %3705 = vset.pattern.permute.xlu0 0
        %3706 = vperm.xlu0 %3705, %v3702
        %v3707 = vpop.permute.xlu0 %3706
        %3710 = vset.pattern.permute.xlu0 0
        %3711 = vperm.xlu0 %3710, %v3703
        %v3712 = vpop.permute.xlu0 %3711
        %v3714 = vmul.f32 %v3700, %v3707
        %v3715 = vmul.f32 %v3701, %v3712
        %v3717 = vrot.slane %v3714, 1
        %3718 = vrot.lane.b32.xlu0 %v3717, 32
        %v3719 = vpop.permute.xlu0 %3718
        %v3721 = vrot.slane %v3714, 2
        %3722 = vrot.lane.b32.xlu0 %v3721, 64
        %v3723 = vpop.permute.xlu0 %3722
        %v3725 = vrot.slane %v3714, 3
        %3726 = vrot.lane.b32.xlu0 %v3725, 96
        %v3727 = vpop.permute.xlu0 %3726
        %v3729 = vrot.slane %v3714, 4
        %v3731 = vrot.slane %v3714, 5
        %3732 = vrot.lane.b32.xlu0 %v3731, 32
        %v3733 = vpop.permute.xlu0 %3732
        %v3735 = vrot.slane %v3714, 6
        %3736 = vrot.lane.b32.xlu0 %v3735, 64
        %v3737 = vpop.permute.xlu0 %3736
        %v3739 = vrot.slane %v3714, 7
        %3740 = vrot.lane.b32.xlu0 %v3739, 96
        %v3741 = vpop.permute.xlu0 %3740
        %v3744 = vrot.slane %v3715, 1
        %3745 = vrot.lane.b32.xlu0 %v3744, 32
        %v3746 = vpop.permute.xlu0 %3745
        %v3748 = vrot.slane %v3715, 2
        %3749 = vrot.lane.b32.xlu0 %v3748, 64
        %v3750 = vpop.permute.xlu0 %3749
        %v3752 = vrot.slane %v3715, 3
        %3753 = vrot.lane.b32.xlu0 %v3752, 96
        %v3754 = vpop.permute.xlu0 %3753
        %v3756 = vrot.slane %v3715, 4
        %v3758 = vrot.slane %v3715, 5
        %3759 = vrot.lane.b32.xlu0 %v3758, 32
        %v3760 = vpop.permute.xlu0 %3759
        %v3762 = vrot.slane %v3715, 6
        %3763 = vrot.lane.b32.xlu0 %v3762, 64
        %v3764 = vpop.permute.xlu0 %3763
        %v3766 = vrot.slane %v3715, 7
        %3767 = vrot.lane.b32.xlu0 %v3766, 96
        %v3768 = vpop.permute.xlu0 %3767
        %v3770 = vsel %vm858, %v3714, %v3719
        %v3771 = vsel %vm2125, %v3770, %v3723
        %vm3772 = vcmask 785408
        %v3773 = vsel %vm3772, %v3771, %v3727
        %v3774 = vsel %vm858, %v3729, %v3733
        %v3775 = vsel %vm2125, %v3774, %v3737
        %v3776 = vsel %vm3772, %v3775, %v3741
        %v3777 = vsel %vm858, %v3715, %v3746
        %v3778 = vsel %vm2125, %v3777, %v3750
        %v3779 = vsel %vm3772, %v3778, %v3754
        %v3780 = vsel %vm858, %v3756, %v3760
        %v3781 = vsel %vm2125, %v3780, %v3764
        %v3782 = vsel %vm3772, %v3781, %v3768
        %v3783 = vpack.c.bf16 %v3773, %v3773
        %v3784 = vpack.c.bf16 %v3776, %v3776
        %v3785 = vpack.c.bf16 %v3779, %v3779
        %v3786 = vpack.c.bf16 %v3782, %v3782
        %v3787 = vld [vmem:[#allocation2] sm:$0xf]
        %v3788 = vld [vmem:[#allocation2 + $0x4] sm:$0xf]
        %v3789 = vld [vmem:[#allocation2 + $0x8] sm:$0xf]
        %v3790 = vld [vmem:[#allocation2 + $0xc] sm:$0xf]
        %v3791 = vld [vmem:[#allocation2 + $0x10] sm:$0xf]
        %v3792 = vld [vmem:[#allocation2 + $0x14] sm:$0xf]
        %v3793 = vld [vmem:[#allocation2 + $0x18] sm:$0xf]
        %v3794 = vld [vmem:[#allocation2 + $0x1c] sm:$0xf]
        %v3795 = vld [vmem:[#allocation2 + $0x20] sm:$0xf]
        %v3796 = vld [vmem:[#allocation2 + $0x24] sm:$0xf]
        %v3797 = vld [vmem:[#allocation2 + $0x28] sm:$0xf]
        %v3798 = vld [vmem:[#allocation2 + $0x2c] sm:$0xf]
        %v3799 = vld [vmem:[#allocation2 + $0x30] sm:$0xf]
        %v3800 = vld [vmem:[#allocation2 + $0x34] sm:$0xf]
        %v3801 = vld [vmem:[#allocation2 + $0x38] sm:$0xf]
        %v3802 = vld [vmem:[#allocation2 + $0x3c] sm:$0xf]
        %v3803 = vld [vmem:[#allocation2 + $0x40] sm:$0xf]
        %v3804 = vld [vmem:[#allocation2 + $0x44] sm:$0xf]
        %v3805 = vld [vmem:[#allocation2 + $0x48] sm:$0xf]
        %v3806 = vld [vmem:[#allocation2 + $0x4c] sm:$0xf]
        %v3807 = vld [vmem:[#allocation2 + $0x50] sm:$0xf]
        %v3808 = vld [vmem:[#allocation2 + $0x54] sm:$0xf]
        %v3809 = vld [vmem:[#allocation2 + $0x58] sm:$0xf]
        %v3810 = vld [vmem:[#allocation2 + $0x5c] sm:$0xf]
        %v3811 = vld [vmem:[#allocation2 + $0x60] sm:$0xf]
        %v3812 = vld [vmem:[#allocation2 + $0x64] sm:$0xf]
        %v3813 = vld [vmem:[#allocation2 + $0x68] sm:$0xf]
        %v3814 = vld [vmem:[#allocation2 + $0x6c] sm:$0xf]
        %v3815 = vld [vmem:[#allocation2 + $0x70] sm:$0xf]
        %v3816 = vld [vmem:[#allocation2 + $0x74] sm:$0xf]
        %v3817 = vld [vmem:[#allocation2 + $0x78] sm:$0xf]
        %v3818 = vld [vmem:[#allocation2 + $0x7c] sm:$0xf]
        %v3819 = vld [vmem:[#allocation2 + $0x80] sm:$0xf]
        %v3820 = vld [vmem:[#allocation2 + $0x84] sm:$0xf]
        %v3821 = vld [vmem:[#allocation2 + $0x88] sm:$0xf]
        %v3822 = vld [vmem:[#allocation2 + $0x8c] sm:$0xf]
        %v3823 = vld [vmem:[#allocation2 + $0x90] sm:$0xf]
        %v3824 = vld [vmem:[#allocation2 + $0x94] sm:$0xf]
        %v3825 = vld [vmem:[#allocation2 + $0x98] sm:$0xf]
        %v3826 = vld [vmem:[#allocation2 + $0x9c] sm:$0xf]
        %v3827 = vld [vmem:[#allocation2 + $0xa0] sm:$0xf]
        %v3828 = vld [vmem:[#allocation2 + $0xa4] sm:$0xf]
        %v3829 = vld [vmem:[#allocation2 + $0xa8] sm:$0xf]
        %v3830 = vld [vmem:[#allocation2 + $0xac] sm:$0xf]
        %v3831 = vld [vmem:[#allocation2 + $0xb0] sm:$0xf]
        %v3832 = vld [vmem:[#allocation2 + $0xb4] sm:$0xf]
        %v3833 = vld [vmem:[#allocation2 + $0xb8] sm:$0xf]
        %v3834 = vld [vmem:[#allocation2 + $0xbc] sm:$0xf]
        %v3835 = vld [vmem:[#allocation2 + $0xc0] sm:$0xf]
        %v3836 = vld [vmem:[#allocation2 + $0xc4] sm:$0xf]
        %v3837 = vld [vmem:[#allocation2 + $0xc8] sm:$0xf]
        %v3838 = vld [vmem:[#allocation2 + $0xcc] sm:$0xf]
        %v3839 = vld [vmem:[#allocation2 + $0xd0] sm:$0xf]
        %v3840 = vld [vmem:[#allocation2 + $0xd4] sm:$0xf]
        %v3841 = vld [vmem:[#allocation2 + $0xd8] sm:$0xf]
        %v3842 = vld [vmem:[#allocation2 + $0xdc] sm:$0xf]
        %v3843 = vld [vmem:[#allocation2 + $0xe0] sm:$0xf]
        %v3844 = vld [vmem:[#allocation2 + $0xe4] sm:$0xf]
        %v3845 = vld [vmem:[#allocation2 + $0xe8] sm:$0xf]
        %v3846 = vld [vmem:[#allocation2 + $0xec] sm:$0xf]
        %v3847 = vld [vmem:[#allocation2 + $0xf0] sm:$0xf]
        %v3848 = vld [vmem:[#allocation2 + $0xf4] sm:$0xf]
        %v3849 = vld [vmem:[#allocation2 + $0xf8] sm:$0xf]
        %v3850 = vld [vmem:[#allocation2 + $0xfc] sm:$0xf]
        %v3851 = vld [vmem:[%s19] sm:$0x1]
        %v3916 = vunpack.c.l.b16 %v3787
        %v3917 = vunpack.c.l.b16 %v3788
        %v3918 = vunpack.c.l.b16 %v3789
        %v3919 = vunpack.c.l.b16 %v3790
        %v3920 = vunpack.c.l.b16 %v3791
        %v3921 = vunpack.c.l.b16 %v3792
        %v3922 = vunpack.c.l.b16 %v3793
        %v3923 = vunpack.c.l.b16 %v3794
        %v3924 = vunpack.c.l.b16 %v3795
        %v3925 = vunpack.c.l.b16 %v3796
        %v3926 = vunpack.c.l.b16 %v3797
        %v3927 = vunpack.c.l.b16 %v3798
        %v3928 = vunpack.c.l.b16 %v3799
        %v3929 = vunpack.c.l.b16 %v3800
        %v3930 = vunpack.c.l.b16 %v3801
        %v3931 = vunpack.c.l.b16 %v3802
        %v3932 = vunpack.c.l.b16 %v3803
        %v3933 = vunpack.c.l.b16 %v3804
        %v3934 = vunpack.c.l.b16 %v3805
        %v3935 = vunpack.c.l.b16 %v3806
        %v3936 = vunpack.c.l.b16 %v3807
        %v3937 = vunpack.c.l.b16 %v3808
        %v3938 = vunpack.c.l.b16 %v3809
        %v3939 = vunpack.c.l.b16 %v3810
        %v3940 = vunpack.c.l.b16 %v3811
        %v3941 = vunpack.c.l.b16 %v3812
        %v3942 = vunpack.c.l.b16 %v3813
        %v3943 = vunpack.c.l.b16 %v3814
        %v3944 = vunpack.c.l.b16 %v3815
        %v3945 = vunpack.c.l.b16 %v3816
        %v3946 = vunpack.c.l.b16 %v3817
        %v3947 = vunpack.c.l.b16 %v3818
        %v3948 = vunpack.c.l.b16 %v3819
        %v3949 = vunpack.c.l.b16 %v3820
        %v3950 = vunpack.c.l.b16 %v3821
        %v3951 = vunpack.c.l.b16 %v3822
        %v3952 = vunpack.c.l.b16 %v3823
        %v3953 = vunpack.c.l.b16 %v3824
        %v3954 = vunpack.c.l.b16 %v3825
        %v3955 = vunpack.c.l.b16 %v3826
        %v3956 = vunpack.c.l.b16 %v3827
        %v3957 = vunpack.c.l.b16 %v3828
        %v3958 = vunpack.c.l.b16 %v3829
        %v3959 = vunpack.c.l.b16 %v3830
        %v3960 = vunpack.c.l.b16 %v3831
        %v3961 = vunpack.c.l.b16 %v3832
        %v3962 = vunpack.c.l.b16 %v3833
        %v3963 = vunpack.c.l.b16 %v3834
        %v3964 = vunpack.c.l.b16 %v3835
        %v3965 = vunpack.c.l.b16 %v3836
        %v3966 = vunpack.c.l.b16 %v3837
        %v3967 = vunpack.c.l.b16 %v3838
        %v3968 = vunpack.c.l.b16 %v3839
        %v3969 = vunpack.c.l.b16 %v3840
        %v3970 = vunpack.c.l.b16 %v3841
        %v3971 = vunpack.c.l.b16 %v3842
        %v3972 = vunpack.c.l.b16 %v3843
        %v3973 = vunpack.c.l.b16 %v3844
        %v3974 = vunpack.c.l.b16 %v3845
        %v3975 = vunpack.c.l.b16 %v3846
        %v3976 = vunpack.c.l.b16 %v3847
        %v3977 = vunpack.c.l.b16 %v3848
        %v3978 = vunpack.c.l.b16 %v3849
        %v3979 = vunpack.c.l.b16 %v3850
        %v3980 = vpack.c.b16 %v3917, %v3916
        %v3981 = vpack.c.b16 %v3919, %v3918
        %v3982 = vpack.c.b16 %v3921, %v3920
        %v3983 = vpack.c.b16 %v3923, %v3922
        %v3984 = vpack.c.b16 %v3925, %v3924
        %v3985 = vpack.c.b16 %v3927, %v3926
        %v3986 = vpack.c.b16 %v3929, %v3928
        %v3987 = vpack.c.b16 %v3931, %v3930
        %v3988 = vpack.c.b16 %v3933, %v3932
        %v3989 = vpack.c.b16 %v3935, %v3934
        %v3990 = vpack.c.b16 %v3937, %v3936
        %v3991 = vpack.c.b16 %v3939, %v3938
        %v3992 = vpack.c.b16 %v3941, %v3940
        %v3993 = vpack.c.b16 %v3943, %v3942
        %v3994 = vpack.c.b16 %v3945, %v3944
        %v3995 = vpack.c.b16 %v3947, %v3946
        %v3996 = vpack.c.b16 %v3949, %v3948
        %v3997 = vpack.c.b16 %v3951, %v3950
        %v3998 = vpack.c.b16 %v3953, %v3952
        %v3999 = vpack.c.b16 %v3955, %v3954
        %v4000 = vpack.c.b16 %v3957, %v3956
        %v4001 = vpack.c.b16 %v3959, %v3958
        %v4002 = vpack.c.b16 %v3961, %v3960
        %v4003 = vpack.c.b16 %v3963, %v3962
        %v4004 = vpack.c.b16 %v3965, %v3964
        %v4005 = vpack.c.b16 %v3967, %v3966
        %v4006 = vpack.c.b16 %v3969, %v3968
        %v4007 = vpack.c.b16 %v3971, %v3970
        %v4008 = vpack.c.b16 %v3973, %v3972
        %v4009 = vpack.c.b16 %v3975, %v3974
        %v4010 = vpack.c.b16 %v3977, %v3976
        %v4011 = vpack.c.b16 %v3979, %v3978
        %4044 = vmatprep.subr.bf16.mxu0 0
        %4045 = vmatpush1.bf16.msra.mxu0 %v3980
        %4046 = vmatprep.subr.bf16.mxu0 0
        %4047 = vmatpush1.bf16.msra.mxu0 %v3981
        %4048 = vmatprep.subr.bf16.mxu0 0
        %4049 = vmatpush1.bf16.msra.mxu0 %v3982
        %4050 = vmatprep.subr.bf16.mxu0 0
        %4051 = vmatpush1.bf16.msra.mxu0 %v3983
        %4052 = vmatprep.subr.bf16.mxu0 0
        %4053 = vmatpush1.bf16.msra.mxu0 %v3984
        %4054 = vmatprep.subr.bf16.mxu0 0
        %4055 = vmatpush1.bf16.msra.mxu0 %v3985
        %4056 = vmatprep.subr.bf16.mxu0 0
        %4057 = vmatpush1.bf16.msra.mxu0 %v3986
        %4058 = vmatprep.subr.bf16.mxu0 0
        %4059 = vmatpush1.bf16.msra.mxu0 %v3987
        %4060 = vmatprep.subr.bf16.mxu0 0
        %4061 = vmatpush1.bf16.msra.mxu0 %v3988
        %4062 = vmatprep.subr.bf16.mxu0 0
        %4063 = vmatpush1.bf16.msra.mxu0 %v3989
        %4064 = vmatprep.subr.bf16.mxu0 0
        %4065 = vmatpush1.bf16.msra.mxu0 %v3990
        %4066 = vmatprep.subr.bf16.mxu0 0
        %4067 = vmatpush1.bf16.msra.mxu0 %v3991
        %4068 = vmatprep.subr.bf16.mxu0 0
        %4069 = vmatpush1.bf16.msra.mxu0 %v3992
        %4070 = vmatprep.subr.bf16.mxu0 0
        %4071 = vmatpush1.bf16.msra.mxu0 %v3993
        %4072 = vmatprep.subr.bf16.mxu0 0
        %4073 = vmatpush1.bf16.msra.mxu0 %v3994
        %4074 = vmatprep.subr.bf16.mxu0 0
        %4075 = vmatpush1.bf16.msra.mxu0 %v3995
        %4076 = vmatprep.mubr.bf16.mxu0 %v3784
        %4077 = vmatmul.mubr.bf16.gmra.mrb[0].mxu0 %v3783
        %v4078 = vpop.f32.mrb[0].mxu0
        %v4079 = vadd.f32 %v3851, %v4078
        %v4080 = vpop.f32.mrb[0].mxu0
        %v4081 = vpop.f32.mrb[0].mxu0
        %v4082 = vpop.f32.mrb[0].mxu0
        %4083 = vdwg.mxu0
        %4084 = vmatprep.subr.bf16.mxu0 0
        %4085 = vmatpush1.bf16.msra.mxu0 %v3996
        %4086 = vmatprep.subr.bf16.mxu0 0
        %4087 = vmatpush1.bf16.msra.mxu0 %v3997
        %4088 = vmatprep.subr.bf16.mxu0 0
        %4089 = vmatpush1.bf16.msra.mxu0 %v3998
        %4090 = vmatprep.subr.bf16.mxu0 0
        %4091 = vmatpush1.bf16.msra.mxu0 %v3999
        %4092 = vmatprep.subr.bf16.mxu0 0
        %4093 = vmatpush1.bf16.msra.mxu0 %v4000
        %4094 = vmatprep.subr.bf16.mxu0 0
        %4095 = vmatpush1.bf16.msra.mxu0 %v4001
        %4096 = vmatprep.subr.bf16.mxu0 0
        %4097 = vmatpush1.bf16.msra.mxu0 %v4002
        %4098 = vmatprep.subr.bf16.mxu0 0
        %4099 = vmatpush1.bf16.msra.mxu0 %v4003
        %4100 = vmatprep.subr.bf16.mxu0 0
        %4101 = vmatpush1.bf16.msra.mxu0 %v4004
        %4102 = vmatprep.subr.bf16.mxu0 0
        %4103 = vmatpush1.bf16.msra.mxu0 %v4005
        %4104 = vmatprep.subr.bf16.mxu0 0
        %4105 = vmatpush1.bf16.msra.mxu0 %v4006
        %4106 = vmatprep.subr.bf16.mxu0 0
        %4107 = vmatpush1.bf16.msra.mxu0 %v4007
        %4108 = vmatprep.subr.bf16.mxu0 0
        %4109 = vmatpush1.bf16.msra.mxu0 %v4008
        %4110 = vmatprep.subr.bf16.mxu0 0
        %4111 = vmatpush1.bf16.msra.mxu0 %v4009
        %4112 = vmatprep.subr.bf16.mxu0 0
        %4113 = vmatpush1.bf16.msra.mxu0 %v4010
        %4114 = vmatprep.subr.bf16.mxu0 0
        %4115 = vmatpush1.bf16.msra.mxu0 %v4011
        %4116 = vmatprep.mubr.bf16.mxu0 %v3786
        %4117 = vmatmul.mubr.bf16.gmra.mrb[0].mxu0 %v3785
        %v4118 = vpop.f32.mrb[0].mxu0
        %v4119 = vadd.f32 %v4079, %v4118
        %v4120 = vpop.f32.mrb[0].mxu0
        %v4121 = vpop.f32.mrb[0].mxu0
        %v4122 = vpop.f32.mrb[0].mxu0
        %4123 = vdwg.mxu0
        %v4124 = vxor.u32 %v4119, 2147483648
        %v4125 = vmul.f32 %v4124, 1.442695
        %v4126 = vpow.pop %v4125
        %v4127 = vadd.f32 %v4126, 1.0
        %v4128 = vrcp.pop %v4127
        %v4129 = vmul.f32 1.0, %v4128
        %4130 = vst [vmem:[%s651] sm:$0x1] %v4129
        %s4131 = sand.u32 %s473, 1
        %s4132 = scalar_lea.sflag [#allocation4], %s4131
        %s4133 = sand.u32 %s473, 1
        %s4134 = scalar_lea.vmem [#allocation5], %s4133
        // Predicated region
        $region105: #{transformer_forward.1} parent=99 // pred_check
          %p4135 = pneg %p483
        $region106: #{transformer_forward.1} parent=99 // pred_check_branch
          %4137 = sbr.rel (%p4135) target = $region108
        $region107: #{transformer_forward.1} parent=99 // pred_region
          %s4139 = ssub.s32 16, 16
          %4140 = vsyncadd %s4132, %s4139
          %s4141 = smul.addr %s35, 16
          %s4142 = scalar_lea.hbm %s20, %s4141
          %s4144 = sshll.u32 %s4134, 4
          %s4145 = int_to_ptr.vmem [resolvable:$true] %s4144
          %4147 = dma.vmem_to_hbm [thread:$0]  %s4145, 16, %s4142, %s4132
        $region108: #{transformer_forward.1} parent=99 // pred_fallthru
          _
      $region100: #{transformer_forward.1} parent=5 // pred_fallthru
        _
      %p4148 = scmp.le.s32.totalorder 2, %s30
      // Predicated region
      $region109: #{transformer_forward.1} parent=5 // pred_check
        %p4149 = pneg %p4148
      $region110: #{transformer_forward.1} parent=5 // pred_check_branch
        %4151 = sbr.rel (%p4149) target = $region112
      $region111: #{transformer_forward.1} parent=5 // pred_region
        %s4152 = ssub.s32 %s30, 2
        // Predicated region
        $region113: #{transformer_forward.1} parent=111 // pred_check
          %p4153 = pneg %p489
        $region114: #{transformer_forward.1} parent=111 // pred_check_branch
          %4155 = sbr.rel (%p4153) target = $region116
        $region115: #{transformer_forward.1} parent=111 // pred_region
          %s4156 = sand.u32 %s474, 1
          %s4157 = scalar_lea.sflag [#allocation4], %s4156
          %s4158 = sand.u32 %s474, 1
          %s4159 = scalar_lea.vmem [#allocation5], %s4158
          %4160 = dma.done %s4157, 16
        $region116: #{transformer_forward.1} parent=111 // pred_fallthru
          _
      $region112: #{transformer_forward.1} parent=5 // pred_fallthru
        _
    $region6: #{transformer_forward.1} parent=1 // loop_footer
      %s34 = sadd.s32 1, %s30
    $region7: #{transformer_forward.1} parent=1 // loop_footer_branch
      %29 = sbr.rel target = $region3
    $region8: #{transformer_forward.1} parent=1 // loop_exit
      _
    %4161 = vsyncpa [#allocation3], 1
    %s4162 = scalar_lea.sflag [#allocation3], 1
    %4163 = vsyncpa %s4162, 1
    %4164 = vsyncpa [#allocation4], 1
    %s4165 = scalar_lea.sflag [#allocation4], 1
    %4166 = vsyncpa %s4165, 1

</llo_original>
